<compile_context>
chip_gen: v5e
topology: v5e:2x2
jax: 0.10.0
libtpu: 0.0.40
codegen_flags: <defaults>
</compile_context>

<pallas_src>
import functools
import math

import jax
import jax.numpy as jnp
from jax.experimental import pallas as pl
from jax.experimental.pallas import tpu as pltpu


def _modconv_kernel(sv_ref, w2_ref, w_ref, x_ref, o_ref, xpad_ref, acc_ref, *,
                    H, W, kh, kw, pad, scale, demod):
    # sv_ref : (1, 2, Cin) f32   row 0 = s (demod), row 1 = s*input_gain (x modulation)
    # w2_ref : (Cin, Cout) f32   sum over taps of weight^2 (demod matvec)
    # w_ref  : (kh*kw, Cin, Cout) compute dtype, resident & unmodified across the grid
    # x_ref  : (1, H, W, Cin)    per-sample NHWC input (un-padded, native dtype)
    # o_ref  : (1, Ho*Wo, Cout)
    # xpad   : (Hp, Wp, Cin)     VMEM scratch: modulated + zero-padded input
    # acc    : (Ho*Wo, Cout) f32 VMEM accumulator
    hp = H + 2 * pad
    wp = W + 2 * pad
    ho = hp - kh + 1
    wo = wp - kw + 1
    cin = w_ref.shape[1]
    cdtype = xpad_ref.dtype

    sv = sv_ref[...]                                    # (1, 2, Cin) f32
    s = sv[0, 0:1, :]                                   # (1, Cin) f32 (demod)
    xs_scale = sv[0, 1:2, :].astype(cdtype)             # (1, Cin) (x modulation)

    # Per-output-channel factor folded into the output (conv linearity):
    #   y = (scale * d[cout]) * conv(x * s * gain, weight)
    if demod:
        m = jnp.dot(s * s, w2_ref[...], preferred_element_type=jnp.float32)  # (1, Cout)
        fac = scale * jax.lax.rsqrt((scale * scale) * m + 1e-8)              # (1, Cout)
    else:
        fac = scale

    # Fused pad + style modulation into VMEM (no wrapper jnp.pad HBM pass).
    if pad > 0:
        xpad_ref[0:pad, :, :] = jnp.zeros((pad, wp, cin), cdtype)
        xpad_ref[hp - pad:hp, :, :] = jnp.zeros((pad, wp, cin), cdtype)
        xpad_ref[:, 0:pad, :] = jnp.zeros((hp, pad, cin), cdtype)
        xpad_ref[:, wp - pad:wp, :] = jnp.zeros((hp, pad, cin), cdtype)
    xpad_ref[pad:pad + H, pad:pad + W, :] = (x_ref[0] * xs_scale).astype(cdtype)

    # kh*kw shifted MXU matmuls.  Width (kx) shift hoisted out of the tap loop:
    # one relayout load per kx; ky slices are on the leading (non-tiled) axis.
    first = True
    for kx in range(kw):
        xw = xpad_ref[:, kx:kx + wo, :]                 # (Hp, Wo, Cin), loaded once per kx
        for ky in range(kh):
            lhs = xw[ky:ky + ho].reshape(ho * wo, cin)  # native dtype MXU operand
            part = jnp.dot(lhs, w_ref[ky * kw + kx],
                           preferred_element_type=jnp.float32)
            if first:
                acc_ref[...] = part
                first = False
            else:
                acc_ref[...] += part

    o_ref[0] = (acc_ref[...] * fac).astype(o_ref.dtype)


def _vmem_limit_bytes():
    # ~75% of physical VMEM: ~96 MiB on v5e/v6e (128 MiB), ~48 MiB on v7x (64 MiB).
    cap = 64 * 1024 * 1024
    try:
        info = pltpu.get_tpu_info()
        cap = int(getattr(info, "vmem_capacity_bytes", cap) or cap)
    except Exception:
        pass
    return max(32 * 1024 * 1024, min(100 * 1024 * 1024, (cap * 3) // 4))


def modulated_conv(x, s, weight, *, padding=1, demod=True, input_gain=None,
                   channels_last=False):
    """x: (B, Cin, H, W), s: (B, Cin), weight: (Cout, Cin, kh, kw) -> (B, Cout, Ho, Wo)."""
    B, Cin, H, W = x.shape
    Cout, Cin_w, kh, kw = weight.shape
    assert Cin_w == Cin
    scale = 1.0 / math.sqrt(Cin * kh * kw)
    ho = H + 2 * padding - kh + 1
    wo = W + 2 * padding - kw + 1
    hp, wp = H + 2 * padding, W + 2 * padding

    # Style / gain vectors: row 0 drives demod (s only, pre-gain, matching the
    # reference order), row 1 scales the input channels (s * gain).
    s32 = s.astype(jnp.float32)
    if input_gain is not None:
        g = jnp.broadcast_to(jnp.asarray(input_gain, jnp.float32), (B, Cin))
        xscale = s32 * g
    else:
        xscale = s32
    sv = jnp.stack([s32, xscale], axis=1)                                   # (B, 2, Cin)

    # Shared weight, tap-major, in the MXU compute dtype (bf16 stays bf16).
    wt = jnp.transpose(weight, (2, 3, 1, 0)).reshape(kh * kw, Cin, Cout).astype(x.dtype)
    # Precomputed per-(cin,cout) sum of squared taps for the in-kernel demod matvec.
    w2 = jnp.sum(jnp.square(weight.astype(jnp.float32)), axis=(2, 3)).T      # (Cin, Cout)

    # NCHW -> NHWC layout glue only (padding is fused in-kernel).
    x_nhwc = jnp.transpose(x, (0, 2, 3, 1))

    kernel = functools.partial(_modconv_kernel, H=H, W=W, kh=kh, kw=kw,
                               pad=padding, scale=scale, demod=demod)

    out = pl.pallas_call(
        kernel,
        out_shape=jax.ShapeDtypeStruct((B, ho * wo, Cout), x.dtype),
        grid_spec=pltpu.PrefetchScalarGridSpec(
            num_scalar_prefetch=0,
            grid=(B,),
            in_specs=[
                pl.BlockSpec((1, 2, Cin), lambda b: (b, 0, 0)),            # s / s*gain
                pl.BlockSpec((Cin, Cout), lambda b: (0, 0)),               # W2 (resident)
                pl.BlockSpec((kh * kw, Cin, Cout), lambda b: (0, 0, 0)),   # weight (resident)
                pl.BlockSpec((1, H, W, Cin), lambda b: (b, 0, 0, 0)),      # un-padded x
            ],
            out_specs=pl.BlockSpec((1, ho * wo, Cout), lambda b: (b, 0, 0)),
            scratch_shapes=[
                pltpu.VMEM((hp, wp, Cin), x.dtype),       # modulated + padded input
                pltpu.VMEM((ho * wo, Cout), jnp.float32),  # f32 accumulator
            ],
        ),
        compiler_params=pltpu.CompilerParams(
            dimension_semantics=("parallel",),            # batch axis -> megacore
            vmem_limit_bytes=_vmem_limit_bytes(),
        ),
    )(sv, w2, wt, x_nhwc)

    out = out.reshape(B, ho, wo, Cout)
    if channels_last:
        return out
    return out.transpose(0, 3, 1, 2)


def _reference(x, s, weight, *, padding=1, demod=True, input_gain=None):
    # Pure-JAX mirror of the PyTorch forward (grouped conv with per-sample weights).
    B, Cin, H, W = x.shape
    Cout, _, kh, kw = weight.shape
    scale = 1.0 / math.sqrt(Cin * kh * kw)
    w = weight[None, :, :, :, :] * s[:, None, :, None, None] * scale
    if demod:
        d = jax.lax.rsqrt(jnp.sum(jnp.square(w), axis=(2, 3, 4)) + 1e-8)
        w = w * d[:, :, None, None, None]
    if input_gain is not None:
        g = jnp.broadcast_to(jnp.asarray(input_gain, x.dtype), (B, Cin))
        w = w * g[:, None, :, None, None]
    xr = x.reshape(1, B * Cin, H, W)
    wr = w.reshape(B * Cout, Cin, kh, kw)
    out = jax.lax.conv_general_dilated(
        xr, wr, window_strides=(1, 1),
        padding=[(padding, padding), (padding, padding)],
        dimension_numbers=("NCHW", "OIHW", "NCHW"),
        feature_group_count=B,
        precision=jax.lax.Precision.HIGHEST)
    return out.reshape(B, Cout, out.shape[-2], out.shape[-1])


if __name__ == "__main__":
    key = jax.random.PRNGKey(0)
    k1, k2, k3, k4 = jax.random.split(key, 4)

    B, Cin, Cout, H, W, ksz, pad = 2, 4, 8, 16, 16, 3, 1
    x = jax.random.normal(k1, (B, Cin, H, W), dtype=jnp.float32)
    s = jax.random.normal(k2, (B, Cin), dtype=jnp.float32) + 1.0
    weight = jax.random.normal(k3, (Cout, Cin, ksz, ksz), dtype=jnp.float32)
    gain = jax.random.uniform(k4, (1, Cin), dtype=jnp.float32) + 0.5

    # demod path
    out = jax.block_until_ready(modulated_conv(x, s, weight, padding=pad, demod=True))
    ref = _reference(x, s, weight, padding=pad, demod=True)
    assert out.shape == (B, Cout, H, W), out.shape
    err = float(jnp.max(jnp.abs(out - ref)))
    assert jnp.allclose(out, ref, atol=5e-3, rtol=5e-3), f"demod mismatch, max err={err}"

    # demod + input_gain path (gain folded into activations inside the kernel)
    out_g = jax.block_until_ready(
        modulated_conv(x, s, weight, padding=pad, demod=True, input_gain=gain))
    ref_g = _reference(x, s, weight, padding=pad, demod=True, input_gain=gain)
    err_g = float(jnp.max(jnp.abs(out_g - ref_g)))
    assert jnp.allclose(out_g, ref_g, atol=5e-3, rtol=5e-3), f"gain mismatch, max err={err_g}"

    # no-demod path
    out_nd = jax.block_until_ready(modulated_conv(x, s, weight, padding=pad, demod=False))
    ref_nd = _reference(x, s, weight, padding=pad, demod=False)
    err_nd = float(jnp.max(jnp.abs(out_nd - ref_nd)))
    assert jnp.allclose(out_nd, ref_nd, atol=5e-3, rtol=5e-3), f"no-demod mismatch, max err={err_nd}"

    # bf16 smoke run (native-dtype MXU path) — shape/finiteness check only.
    out_bf = jax.block_until_ready(
        modulated_conv(x.astype(jnp.bfloat16), s, weight, padding=pad, demod=True))
    assert out_bf.shape == (B, Cout, H, W)
    assert bool(jnp.all(jnp.isfinite(out_bf.astype(jnp.float32))))

    print("KERNEL_OK")
</pallas_src>

<mosaic_0001>
module attributes {stable_mosaic.version = 11 : i64} {
  func.func @_modconv_kernel(%arg0: i32, %arg1: memref<1x2x4xf32, #tpu.memory_space<vmem>>, %arg2: memref<4x8xf32, #tpu.memory_space<vmem>>, %arg3: memref<9x4x8xf32, #tpu.memory_space<vmem>>, %arg4: memref<1x16x16x4xf32, #tpu.memory_space<vmem>>, %arg5: memref<1x256x8xf32, #tpu.memory_space<vmem>>, %arg6: memref<18x18x4xf32, #tpu.memory_space<vmem>>, %arg7: memref<256x8xf32, #tpu.memory_space<vmem>>) attributes {dimension_semantics = [#tpu.dimension_semantics<parallel>], iteration_bounds = array<i64: 2>, scalar_prefetch = 0 : i64, scratch_operands = 2 : i64, tpu.core_type = #tpu.core_type<tc>, window_params = [{transform_indices = @transform_0, window_bounds = array<i64: 1, 2, 4>}, {pipeline_mode = #tpu.pipeline_mode<synchronous>, transform_indices = @transform_1, window_bounds = array<i64: 4, 8>}, {pipeline_mode = #tpu.pipeline_mode<synchronous>, transform_indices = @transform_2, window_bounds = array<i64: 9, 4, 8>}, {transform_indices = @transform_3, window_bounds = array<i64: 1, 16, 16, 4>}, {transform_indices = @transform_4, window_bounds = array<i64: 1, 256, 8>}]} {
    %c0 = arith.constant 0 : index
    %c0_0 = arith.constant 0 : index
    %c0_1 = arith.constant 0 : index
    %0 = vector.load %arg1[%c0, %c0_0, %c0_1] : memref<1x2x4xf32, #tpu.memory_space<vmem>>, vector<1x2x4xf32>
    %1 = vector.extract_strided_slice %0 {offsets = [0, 0, 0], sizes = [1, 1, 4], strides = [1, 1, 1]} : vector<1x2x4xf32> to vector<1x1x4xf32>
    %2 = vector.shape_cast %1 : vector<1x1x4xf32> to vector<1x4xf32>
    %3 = vector.extract_strided_slice %0 {offsets = [0, 1, 0], sizes = [1, 1, 4], strides = [1, 1, 1]} : vector<1x2x4xf32> to vector<1x1x4xf32>
    %4 = vector.shape_cast %3 : vector<1x1x4xf32> to vector<1x4xf32>
    %5 = arith.mulf %2, %2 : vector<1x4xf32>
    %c0_2 = arith.constant 0 : index
    %c0_3 = arith.constant 0 : index
    %6 = vector.load %arg2[%c0_2, %c0_3] : memref<4x8xf32, #tpu.memory_space<vmem>>, vector<4x8xf32>
    %cst = arith.constant dense<0.000000e+00> : vector<1x8xf32>
    %7 = tpu.matmul %5, %6, %cst {dimension_numbers = #tpu.dot_dimension_numbers<[1], [0], [0], [1], [0, 0, 1, 1], [], []>} : vector<1x4xf32>, vector<4x8xf32>, vector<1x8xf32> -> vector<1x8xf32>
    %cst_4 = arith.constant 0.027777778 : f32
    %8 = vector.broadcast %cst_4 : f32 to vector<1x8xf32>
    %9 = arith.mulf %8, %7 : vector<1x8xf32>
    %cst_5 = arith.constant 9.99999993E-9 : f32
    %10 = vector.broadcast %cst_5 : f32 to vector<1x8xf32>
    %11 = arith.addf %9, %10 : vector<1x8xf32>
    %12 = math.rsqrt %11 : vector<1x8xf32>
    %cst_6 = arith.constant 0.166666672 : f32
    %13 = vector.broadcast %cst_6 : f32 to vector<1x8xf32>
    %14 = arith.mulf %13, %12 : vector<1x8xf32>
    %cst_7 = arith.constant 0.000000e+00 : f32
    %15 = vector.broadcast %cst_7 : f32 to vector<1x18x4xf32>
    %c0_8 = arith.constant 0 : index
    %c0_9 = arith.constant 0 : index
    %c0_10 = arith.constant 0 : index
    %16 = vector.load %arg6[%c0_8, %c0_9, %c0_10] : memref<18x18x4xf32, #tpu.memory_space<vmem>>, vector<1x18x4xf32>
    tpu.vector_store %arg6[%c0_8, %c0_9, %c0_10], %15 {strides = array<i32>} : memref<18x18x4xf32, #tpu.memory_space<vmem>>, vector<1x18x4xf32>,
    %cst_11 = arith.constant 0.000000e+00 : f32
    %17 = vector.broadcast %cst_11 : f32 to vector<1x18x4xf32>
    %c17 = arith.constant 17 : index
    %c0_12 = arith.constant 0 : index
    %c0_13 = arith.constant 0 : index
    %18 = vector.load %arg6[%c17, %c0_12, %c0_13] : memref<18x18x4xf32, #tpu.memory_space<vmem>>, vector<1x18x4xf32>
    tpu.vector_store %arg6[%c17, %c0_12, %c0_13], %17 {strides = array<i32>} : memref<18x18x4xf32, #tpu.memory_space<vmem>>, vector<1x18x4xf32>,
    %cst_14 = arith.constant 0.000000e+00 : f32
    %19 = vector.broadcast %cst_14 : f32 to vector<18x1x4xf32>
    %c0_15 = arith.constant 0 : index
    %c0_16 = arith.constant 0 : index
    %c0_17 = arith.constant 0 : index
    %20 = vector.load %arg6[%c0_15, %c0_16, %c0_17] : memref<18x18x4xf32, #tpu.memory_space<vmem>>, vector<18x1x4xf32>
    tpu.vector_store %arg6[%c0_15, %c0_16, %c0_17], %19 {strides = array<i32>} : memref<18x18x4xf32, #tpu.memory_space<vmem>>, vector<18x1x4xf32>,
    %cst_18 = arith.constant 0.000000e+00 : f32
    %21 = vector.broadcast %cst_18 : f32 to vector<18x1x4xf32>
    %c0_19 = arith.constant 0 : index
    %c17_20 = arith.constant 17 : index
    %c0_21 = arith.constant 0 : index
    %22 = vector.load %arg6[%c0_19, %c17_20, %c0_21] : memref<18x18x4xf32, #tpu.memory_space<vmem>>, vector<18x1x4xf32>
    tpu.vector_store %arg6[%c0_19, %c17_20, %c0_21], %21 {strides = array<i32>} : memref<18x18x4xf32, #tpu.memory_space<vmem>>, vector<18x1x4xf32>,
    %c0_22 = arith.constant 0 : index
    %c0_23 = arith.constant 0 : index
    %c0_24 = arith.constant 0 : index
    %c0_25 = arith.constant 0 : index
    %23 = vector.load %arg4[%c0_22, %c0_23, %c0_24, %c0_25] : memref<1x16x16x4xf32, #tpu.memory_space<vmem>>, vector<1x16x16x4xf32>
    %24 = vector.shape_cast %23 : vector<1x16x16x4xf32> to vector<16x16x4xf32>
    %25 = vector.shape_cast %4 : vector<1x4xf32> to vector<1x1x4xf32>
    %26 = vector.broadcast %25 : vector<1x1x4xf32> to vector<16x16x4xf32>
    %27 = arith.mulf %24, %26 : vector<16x16x4xf32>
    %c1 = arith.constant 1 : index
    %c1_26 = arith.constant 1 : index
    %c0_27 = arith.constant 0 : index
    %28 = vector.load %arg6[%c1, %c1_26, %c0_27] : memref<18x18x4xf32, #tpu.memory_space<vmem>>, vector<16x16x4xf32>
    tpu.vector_store %arg6[%c1, %c1_26, %c0_27], %27 {strides = array<i32>} : memref<18x18x4xf32, #tpu.memory_space<vmem>>, vector<16x16x4xf32>,
    %c0_28 = arith.constant 0 : index
    %c0_29 = arith.constant 0 : index
    %c0_30 = arith.constant 0 : index
    %29 = vector.load %arg6[%c0_28, %c0_29, %c0_30] : memref<18x18x4xf32, #tpu.memory_space<vmem>>, vector<18x16x4xf32>
    %30 = vector.extract_strided_slice %29 {offsets = [0, 0, 0], sizes = [16, 16, 4], strides = [1, 1, 1]} : vector<18x16x4xf32> to vector<16x16x4xf32>
    %31 = vector.shape_cast %30 : vector<16x16x4xf32> to vector<256x4xf32>
    %c0_31 = arith.constant 0 : index
    %c0_32 = arith.constant 0 : index
    %c0_33 = arith.constant 0 : index
    %32 = vector.load %arg3[%c0_31, %c0_32, %c0_33] : memref<9x4x8xf32, #tpu.memory_space<vmem>>, vector<1x4x8xf32>
    %33 = vector.shape_cast %32 : vector<1x4x8xf32> to vector<4x8xf32>
    %cst_34 = arith.constant dense<0.000000e+00> : vector<256x8xf32>
    %34 = tpu.matmul %31, %33, %cst_34 {dimension_numbers = #tpu.dot_dimension_numbers<[1], [0], [0], [1], [0, 0, 1, 1], [], []>} : vector<256x4xf32>, vector<4x8xf32>, vector<256x8xf32> -> vector<256x8xf32>
    %c0_35 = arith.constant 0 : index
    %c0_36 = arith.constant 0 : index
    %35 = vector.load %arg7[%c0_35, %c0_36] : memref<256x8xf32, #tpu.memory_space<vmem>>, vector<256x8xf32>
    tpu.vector_store %arg7[%c0_35, %c0_36], %34 {strides = array<i32>} : memref<256x8xf32, #tpu.memory_space<vmem>>, vector<256x8xf32>,
    %36 = vector.extract_strided_slice %29 {offsets = [1, 0, 0], sizes = [16, 16, 4], strides = [1, 1, 1]} : vector<18x16x4xf32> to vector<16x16x4xf32>
    %37 = vector.shape_cast %36 : vector<16x16x4xf32> to vector<256x4xf32>
    %c3 = arith.constant 3 : index
    %c0_37 = arith.constant 0 : index
    %c0_38 = arith.constant 0 : index
    %38 = vector.load %arg3[%c3, %c0_37, %c0_38] : memref<9x4x8xf32, #tpu.memory_space<vmem>>, vector<1x4x8xf32>
    %39 = vector.shape_cast %38 : vector<1x4x8xf32> to vector<4x8xf32>
    %cst_39 = arith.constant dense<0.000000e+00> : vector<256x8xf32>
    %40 = tpu.matmul %37, %39, %cst_39 {dimension_numbers = #tpu.dot_dimension_numbers<[1], [0], [0], [1], [0, 0, 1, 1], [], []>} : vector<256x4xf32>, vector<4x8xf32>, vector<256x8xf32> -> vector<256x8xf32>
    %c0_40 = arith.constant 0 : index
    %c0_41 = arith.constant 0 : index
    %41 = vector.load %arg7[%c0_40, %c0_41] : memref<256x8xf32, #tpu.memory_space<vmem>>, vector<256x8xf32>
    %42 = arith.addf %41, %40 : vector<256x8xf32>
    %c0_42 = arith.constant 0 : index
    %c0_43 = arith.constant 0 : index
    %43 = vector.load %arg7[%c0_42, %c0_43] : memref<256x8xf32, #tpu.memory_space<vmem>>, vector<256x8xf32>
    tpu.vector_store %arg7[%c0_42, %c0_43], %42 {strides = array<i32>} : memref<256x8xf32, #tpu.memory_space<vmem>>, vector<256x8xf32>,
    %44 = vector.extract_strided_slice %29 {offsets = [2, 0, 0], sizes = [16, 16, 4], strides = [1, 1, 1]} : vector<18x16x4xf32> to vector<16x16x4xf32>
    %45 = vector.shape_cast %44 : vector<16x16x4xf32> to vector<256x4xf32>
    %c6 = arith.constant 6 : index
    %c0_44 = arith.constant 0 : index
    %c0_45 = arith.constant 0 : index
    %46 = vector.load %arg3[%c6, %c0_44, %c0_45] : memref<9x4x8xf32, #tpu.memory_space<vmem>>, vector<1x4x8xf32>
    %47 = vector.shape_cast %46 : vector<1x4x8xf32> to vector<4x8xf32>
    %cst_46 = arith.constant dense<0.000000e+00> : vector<256x8xf32>
    %48 = tpu.matmul %45, %47, %cst_46 {dimension_numbers = #tpu.dot_dimension_numbers<[1], [0], [0], [1], [0, 0, 1, 1], [], []>} : vector<256x4xf32>, vector<4x8xf32>, vector<256x8xf32> -> vector<256x8xf32>
    %c0_47 = arith.constant 0 : index
    %c0_48 = arith.constant 0 : index
    %49 = vector.load %arg7[%c0_47, %c0_48] : memref<256x8xf32, #tpu.memory_space<vmem>>, vector<256x8xf32>
    %50 = arith.addf %49, %48 : vector<256x8xf32>
    %c0_49 = arith.constant 0 : index
    %c0_50 = arith.constant 0 : index
    %51 = vector.load %arg7[%c0_49, %c0_50] : memref<256x8xf32, #tpu.memory_space<vmem>>, vector<256x8xf32>
    tpu.vector_store %arg7[%c0_49, %c0_50], %50 {strides = array<i32>} : memref<256x8xf32, #tpu.memory_space<vmem>>, vector<256x8xf32>,
    %c0_51 = arith.constant 0 : index
    %c1_52 = arith.constant 1 : index
    %c0_53 = arith.constant 0 : index
    %52 = vector.load %arg6[%c0_51, %c1_52, %c0_53] : memref<18x18x4xf32, #tpu.memory_space<vmem>>, vector<18x16x4xf32>
    %53 = vector.extract_strided_slice %52 {offsets = [0, 0, 0], sizes = [16, 16, 4], strides = [1, 1, 1]} : vector<18x16x4xf32> to vector<16x16x4xf32>
    %54 = vector.shape_cast %53 : vector<16x16x4xf32> to vector<256x4xf32>
    %c1_54 = arith.constant 1 : index
    %c0_55 = arith.constant 0 : index
    %c0_56 = arith.constant 0 : index
    %55 = vector.load %arg3[%c1_54, %c0_55, %c0_56] : memref<9x4x8xf32, #tpu.memory_space<vmem>>, vector<1x4x8xf32>
    %56 = vector.shape_cast %55 : vector<1x4x8xf32> to vector<4x8xf32>
    %cst_57 = arith.constant dense<0.000000e+00> : vector<256x8xf32>
    %57 = tpu.matmul %54, %56, %cst_57 {dimension_numbers = #tpu.dot_dimension_numbers<[1], [0], [0], [1], [0, 0, 1, 1], [], []>} : vector<256x4xf32>, vector<4x8xf32>, vector<256x8xf32> -> vector<256x8xf32>
    %c0_58 = arith.constant 0 : index
    %c0_59 = arith.constant 0 : index
    %58 = vector.load %arg7[%c0_58, %c0_59] : memref<256x8xf32, #tpu.memory_space<vmem>>, vector<256x8xf32>
    %59 = arith.addf %58, %57 : vector<256x8xf32>
    %c0_60 = arith.constant 0 : index
    %c0_61 = arith.constant 0 : index
    %60 = vector.load %arg7[%c0_60, %c0_61] : memref<256x8xf32, #tpu.memory_space<vmem>>, vector<256x8xf32>
    tpu.vector_store %arg7[%c0_60, %c0_61], %59 {strides = array<i32>} : memref<256x8xf32, #tpu.memory_space<vmem>>, vector<256x8xf32>,
    %61 = vector.extract_strided_slice %52 {offsets = [1, 0, 0], sizes = [16, 16, 4], strides = [1, 1, 1]} : vector<18x16x4xf32> to vector<16x16x4xf32>
    %62 = vector.shape_cast %61 : vector<16x16x4xf32> to vector<256x4xf32>
    %c4 = arith.constant 4 : index
    %c0_62 = arith.constant 0 : index
    %c0_63 = arith.constant 0 : index
    %63 = vector.load %arg3[%c4, %c0_62, %c0_63] : memref<9x4x8xf32, #tpu.memory_space<vmem>>, vector<1x4x8xf32>
    %64 = vector.shape_cast %63 : vector<1x4x8xf32> to vector<4x8xf32>
    %cst_64 = arith.constant dense<0.000000e+00> : vector<256x8xf32>
    %65 = tpu.matmul %62, %64, %cst_64 {dimension_numbers = #tpu.dot_dimension_numbers<[1], [0], [0], [1], [0, 0, 1, 1], [], []>} : vector<256x4xf32>, vector<4x8xf32>, vector<256x8xf32> -> vector<256x8xf32>
    %c0_65 = arith.constant 0 : index
    %c0_66 = arith.constant 0 : index
    %66 = vector.load %arg7[%c0_65, %c0_66] : memref<256x8xf32, #tpu.memory_space<vmem>>, vector<256x8xf32>
    %67 = arith.addf %66, %65 : vector<256x8xf32>
    %c0_67 = arith.constant 0 : index
    %c0_68 = arith.constant 0 : index
    %68 = vector.load %arg7[%c0_67, %c0_68] : memref<256x8xf32, #tpu.memory_space<vmem>>, vector<256x8xf32>
    tpu.vector_store %arg7[%c0_67, %c0_68], %67 {strides = array<i32>} : memref<256x8xf32, #tpu.memory_space<vmem>>, vector<256x8xf32>,
    %69 = vector.extract_strided_slice %52 {offsets = [2, 0, 0], sizes = [16, 16, 4], strides = [1, 1, 1]} : vector<18x16x4xf32> to vector<16x16x4xf32>
    %70 = vector.shape_cast %69 : vector<16x16x4xf32> to vector<256x4xf32>
    %c7 = arith.constant 7 : index
    %c0_69 = arith.constant 0 : index
    %c0_70 = arith.constant 0 : index
    %71 = vector.load %arg3[%c7, %c0_69, %c0_70] : memref<9x4x8xf32, #tpu.memory_space<vmem>>, vector<1x4x8xf32>
    %72 = vector.shape_cast %71 : vector<1x4x8xf32> to vector<4x8xf32>
    %cst_71 = arith.constant dense<0.000000e+00> : vector<256x8xf32>
    %73 = tpu.matmul %70, %72, %cst_71 {dimension_numbers = #tpu.dot_dimension_numbers<[1], [0], [0], [1], [0, 0, 1, 1], [], []>} : vector<256x4xf32>, vector<4x8xf32>, vector<256x8xf32> -> vector<256x8xf32>
    %c0_72 = arith.constant 0 : index
    %c0_73 = arith.constant 0 : index
    %74 = vector.load %arg7[%c0_72, %c0_73] : memref<256x8xf32, #tpu.memory_space<vmem>>, vector<256x8xf32>
    %75 = arith.addf %74, %73 : vector<256x8xf32>
    %c0_74 = arith.constant 0 : index
    %c0_75 = arith.constant 0 : index
    %76 = vector.load %arg7[%c0_74, %c0_75] : memref<256x8xf32, #tpu.memory_space<vmem>>, vector<256x8xf32>
    tpu.vector_store %arg7[%c0_74, %c0_75], %75 {strides = array<i32>} : memref<256x8xf32, #tpu.memory_space<vmem>>, vector<256x8xf32>,
    %c0_76 = arith.constant 0 : index
    %c2 = arith.constant 2 : index
    %c0_77 = arith.constant 0 : index
    %77 = vector.load %arg6[%c0_76, %c2, %c0_77] : memref<18x18x4xf32, #tpu.memory_space<vmem>>, vector<18x16x4xf32>
    %78 = vector.extract_strided_slice %77 {offsets = [0, 0, 0], sizes = [16, 16, 4], strides = [1, 1, 1]} : vector<18x16x4xf32> to vector<16x16x4xf32>
    %79 = vector.shape_cast %78 : vector<16x16x4xf32> to vector<256x4xf32>
    %c2_78 = arith.constant 2 : index
    %c0_79 = arith.constant 0 : index
    %c0_80 = arith.constant 0 : index
    %80 = vector.load %arg3[%c2_78, %c0_79, %c0_80] : memref<9x4x8xf32, #tpu.memory_space<vmem>>, vector<1x4x8xf32>
    %81 = vector.shape_cast %80 : vector<1x4x8xf32> to vector<4x8xf32>
    %cst_81 = arith.constant dense<0.000000e+00> : vector<256x8xf32>
    %82 = tpu.matmul %79, %81, %cst_81 {dimension_numbers = #tpu.dot_dimension_numbers<[1], [0], [0], [1], [0, 0, 1, 1], [], []>} : vector<256x4xf32>, vector<4x8xf32>, vector<256x8xf32> -> vector<256x8xf32>
    %c0_82 = arith.constant 0 : index
    %c0_83 = arith.constant 0 : index
    %83 = vector.load %arg7[%c0_82, %c0_83] : memref<256x8xf32, #tpu.memory_space<vmem>>, vector<256x8xf32>
    %84 = arith.addf %83, %82 : vector<256x8xf32>
    %c0_84 = arith.constant 0 : index
    %c0_85 = arith.constant 0 : index
    %85 = vector.load %arg7[%c0_84, %c0_85] : memref<256x8xf32, #tpu.memory_space<vmem>>, vector<256x8xf32>
    tpu.vector_store %arg7[%c0_84, %c0_85], %84 {strides = array<i32>} : memref<256x8xf32, #tpu.memory_space<vmem>>, vector<256x8xf32>,
    %86 = vector.extract_strided_slice %77 {offsets = [1, 0, 0], sizes = [16, 16, 4], strides = [1, 1, 1]} : vector<18x16x4xf32> to vector<16x16x4xf32>
    %87 = vector.shape_cast %86 : vector<16x16x4xf32> to vector<256x4xf32>
    %c5 = arith.constant 5 : index
    %c0_86 = arith.constant 0 : index
    %c0_87 = arith.constant 0 : index
    %88 = vector.load %arg3[%c5, %c0_86, %c0_87] : memref<9x4x8xf32, #tpu.memory_space<vmem>>, vector<1x4x8xf32>
    %89 = vector.shape_cast %88 : vector<1x4x8xf32> to vector<4x8xf32>
    %cst_88 = arith.constant dense<0.000000e+00> : vector<256x8xf32>
    %90 = tpu.matmul %87, %89, %cst_88 {dimension_numbers = #tpu.dot_dimension_numbers<[1], [0], [0], [1], [0, 0, 1, 1], [], []>} : vector<256x4xf32>, vector<4x8xf32>, vector<256x8xf32> -> vector<256x8xf32>
    %c0_89 = arith.constant 0 : index
    %c0_90 = arith.constant 0 : index
    %91 = vector.load %arg7[%c0_89, %c0_90] : memref<256x8xf32, #tpu.memory_space<vmem>>, vector<256x8xf32>
    %92 = arith.addf %91, %90 : vector<256x8xf32>
    %c0_91 = arith.constant 0 : index
    %c0_92 = arith.constant 0 : index
    %93 = vector.load %arg7[%c0_91, %c0_92] : memref<256x8xf32, #tpu.memory_space<vmem>>, vector<256x8xf32>
    tpu.vector_store %arg7[%c0_91, %c0_92], %92 {strides = array<i32>} : memref<256x8xf32, #tpu.memory_space<vmem>>, vector<256x8xf32>,
    %94 = vector.extract_strided_slice %77 {offsets = [2, 0, 0], sizes = [16, 16, 4], strides = [1, 1, 1]} : vector<18x16x4xf32> to vector<16x16x4xf32>
    %95 = vector.shape_cast %94 : vector<16x16x4xf32> to vector<256x4xf32>
    %c8 = arith.constant 8 : index
    %c0_93 = arith.constant 0 : index
    %c0_94 = arith.constant 0 : index
    %96 = vector.load %arg3[%c8, %c0_93, %c0_94] : memref<9x4x8xf32, #tpu.memory_space<vmem>>, vector<1x4x8xf32>
    %97 = vector.shape_cast %96 : vector<1x4x8xf32> to vector<4x8xf32>
    %cst_95 = arith.constant dense<0.000000e+00> : vector<256x8xf32>
    %98 = tpu.matmul %95, %97, %cst_95 {dimension_numbers = #tpu.dot_dimension_numbers<[1], [0], [0], [1], [0, 0, 1, 1], [], []>} : vector<256x4xf32>, vector<4x8xf32>, vector<256x8xf32> -> vector<256x8xf32>
    %c0_96 = arith.constant 0 : index
    %c0_97 = arith.constant 0 : index
    %99 = vector.load %arg7[%c0_96, %c0_97] : memref<256x8xf32, #tpu.memory_space<vmem>>, vector<256x8xf32>
    %100 = arith.addf %99, %98 : vector<256x8xf32>
    %c0_98 = arith.constant 0 : index
    %c0_99 = arith.constant 0 : index
    %101 = vector.load %arg7[%c0_98, %c0_99] : memref<256x8xf32, #tpu.memory_space<vmem>>, vector<256x8xf32>
    tpu.vector_store %arg7[%c0_98, %c0_99], %100 {strides = array<i32>} : memref<256x8xf32, #tpu.memory_space<vmem>>, vector<256x8xf32>,
    %c0_100 = arith.constant 0 : index
    %c0_101 = arith.constant 0 : index
    %102 = vector.load %arg7[%c0_100, %c0_101] : memref<256x8xf32, #tpu.memory_space<vmem>>, vector<256x8xf32>
    %103 = vector.broadcast %14 : vector<1x8xf32> to vector<256x8xf32>
    %104 = arith.mulf %102, %103 : vector<256x8xf32>
    %c0_102 = arith.constant 0 : index
    %c0_103 = arith.constant 0 : index
    %c0_104 = arith.constant 0 : index
    %105 = vector.load %arg5[%c0_102, %c0_103, %c0_104] : memref<1x256x8xf32, #tpu.memory_space<vmem>>, vector<1x256x8xf32>
    %106 = vector.shape_cast %105 : vector<1x256x8xf32> to vector<256x8xf32>
    %107 = vector.shape_cast %104 : vector<256x8xf32> to vector<1x256x8xf32>
    tpu.vector_store %arg5[%c0_102, %c0_103, %c0_104], %107 {strides = array<i32>} : memref<1x256x8xf32, #tpu.memory_space<vmem>>, vector<1x256x8xf32>,
    return
  }
  func.func @transform_0(%arg0: i32) -> (i32, i32, i32) {
    %c0_i32 = arith.constant 0 : i32
    %c0_i32_0 = arith.constant 0 : i32
    %c0_i32_1 = arith.constant 0 : i32
    return %arg0, %c0_i32, %c0_i32_0 : i32, i32, i32
  }
  func.func @transform_1(%arg0: i32) -> (i32, i32) {
    %c0_i32 = arith.constant 0 : i32
    %c0_i32_0 = arith.constant 0 : i32
    %c0_i32_1 = arith.constant 0 : i32
    return %c0_i32, %c0_i32_0 : i32, i32
  }
  func.func @transform_2(%arg0: i32) -> (i32, i32, i32) {
    %c0_i32 = arith.constant 0 : i32
    %c0_i32_0 = arith.constant 0 : i32
    %c0_i32_1 = arith.constant 0 : i32
    %c0_i32_2 = arith.constant 0 : i32
    return %c0_i32, %c0_i32_0, %c0_i32_1 : i32, i32, i32
  }
  func.func @transform_3(%arg0: i32) -> (i32, i32, i32, i32) {
    %c0_i32 = arith.constant 0 : i32
    %c0_i32_0 = arith.constant 0 : i32
    %c0_i32_1 = arith.constant 0 : i32
    %c0_i32_2 = arith.constant 0 : i32
    return %arg0, %c0_i32, %c0_i32_0, %c0_i32_1 : i32, i32, i32, i32
  }
  func.func @transform_4(%arg0: i32) -> (i32, i32, i32) {
    %c0_i32 = arith.constant 0 : i32
    %c0_i32_0 = arith.constant 0 : i32
    %c0_i32_1 = arith.constant 0 : i32
    return %arg0, %c0_i32, %c0_i32_0 : i32, i32, i32
  }
}

</mosaic_0001>

<llo_original>
// kernel: tpu_custom_call.1
$region0: #{tpu_custom_call.1}
  #allocation0 [shape = 'u32[]', space=smem, size = 0x4, offset = 0x4, fixed_abs, tag = 'smem constant byte address 0x4 - core index']
  #allocation1 [shape = 'u32[72,128]{1,0:T(1,128)}', space=vmem, size = 0x9000, scoped, tag = 'internal scratch']
  #allocation2 [shape = 'f32[18,18,4]{2,1,0:T(8,128)}', space=vmem, size = 0x36000, scoped, tag = 'scratch operand']
  #allocation3 [shape = 'f32[256,8]{1,0:T(8,128)}', space=vmem, size = 0x20000, scoped, tag = 'scratch operand']
  %s0 = inlined_call_operand.vmem [shape: f32[2,2,4], index: 0, kind: input, shape index: {}]
  %s1 = inlined_call_operand.vmem [shape: f32[4,8], index: 1, kind: input, shape index: {}]
  %s2 = inlined_call_operand.vmem [shape: f32[9,4,8], index: 2, kind: input, shape index: {}]
  %s3 = inlined_call_operand.vmem [shape: f32[2,16,16,4], index: 3, kind: input, shape index: {}]
  %s4 = inlined_call_operand.vmem [shape: f32[2,256,8], index: 4, kind: output, shape index: {}]
  %s5 = sld [smem:[#allocation0]]
  $region49: #{tpu_custom_call.1} parent=0
    _
  %s7 = ssub.s32 1, %s5
  %s8 = scalar_select 0, %s7, %s5
  loop: start=0, step=1, limit=4
  $region2: #{tpu_custom_call.1} parent=0 // loop_pre_header
    _
  $region3: #{tpu_custom_call.1} parent=0 // loop_header
    %s10 = sphi 0, %s14
    %p11 = scmp.ge.s32.totalorder %s10, 4
    %s20 = sphi 0, %s22
    %s23 = sphi 0, %s20
    %s24 = sphi 0, %s23
    %s40 = sphi 0, %s24
    %s44 = sphi 0, %s44
    %s46 = sphi 0, %s44
    %s47 = sphi 0, %s46
    %s61 = sphi 0, %s47
    %s65 = sphi 0, %s65
    %s67 = sphi 0, %s65
    %s68 = sphi 0, %s67
    %s82 = sphi 0, %s68
    %s88 = sphi 0, %s90
    %s91 = sphi 0, %s88
    %s92 = sphi 0, %s91
    %s108 = sphi 0, %s92
    %s114 = sphi 0, %s116
    %s117 = sphi 0, %s114
    %s118 = sphi 0, %s117
    %s134 = sphi 0, %s118
  $region4: #{tpu_custom_call.1} parent=0 // loop_header_branch
    %13 = sbr.rel (%p11) target = $region8
  $region5: #{tpu_custom_call.1} parent=0 // loop_body
    %s15 = ssub.s32 %s10, 1
    %s16 = ssub.s32 %s10, 2
    %s17 = sadd.s32 %s10, 1
    %s18 = ssub.s32 %s10, %s17
    %p19 = scmp.eq.s32.totalorder %s18, 0
    %s21 = sadd.s32 %s20, 1
    %s22 = scalar_select %p19, %s20, %s21
    %p25 = pneg %p19
    %p26 = scmp.eq.s32.totalorder %s10, 1
    %p27 = por %p25, %p26
    %p28 = scmp.ne.s32.totalorder %s20, %s23
    %p29 = scmp.eq.s32.totalorder %s10, 0
    %p30 = por %p28, %p29
    %p31 = scmp.ne.s32.totalorder %s20, %s23
    %p32 = scmp.eq.s32.totalorder %s15, 1
    %p33 = por %p31, %p32
    %p34 = scmp.ne.s32.totalorder %s23, %s24
    %p35 = scmp.eq.s32.totalorder %s15, 0
    %p36 = por %p34, %p35
    %p37 = scmp.ne.s32.totalorder %s23, %s24
    %p38 = scmp.eq.s32.totalorder %s16, 1
    %p39 = por %p37, %p38
    %p41 = scmp.ne.s32.totalorder %s24, %s40
    %p42 = scmp.eq.s32.totalorder %s16, 0
    %p43 = por %p41, %p42
    %s45 = sadd.s32 %s44, 1
    %p48 = scmp.eq.s32.totalorder %s10, 1
    %p49 = scmp.ne.s32.totalorder %s44, %s46
    %p50 = scmp.eq.s32.totalorder %s10, 0
    %p51 = por %p49, %p50
    %p52 = scmp.ne.s32.totalorder %s44, %s46
    %p53 = scmp.eq.s32.totalorder %s15, 1
    %p54 = por %p52, %p53
    %p55 = scmp.ne.s32.totalorder %s46, %s47
    %p56 = scmp.eq.s32.totalorder %s15, 0
    %p57 = por %p55, %p56
    %p58 = scmp.ne.s32.totalorder %s46, %s47
    %p59 = scmp.eq.s32.totalorder %s16, 1
    %p60 = por %p58, %p59
    %p62 = scmp.ne.s32.totalorder %s47, %s61
    %p63 = scmp.eq.s32.totalorder %s16, 0
    %p64 = por %p62, %p63
    %s66 = sadd.s32 %s65, 1
    %p69 = scmp.eq.s32.totalorder %s10, 1
    %p70 = scmp.ne.s32.totalorder %s65, %s67
    %p71 = scmp.eq.s32.totalorder %s10, 0
    %p72 = por %p70, %p71
    %p73 = scmp.ne.s32.totalorder %s65, %s67
    %p74 = scmp.eq.s32.totalorder %s15, 1
    %p75 = por %p73, %p74
    %p76 = scmp.ne.s32.totalorder %s67, %s68
    %p77 = scmp.eq.s32.totalorder %s15, 0
    %p78 = por %p76, %p77
    %p79 = scmp.ne.s32.totalorder %s67, %s68
    %p80 = scmp.eq.s32.totalorder %s16, 1
    %p81 = por %p79, %p80
    %p83 = scmp.ne.s32.totalorder %s68, %s82
    %p84 = scmp.eq.s32.totalorder %s16, 0
    %p85 = por %p83, %p84
    %s86 = ssub.s32 %s10, %s17
    %p87 = scmp.eq.s32.totalorder %s86, 0
    %s89 = sadd.s32 %s88, 1
    %s90 = scalar_select %p87, %s88, %s89
    %p93 = pneg %p87
    %p94 = scmp.eq.s32.totalorder %s10, 1
    %p95 = por %p93, %p94
    %p96 = scmp.ne.s32.totalorder %s88, %s91
    %p97 = scmp.eq.s32.totalorder %s10, 0
    %p98 = por %p96, %p97
    %p99 = scmp.ne.s32.totalorder %s88, %s91
    %p100 = scmp.eq.s32.totalorder %s15, 1
    %p101 = por %p99, %p100
    %p102 = scmp.ne.s32.totalorder %s91, %s92
    %p103 = scmp.eq.s32.totalorder %s15, 0
    %p104 = por %p102, %p103
    %p105 = scmp.ne.s32.totalorder %s91, %s92
    %p106 = scmp.eq.s32.totalorder %s16, 1
    %p107 = por %p105, %p106
    %p109 = scmp.ne.s32.totalorder %s92, %s108
    %p110 = scmp.eq.s32.totalorder %s16, 0
    %p111 = por %p109, %p110
    %s112 = ssub.s32 %s10, %s17
    %p113 = scmp.eq.s32.totalorder %s112, 0
    %s115 = sadd.s32 %s114, 1
    %s116 = scalar_select %p113, %s114, %s115
    %p119 = pneg %p113
    %p120 = scmp.eq.s32.totalorder %s10, 1
    %p121 = por %p119, %p120
    %p122 = scmp.ne.s32.totalorder %s114, %s117
    %p123 = scmp.eq.s32.totalorder %s10, 0
    %p124 = por %p122, %p123
    %p125 = scmp.ne.s32.totalorder %s114, %s117
    %p126 = scmp.eq.s32.totalorder %s15, 1
    %p127 = por %p125, %p126
    %p128 = scmp.ne.s32.totalorder %s117, %s118
    %p129 = scmp.eq.s32.totalorder %s15, 0
    %p130 = por %p128, %p129
    %p131 = scmp.ne.s32.totalorder %s117, %s118
    %p132 = scmp.eq.s32.totalorder %s16, 1
    %p133 = por %p131, %p132
    %p135 = scmp.ne.s32.totalorder %s118, %s134
    %p136 = scmp.eq.s32.totalorder %s16, 0
    %p137 = por %p135, %p136
    %p138 = scmp.le.s32.totalorder 1, %s10
    %p139 = scmp.lt.s32.totalorder %s10, 3
    %p140 = pnand %p138, %p139
    %p141 = pneg %p140
    // Predicated region
    $region9: #{tpu_custom_call.1} parent=5 // pred_check
      _
    $region10: #{tpu_custom_call.1} parent=5 // pred_check_branch
      %143 = sbr.rel (%p140) target = $region12
    $region11: #{tpu_custom_call.1} parent=5 // pred_region
      %s144 = ssub.s32 %s10, 1
      // Predicated region
      $region13: #{tpu_custom_call.1} parent=11 // pred_check
        %p145 = pneg %p57
      $region14: #{tpu_custom_call.1} parent=11 // pred_check_branch
        %147 = sbr.rel (%p145) target = $region16
      $region15: #{tpu_custom_call.1} parent=11 // pred_region
        _
      $region16: #{tpu_custom_call.1} parent=11 // pred_fallthru
        _
      // Predicated region
      $region17: #{tpu_custom_call.1} parent=11 // pred_check
        %p148 = pneg %p78
      $region18: #{tpu_custom_call.1} parent=11 // pred_check_branch
        %150 = sbr.rel (%p148) target = $region20
      $region19: #{tpu_custom_call.1} parent=11 // pred_region
        _
      $region20: #{tpu_custom_call.1} parent=11 // pred_fallthru
        _
    $region12: #{tpu_custom_call.1} parent=5 // pred_fallthru
      _
    %p151 = scmp.lt.s32.totalorder %s10, 2
    // Predicated region
    $region21: #{tpu_custom_call.1} parent=5 // pred_check
      %p152 = pneg %p151
    $region22: #{tpu_custom_call.1} parent=5 // pred_check_branch
      %154 = sbr.rel (%p152) target = $region24
    $region23: #{tpu_custom_call.1} parent=5 // pred_region
      // Predicated region
      $region25: #{tpu_custom_call.1} parent=23 // pred_check
        %p155 = pneg %p30
      $region26: #{tpu_custom_call.1} parent=23 // pred_check_branch
        %157 = sbr.rel (%p155) target = $region28
      $region27: #{tpu_custom_call.1} parent=23 // pred_region
        %p158 = scmp.lt.s32.totalorder %s10, 1
        %s159 = scalar_select %p158, %s10, 1
        %s160 = smul.addr %s159, 2
        %s161 = scalar_lea.vmem %s0, %s160
      $region28: #{tpu_custom_call.1} parent=23 // pred_fallthru
        _
      // Predicated region
      $region29: #{tpu_custom_call.1} parent=23 // pred_check
        %p162 = pneg %p98
      $region30: #{tpu_custom_call.1} parent=23 // pred_check_branch
        %164 = sbr.rel (%p162) target = $region32
      $region31: #{tpu_custom_call.1} parent=23 // pred_region
        %p165 = scmp.lt.s32.totalorder %s10, 1
        %s166 = scalar_select %p165, %s10, 1
        %s167 = smul.addr %s166, 32
        %s168 = smul.addr %s167, 8
        %s169 = scalar_lea.vmem %s3, %s168
      $region32: #{tpu_custom_call.1} parent=23 // pred_fallthru
        _
    $region24: #{tpu_custom_call.1} parent=5 // pred_fallthru
      _
    %p170 = scmp.le.s32.totalorder 1, %s10
    %p171 = scmp.lt.s32.totalorder %s10, 3
    %p172 = pnand %p170, %p171
    %p173 = pneg %p172
    // Predicated region
    $region33: #{tpu_custom_call.1} parent=5 // pred_check
      _
    $region34: #{tpu_custom_call.1} parent=5 // pred_check_branch
      %175 = sbr.rel (%p172) target = $region36
    $region35: #{tpu_custom_call.1} parent=5 // pred_region
      %s176 = ssub.s32 %s10, 1
      %p177 = scmp.lt.s32.totalorder %s15, 1
      %s178 = scalar_select %p177, %s15, 1
      %s179 = smul.addr %s178, 2
      %s180 = scalar_lea.vmem %s0, %s179
      %p181 = pneg %p36
      %p182 = pneg %p33
      %p183 = pneg %p57
      %p184 = pneg %p54
      %p185 = pneg %p78
      %p186 = pneg %p75
      %p187 = scmp.lt.s32.totalorder %s15, 1
      %s188 = scalar_select %p187, %s15, 1
      %s189 = smul.addr %s188, 32
      %s190 = smul.addr %s189, 8
      %s191 = scalar_lea.vmem %s3, %s190
      %p192 = pneg %p104
      %p193 = pneg %p101
      %p194 = pneg %p130
      %p195 = pneg %p127
      %p196 = scmp.lt.s32.totalorder %s15, 1
      %s197 = scalar_select %p196, %s15, 1
      %s198 = smul.addr %s197, 32
      %s199 = smul.addr %s198, 8
      %s200 = scalar_lea.vmem %s4, %s199
      %p201 = scmp.lt.s32.totalorder %s15, 1
      %s202 = scalar_select %p201, %s15, 1
      %s203 = smul.addr %s202, 2
      %s204 = scalar_lea.vmem %s0, %s203
      %p205 = scmp.lt.s32.totalorder %s15, 1
      %s206 = scalar_select %p205, %s15, 1
      %s207 = smul.addr %s206, 32
      %s208 = smul.addr %s207, 8
      %s209 = scalar_lea.vmem %s3, %s208
      %p210 = scmp.lt.s32.totalorder %s15, 1
      %s211 = scalar_select %p210, %s15, 1
      %s212 = smul.addr %s211, 32
      %s213 = smul.addr %s212, 8
      %s214 = scalar_lea.vmem %s4, %s213
      %v215 = vld [vmem:[%s204] sm:$0x3]
      %v216 = vmul.f32 %v215, %v215
      %v217 = vld [vmem:[%s1] sm:$0xf]
      %vm218 = vcmask 31744
      %v220 = vsel %vm218, %v216, 0
      %vm222 = vcmask 1043456
      %v224 = vsel %vm222, %v217, 0
      %226 = vmatpush.msra.mxu0 0.0
      %227 = vmatpush.msra.mxu0 0.0
      %228 = vmatpush.msra.mxu0 0.0
      %229 = vmatpush.msra.mxu0 0.0
      %230 = vmatpush.msra.mxu0 0.0
      %231 = vmatpush.msra.mxu0 0.0
      %232 = vmatpush.msra.mxu0 0.0
      %233 = vmatpush.msra.mxu0 0.0
      %234 = vmatpush.msra.mxu0 0.0
      %235 = vmatpush.msra.mxu0 0.0
      %236 = vmatpush.msra.mxu0 0.0
      %237 = vmatpush.msra.mxu0 0.0
      %238 = vmatpush.msra.mxu0 0.0
      %239 = vmatpush.msra.mxu0 0.0
      %240 = vmatpush.msra.mxu0 0.0
      %241 = vmatpush.msra.mxu0 %v224
      %242 = vmatmul.f32.gmra.mxu0 %v220
      %v243 = vpop.f32.mrf.mxu0
      %v244 = vadd.f32 0.0, %v243
      %245 = vdwg.mxu0
      %v246 = vmul.f32 %v244, 0.027777778
      %v247 = vadd.f32 %v246, 1e-08
      %v248 = vrsqrt.pop %v247
      %v249 = vmul.f32 %v248, %v247
      %v250 = vmul.f32 %v249, %v248
      %v251 = vmul.f32 0.5, %v250
      %v252 = vsub.f32 1.5, %v251
      %v253 = vmul.f32 %v248, %v252
      %vm254 = vweird.f32 %v247
      %vm255 = vweird.f32 %v248
      %vm256 = vmor %vm254, %vm255
      %v257 = vsel %vm256, %v248, %v253
      %v258 = vmul.f32 %v257, 0.16666667
      %259 = vst.msk [vmem:[#allocation2] sm:$0xff] %vm218, 0.0
      %260 = vst.msk [vmem:[#allocation2 + $0x8] sm:$0xff] %vm218, 0.0
      %vm261 = vcmask 25600
      %262 = vst.msk [vmem:[#allocation2 + $0x10] sm:$0x3] %vm261, 0.0
      %s263 = scalar_lea.vmem [#allocation2], 408
      %264 = vst.msk [vmem:[%s263] sm:$0xff] %vm218, 0.0
      %265 = vst.msk [vmem:[%s263 + $0x8] sm:$0xff] %vm218, 0.0
      %266 = vst.msk [vmem:[%s263 + $0x10] sm:$0x3] %vm261, 0.0
      %vm267 = vcmask 24576
      %268 = vst.msk [vmem:[#allocation2] sm:$0x1] %vm267, 0.0
      %269 = vst.msk [vmem:[#allocation2 + $0x18] sm:$0x1] %vm267, 0.0
      %270 = vst.msk [vmem:[#allocation2 + $0x30] sm:$0x1] %vm267, 0.0
      %271 = vst.msk [vmem:[#allocation2 + $0x48] sm:$0x1] %vm267, 0.0
      %272 = vst.msk [vmem:[#allocation2 + $0x60] sm:$0x1] %vm267, 0.0
      %273 = vst.msk [vmem:[#allocation2 + $0x78] sm:$0x1] %vm267, 0.0
      %274 = vst.msk [vmem:[#allocation2 + $0x90] sm:$0x1] %vm267, 0.0
      %275 = vst.msk [vmem:[#allocation2 + $0xa8] sm:$0x1] %vm267, 0.0
      %276 = vst.msk [vmem:[#allocation2 + $0xc0] sm:$0x1] %vm267, 0.0
      %277 = vst.msk [vmem:[#allocation2 + $0xd8] sm:$0x1] %vm267, 0.0
      %278 = vst.msk [vmem:[#allocation2 + $0xf0] sm:$0x1] %vm267, 0.0
      %279 = vst.msk [vmem:[#allocation2 + $0x108] sm:$0x1] %vm267, 0.0
      %280 = vst.msk [vmem:[#allocation2 + $0x120] sm:$0x1] %vm267, 0.0
      %281 = vst.msk [vmem:[#allocation2 + $0x138] sm:$0x1] %vm267, 0.0
      %282 = vst.msk [vmem:[#allocation2 + $0x150] sm:$0x1] %vm267, 0.0
      %283 = vst.msk [vmem:[#allocation2 + $0x168] sm:$0x1] %vm267, 0.0
      %284 = vst.msk [vmem:[#allocation2 + $0x180] sm:$0x1] %vm267, 0.0
      %285 = vst.msk [vmem:[#allocation2 + $0x198] sm:$0x1] %vm267, 0.0
      %286 = vst.msk [vmem:[#allocation2 + $0x11] sm:$0x1] %vm267, 0.0
      %287 = vst.msk [vmem:[#allocation2 + $0x29] sm:$0x1] %vm267, 0.0
      %288 = vst.msk [vmem:[#allocation2 + $0x41] sm:$0x1] %vm267, 0.0
      %289 = vst.msk [vmem:[#allocation2 + $0x59] sm:$0x1] %vm267, 0.0
      %290 = vst.msk [vmem:[#allocation2 + $0x71] sm:$0x1] %vm267, 0.0
      %291 = vst.msk [vmem:[#allocation2 + $0x89] sm:$0x1] %vm267, 0.0
      %292 = vst.msk [vmem:[#allocation2 + $0xa1] sm:$0x1] %vm267, 0.0
      %293 = vst.msk [vmem:[#allocation2 + $0xb9] sm:$0x1] %vm267, 0.0
      %294 = vst.msk [vmem:[#allocation2 + $0xd1] sm:$0x1] %vm267, 0.0
      %295 = vst.msk [vmem:[#allocation2 + $0xe9] sm:$0x1] %vm267, 0.0
      %296 = vst.msk [vmem:[#allocation2 + $0x101] sm:$0x1] %vm267, 0.0
      %297 = vst.msk [vmem:[#allocation2 + $0x119] sm:$0x1] %vm267, 0.0
      %298 = vst.msk [vmem:[#allocation2 + $0x131] sm:$0x1] %vm267, 0.0
      %299 = vst.msk [vmem:[#allocation2 + $0x149] sm:$0x1] %vm267, 0.0
      %300 = vst.msk [vmem:[#allocation2 + $0x161] sm:$0x1] %vm267, 0.0
      %301 = vst.msk [vmem:[#allocation2 + $0x179] sm:$0x1] %vm267, 0.0
      %302 = vst.msk [vmem:[#allocation2 + $0x191] sm:$0x1] %vm267, 0.0
      %303 = vst.msk [vmem:[#allocation2 + $0x1a9] sm:$0x1] %vm267, 0.0
      %v304 = vld [vmem:[%s209] sm:$0xff]
      %v305 = vld [vmem:[%s209 + $0x8] sm:$0xff]
      %v306 = vld [vmem:[%s209 + $0x10] sm:$0xff]
      %v307 = vld [vmem:[%s209 + $0x18] sm:$0xff]
      %v308 = vld [vmem:[%s209 + $0x20] sm:$0xff]
      %v309 = vld [vmem:[%s209 + $0x28] sm:$0xff]
      %v310 = vld [vmem:[%s209 + $0x30] sm:$0xff]
      %v311 = vld [vmem:[%s209 + $0x38] sm:$0xff]
      %v312 = vld [vmem:[%s209 + $0x40] sm:$0xff]
      %v313 = vld [vmem:[%s209 + $0x48] sm:$0xff]
      %v314 = vld [vmem:[%s209 + $0x50] sm:$0xff]
      %v315 = vld [vmem:[%s209 + $0x58] sm:$0xff]
      %v316 = vld [vmem:[%s209 + $0x60] sm:$0xff]
      %v317 = vld [vmem:[%s209 + $0x68] sm:$0xff]
      %v318 = vld [vmem:[%s209 + $0x70] sm:$0xff]
      %v319 = vld [vmem:[%s209 + $0x78] sm:$0xff]
      %v320 = vld [vmem:[%s209 + $0x80] sm:$0xff]
      %v321 = vld [vmem:[%s209 + $0x88] sm:$0xff]
      %v322 = vld [vmem:[%s209 + $0x90] sm:$0xff]
      %v323 = vld [vmem:[%s209 + $0x98] sm:$0xff]
      %v324 = vld [vmem:[%s209 + $0xa0] sm:$0xff]
      %v325 = vld [vmem:[%s209 + $0xa8] sm:$0xff]
      %v326 = vld [vmem:[%s209 + $0xb0] sm:$0xff]
      %v327 = vld [vmem:[%s209 + $0xb8] sm:$0xff]
      %v328 = vld [vmem:[%s209 + $0xc0] sm:$0xff]
      %v329 = vld [vmem:[%s209 + $0xc8] sm:$0xff]
      %v330 = vld [vmem:[%s209 + $0xd0] sm:$0xff]
      %v331 = vld [vmem:[%s209 + $0xd8] sm:$0xff]
      %v332 = vld [vmem:[%s209 + $0xe0] sm:$0xff]
      %v333 = vld [vmem:[%s209 + $0xe8] sm:$0xff]
      %v334 = vld [vmem:[%s209 + $0xf0] sm:$0xff]
      %v335 = vld [vmem:[%s209 + $0xf8] sm:$0xff]
      %v336 = vperm.slane %v215, 1
      %v337 = vmul.f32 %v304, %v336
      %v338 = vmul.f32 %v305, %v336
      %v339 = vmul.f32 %v306, %v336
      %v340 = vmul.f32 %v307, %v336
      %v341 = vmul.f32 %v308, %v336
      %v342 = vmul.f32 %v309, %v336
      %v343 = vmul.f32 %v310, %v336
      %v344 = vmul.f32 %v311, %v336
      %v345 = vmul.f32 %v312, %v336
      %v346 = vmul.f32 %v313, %v336
      %v347 = vmul.f32 %v314, %v336
      %v348 = vmul.f32 %v315, %v336
      %v349 = vmul.f32 %v316, %v336
      %v350 = vmul.f32 %v317, %v336
      %v351 = vmul.f32 %v318, %v336
      %v352 = vmul.f32 %v319, %v336
      %v353 = vmul.f32 %v320, %v336
      %v354 = vmul.f32 %v321, %v336
      %v355 = vmul.f32 %v322, %v336
      %v356 = vmul.f32 %v323, %v336
      %v357 = vmul.f32 %v324, %v336
      %v358 = vmul.f32 %v325, %v336
      %v359 = vmul.f32 %v326, %v336
      %v360 = vmul.f32 %v327, %v336
      %v361 = vmul.f32 %v328, %v336
      %v362 = vmul.f32 %v329, %v336
      %v363 = vmul.f32 %v330, %v336
      %v364 = vmul.f32 %v331, %v336
      %v365 = vmul.f32 %v332, %v336
      %v366 = vmul.f32 %v333, %v336
      %v367 = vmul.f32 %v334, %v336
      %v368 = vmul.f32 %v335, %v336
      %s369 = scalar_lea.vmem [#allocation2], 24
      %370 = vst.msk [vmem:[%s369 + $0x1] sm:$0xff] %vm218, %v337
      %371 = vst.msk [vmem:[%s369 + $0x9] sm:$0xff] %vm218, %v338
      %372 = vst.msk [vmem:[%s369 + $0x19] sm:$0xff] %vm218, %v339
      %373 = vst.msk [vmem:[%s369 + $0x21] sm:$0xff] %vm218, %v340
      %374 = vst.msk [vmem:[%s369 + $0x31] sm:$0xff] %vm218, %v341
      %375 = vst.msk [vmem:[%s369 + $0x39] sm:$0xff] %vm218, %v342
      %376 = vst.msk [vmem:[%s369 + $0x49] sm:$0xff] %vm218, %v343
      %377 = vst.msk [vmem:[%s369 + $0x51] sm:$0xff] %vm218, %v344
      %378 = vst.msk [vmem:[%s369 + $0x61] sm:$0xff] %vm218, %v345
      %379 = vst.msk [vmem:[%s369 + $0x69] sm:$0xff] %vm218, %v346
      %380 = vst.msk [vmem:[%s369 + $0x79] sm:$0xff] %vm218, %v347
      %381 = vst.msk [vmem:[%s369 + $0x81] sm:$0xff] %vm218, %v348
      %382 = vst.msk [vmem:[%s369 + $0x91] sm:$0xff] %vm218, %v349
      %383 = vst.msk [vmem:[%s369 + $0x99] sm:$0xff] %vm218, %v350
      %384 = vst.msk [vmem:[%s369 + $0xa9] sm:$0xff] %vm218, %v351
      %385 = vst.msk [vmem:[%s369 + $0xb1] sm:$0xff] %vm218, %v352
      %386 = vst.msk [vmem:[%s369 + $0xc1] sm:$0xff] %vm218, %v353
      %387 = vst.msk [vmem:[%s369 + $0xc9] sm:$0xff] %vm218, %v354
      %388 = vst.msk [vmem:[%s369 + $0xd9] sm:$0xff] %vm218, %v355
      %389 = vst.msk [vmem:[%s369 + $0xe1] sm:$0xff] %vm218, %v356
      %390 = vst.msk [vmem:[%s369 + $0xf1] sm:$0xff] %vm218, %v357
      %391 = vst.msk [vmem:[%s369 + $0xf9] sm:$0xff] %vm218, %v358
      %392 = vst.msk [vmem:[%s369 + $0x109] sm:$0xff] %vm218, %v359
      %393 = vst.msk [vmem:[%s369 + $0x111] sm:$0xff] %vm218, %v360
      %394 = vst.msk [vmem:[%s369 + $0x121] sm:$0xff] %vm218, %v361
      %395 = vst.msk [vmem:[%s369 + $0x129] sm:$0xff] %vm218, %v362
      %396 = vst.msk [vmem:[%s369 + $0x139] sm:$0xff] %vm218, %v363
      %397 = vst.msk [vmem:[%s369 + $0x141] sm:$0xff] %vm218, %v364
      %398 = vst.msk [vmem:[%s369 + $0x151] sm:$0xff] %vm218, %v365
      %399 = vst.msk [vmem:[%s369 + $0x159] sm:$0xff] %vm218, %v366
      %400 = vst.msk [vmem:[%s369 + $0x169] sm:$0xff] %vm218, %v367
      %401 = vst.msk [vmem:[%s369 + $0x171] sm:$0xff] %vm218, %v368
      %v402 = vld [vmem:[#allocation2] sm:$0xff]
      %v403 = vld [vmem:[#allocation2 + $0x8] sm:$0xff]
      %v404 = vld [vmem:[#allocation2 + $0x18] sm:$0xff]
      %v405 = vld [vmem:[#allocation2 + $0x20] sm:$0xff]
      %v406 = vld [vmem:[#allocation2 + $0x30] sm:$0xff]
      %v407 = vld [vmem:[#allocation2 + $0x38] sm:$0xff]
      %v408 = vld [vmem:[#allocation2 + $0x48] sm:$0xff]
      %v409 = vld [vmem:[#allocation2 + $0x50] sm:$0xff]
      %v410 = vld [vmem:[#allocation2 + $0x60] sm:$0xff]
      %v411 = vld [vmem:[#allocation2 + $0x68] sm:$0xff]
      %v412 = vld [vmem:[#allocation2 + $0x78] sm:$0xff]
      %v413 = vld [vmem:[#allocation2 + $0x80] sm:$0xff]
      %v414 = vld [vmem:[#allocation2 + $0x90] sm:$0xff]
      %v415 = vld [vmem:[#allocation2 + $0x98] sm:$0xff]
      %v416 = vld [vmem:[#allocation2 + $0xa8] sm:$0xff]
      %v417 = vld [vmem:[#allocation2 + $0xb0] sm:$0xff]
      %v418 = vld [vmem:[#allocation2 + $0xc0] sm:$0xff]
      %v419 = vld [vmem:[#allocation2 + $0xc8] sm:$0xff]
      %v420 = vld [vmem:[#allocation2 + $0xd8] sm:$0xff]
      %v421 = vld [vmem:[#allocation2 + $0xe0] sm:$0xff]
      %v422 = vld [vmem:[#allocation2 + $0xf0] sm:$0xff]
      %v423 = vld [vmem:[#allocation2 + $0xf8] sm:$0xff]
      %v424 = vld [vmem:[#allocation2 + $0x108] sm:$0xff]
      %v425 = vld [vmem:[#allocation2 + $0x110] sm:$0xff]
      %v426 = vld [vmem:[#allocation2 + $0x120] sm:$0xff]
      %v427 = vld [vmem:[#allocation2 + $0x128] sm:$0xff]
      %v428 = vld [vmem:[#allocation2 + $0x138] sm:$0xff]
      %v429 = vld [vmem:[#allocation2 + $0x140] sm:$0xff]
      %v430 = vld [vmem:[#allocation2 + $0x150] sm:$0xff]
      %v431 = vld [vmem:[#allocation2 + $0x158] sm:$0xff]
      %v432 = vld [vmem:[#allocation2 + $0x168] sm:$0xff]
      %v433 = vld [vmem:[#allocation2 + $0x170] sm:$0xff]
      %v434 = vld [vmem:[#allocation2 + $0x180] sm:$0xff]
      %v435 = vld [vmem:[#allocation2 + $0x188] sm:$0xff]
      %v436 = vld [vmem:[#allocation2 + $0x198] sm:$0xff]
      %v437 = vld [vmem:[#allocation2 + $0x1a0] sm:$0xff]
      %v438 = vld [vmem:[%s2] sm:$0xf]
      %v440 = vsel %vm218, %v402, 0
      %v443 = vsel %vm218, %v403, 0
      %v446 = vsel %vm218, %v404, 0
      %v449 = vsel %vm218, %v405, 0
      %v452 = vsel %vm218, %v406, 0
      %v455 = vsel %vm218, %v407, 0
      %v458 = vsel %vm218, %v408, 0
      %v461 = vsel %vm218, %v409, 0
      %v464 = vsel %vm218, %v410, 0
      %v467 = vsel %vm218, %v411, 0
      %v470 = vsel %vm218, %v412, 0
      %v473 = vsel %vm218, %v413, 0
      %v476 = vsel %vm218, %v414, 0
      %v479 = vsel %vm218, %v415, 0
      %v482 = vsel %vm218, %v416, 0
      %v485 = vsel %vm218, %v417, 0
      %v488 = vsel %vm218, %v418, 0
      %v491 = vsel %vm218, %v419, 0
      %v494 = vsel %vm218, %v420, 0
      %v497 = vsel %vm218, %v421, 0
      %v500 = vsel %vm218, %v422, 0
      %v503 = vsel %vm218, %v423, 0
      %v506 = vsel %vm218, %v424, 0
      %v509 = vsel %vm218, %v425, 0
      %v512 = vsel %vm218, %v426, 0
      %v515 = vsel %vm218, %v427, 0
      %v518 = vsel %vm218, %v428, 0
      %v521 = vsel %vm218, %v429, 0
      %v524 = vsel %vm218, %v430, 0
      %v527 = vsel %vm218, %v431, 0
      %v530 = vsel %vm218, %v432, 0
      %v533 = vsel %vm218, %v433, 0
      %v536 = vsel %vm222, %v438, 0
      %538 = vmatpush.msra.mxu0 0.0
      %539 = vmatpush.msra.mxu0 0.0
      %540 = vmatpush.msra.mxu0 0.0
      %541 = vmatpush.msra.mxu0 0.0
      %542 = vmatpush.msra.mxu0 0.0
      %543 = vmatpush.msra.mxu0 0.0
      %544 = vmatpush.msra.mxu0 0.0
      %545 = vmatpush.msra.mxu0 0.0
      %546 = vmatpush.msra.mxu0 0.0
      %547 = vmatpush.msra.mxu0 0.0
      %548 = vmatpush.msra.mxu0 0.0
      %549 = vmatpush.msra.mxu0 0.0
      %550 = vmatpush.msra.mxu0 0.0
      %551 = vmatpush.msra.mxu0 0.0
      %552 = vmatpush.msra.mxu0 0.0
      %553 = vmatpush.msra.mxu0 %v536
      %554 = vmatmul.f32.gmra.mxu0 %v440
      %v555 = vpop.f32.mrf.mxu0
      %v556 = vadd.f32 0.0, %v555
      %557 = vmatmul.f32.gmra.mxu0 %v443
      %v558 = vpop.f32.mrf.mxu0
      %v559 = vadd.f32 0.0, %v558
      %560 = vmatmul.f32.gmra.mxu0 %v446
      %v561 = vpop.f32.mrf.mxu0
      %v562 = vadd.f32 0.0, %v561
      %563 = vmatmul.f32.gmra.mxu0 %v449
      %v564 = vpop.f32.mrf.mxu0
      %v565 = vadd.f32 0.0, %v564
      %566 = vmatmul.f32.gmra.mxu0 %v452
      %v567 = vpop.f32.mrf.mxu0
      %v568 = vadd.f32 0.0, %v567
      %569 = vmatmul.f32.gmra.mxu0 %v455
      %v570 = vpop.f32.mrf.mxu0
      %v571 = vadd.f32 0.0, %v570
      %572 = vmatmul.f32.gmra.mxu0 %v458
      %v573 = vpop.f32.mrf.mxu0
      %v574 = vadd.f32 0.0, %v573
      %575 = vmatmul.f32.gmra.mxu0 %v461
      %v576 = vpop.f32.mrf.mxu0
      %v577 = vadd.f32 0.0, %v576
      %578 = vmatmul.f32.gmra.mxu0 %v464
      %v579 = vpop.f32.mrf.mxu0
      %v580 = vadd.f32 0.0, %v579
      %581 = vmatmul.f32.gmra.mxu0 %v467
      %v582 = vpop.f32.mrf.mxu0
      %v583 = vadd.f32 0.0, %v582
      %584 = vmatmul.f32.gmra.mxu0 %v470
      %v585 = vpop.f32.mrf.mxu0
      %v586 = vadd.f32 0.0, %v585
      %587 = vmatmul.f32.gmra.mxu0 %v473
      %v588 = vpop.f32.mrf.mxu0
      %v589 = vadd.f32 0.0, %v588
      %590 = vmatmul.f32.gmra.mxu0 %v476
      %v591 = vpop.f32.mrf.mxu0
      %v592 = vadd.f32 0.0, %v591
      %593 = vmatmul.f32.gmra.mxu0 %v479
      %v594 = vpop.f32.mrf.mxu0
      %v595 = vadd.f32 0.0, %v594
      %596 = vmatmul.f32.gmra.mxu0 %v482
      %v597 = vpop.f32.mrf.mxu0
      %v598 = vadd.f32 0.0, %v597
      %599 = vmatmul.f32.gmra.mxu0 %v485
      %v600 = vpop.f32.mrf.mxu0
      %v601 = vadd.f32 0.0, %v600
      %602 = vmatmul.f32.gmra.mxu0 %v488
      %v603 = vpop.f32.mrf.mxu0
      %v604 = vadd.f32 0.0, %v603
      %605 = vmatmul.f32.gmra.mxu0 %v491
      %v606 = vpop.f32.mrf.mxu0
      %v607 = vadd.f32 0.0, %v606
      %608 = vmatmul.f32.gmra.mxu0 %v494
      %v609 = vpop.f32.mrf.mxu0
      %v610 = vadd.f32 0.0, %v609
      %611 = vmatmul.f32.gmra.mxu0 %v497
      %v612 = vpop.f32.mrf.mxu0
      %v613 = vadd.f32 0.0, %v612
      %614 = vmatmul.f32.gmra.mxu0 %v500
      %v615 = vpop.f32.mrf.mxu0
      %v616 = vadd.f32 0.0, %v615
      %617 = vmatmul.f32.gmra.mxu0 %v503
      %v618 = vpop.f32.mrf.mxu0
      %v619 = vadd.f32 0.0, %v618
      %620 = vmatmul.f32.gmra.mxu0 %v506
      %v621 = vpop.f32.mrf.mxu0
      %v622 = vadd.f32 0.0, %v621
      %623 = vmatmul.f32.gmra.mxu0 %v509
      %v624 = vpop.f32.mrf.mxu0
      %v625 = vadd.f32 0.0, %v624
      %626 = vmatmul.f32.gmra.mxu0 %v512
      %v627 = vpop.f32.mrf.mxu0
      %v628 = vadd.f32 0.0, %v627
      %629 = vmatmul.f32.gmra.mxu0 %v515
      %v630 = vpop.f32.mrf.mxu0
      %v631 = vadd.f32 0.0, %v630
      %632 = vmatmul.f32.gmra.mxu0 %v518
      %v633 = vpop.f32.mrf.mxu0
      %v634 = vadd.f32 0.0, %v633
      %635 = vmatmul.f32.gmra.mxu0 %v521
      %v636 = vpop.f32.mrf.mxu0
      %v637 = vadd.f32 0.0, %v636
      %638 = vmatmul.f32.gmra.mxu0 %v524
      %v639 = vpop.f32.mrf.mxu0
      %v640 = vadd.f32 0.0, %v639
      %641 = vmatmul.f32.gmra.mxu0 %v527
      %v642 = vpop.f32.mrf.mxu0
      %v643 = vadd.f32 0.0, %v642
      %644 = vmatmul.f32.gmra.mxu0 %v530
      %v645 = vpop.f32.mrf.mxu0
      %v646 = vadd.f32 0.0, %v645
      %647 = vmatmul.f32.gmra.mxu0 %v533
      %v648 = vpop.f32.mrf.mxu0
      %v649 = vadd.f32 0.0, %v648
      %650 = vdwg.mxu0
      %vm651 = vcmask 64512
      %652 = vst.msk [vmem:[#allocation3] sm:$0xff] %vm651, %v556
      %653 = vst.msk [vmem:[#allocation3 + $0x8] sm:$0xff] %vm651, %v559
      %654 = vst.msk [vmem:[#allocation3 + $0x10] sm:$0xff] %vm651, %v562
      %655 = vst.msk [vmem:[#allocation3 + $0x18] sm:$0xff] %vm651, %v565
      %656 = vst.msk [vmem:[#allocation3 + $0x20] sm:$0xff] %vm651, %v568
      %657 = vst.msk [vmem:[#allocation3 + $0x28] sm:$0xff] %vm651, %v571
      %658 = vst.msk [vmem:[#allocation3 + $0x30] sm:$0xff] %vm651, %v574
      %659 = vst.msk [vmem:[#allocation3 + $0x38] sm:$0xff] %vm651, %v577
      %660 = vst.msk [vmem:[#allocation3 + $0x40] sm:$0xff] %vm651, %v580
      %661 = vst.msk [vmem:[#allocation3 + $0x48] sm:$0xff] %vm651, %v583
      %662 = vst.msk [vmem:[#allocation3 + $0x50] sm:$0xff] %vm651, %v586
      %663 = vst.msk [vmem:[#allocation3 + $0x58] sm:$0xff] %vm651, %v589
      %664 = vst.msk [vmem:[#allocation3 + $0x60] sm:$0xff] %vm651, %v592
      %665 = vst.msk [vmem:[#allocation3 + $0x68] sm:$0xff] %vm651, %v595
      %666 = vst.msk [vmem:[#allocation3 + $0x70] sm:$0xff] %vm651, %v598
      %667 = vst.msk [vmem:[#allocation3 + $0x78] sm:$0xff] %vm651, %v601
      %668 = vst.msk [vmem:[#allocation3 + $0x80] sm:$0xff] %vm651, %v604
      %669 = vst.msk [vmem:[#allocation3 + $0x88] sm:$0xff] %vm651, %v607
      %670 = vst.msk [vmem:[#allocation3 + $0x90] sm:$0xff] %vm651, %v610
      %671 = vst.msk [vmem:[#allocation3 + $0x98] sm:$0xff] %vm651, %v613
      %672 = vst.msk [vmem:[#allocation3 + $0xa0] sm:$0xff] %vm651, %v616
      %673 = vst.msk [vmem:[#allocation3 + $0xa8] sm:$0xff] %vm651, %v619
      %674 = vst.msk [vmem:[#allocation3 + $0xb0] sm:$0xff] %vm651, %v622
      %675 = vst.msk [vmem:[#allocation3 + $0xb8] sm:$0xff] %vm651, %v625
      %676 = vst.msk [vmem:[#allocation3 + $0xc0] sm:$0xff] %vm651, %v628
      %677 = vst.msk [vmem:[#allocation3 + $0xc8] sm:$0xff] %vm651, %v631
      %678 = vst.msk [vmem:[#allocation3 + $0xd0] sm:$0xff] %vm651, %v634
      %679 = vst.msk [vmem:[#allocation3 + $0xd8] sm:$0xff] %vm651, %v637
      %680 = vst.msk [vmem:[#allocation3 + $0xe0] sm:$0xff] %vm651, %v640
      %681 = vst.msk [vmem:[#allocation3 + $0xe8] sm:$0xff] %vm651, %v643
      %682 = vst.msk [vmem:[#allocation3 + $0xf0] sm:$0xff] %vm651, %v646
      %683 = vst.msk [vmem:[#allocation3 + $0xf8] sm:$0xff] %vm651, %v649
      %s684 = scalar_lea.vmem %s2, 12
      %v685 = vld [vmem:[%s684] sm:$0xf]
      %v687 = vsel %vm218, %v434, 0
      %v690 = vsel %vm218, %v435, 0
      %v693 = vsel %vm222, %v685, 0
      %695 = vmatpush.msra.mxu0 0.0
      %696 = vmatpush.msra.mxu0 0.0
      %697 = vmatpush.msra.mxu0 0.0
      %698 = vmatpush.msra.mxu0 0.0
      %699 = vmatpush.msra.mxu0 0.0
      %700 = vmatpush.msra.mxu0 0.0
      %701 = vmatpush.msra.mxu0 0.0
      %702 = vmatpush.msra.mxu0 0.0
      %703 = vmatpush.msra.mxu0 0.0
      %704 = vmatpush.msra.mxu0 0.0
      %705 = vmatpush.msra.mxu0 0.0
      %706 = vmatpush.msra.mxu0 0.0
      %707 = vmatpush.msra.mxu0 0.0
      %708 = vmatpush.msra.mxu0 0.0
      %709 = vmatpush.msra.mxu0 0.0
      %710 = vmatpush.msra.mxu0 %v693
      %711 = vmatmul.f32.gmra.mxu0 %v446
      %v712 = vpop.f32.mrf.mxu0
      %v713 = vadd.f32 0.0, %v712
      %714 = vmatmul.f32.gmra.mxu0 %v449
      %v715 = vpop.f32.mrf.mxu0
      %v716 = vadd.f32 0.0, %v715
      %717 = vmatmul.f32.gmra.mxu0 %v452
      %v718 = vpop.f32.mrf.mxu0
      %v719 = vadd.f32 0.0, %v718
      %720 = vmatmul.f32.gmra.mxu0 %v455
      %v721 = vpop.f32.mrf.mxu0
      %v722 = vadd.f32 0.0, %v721
      %723 = vmatmul.f32.gmra.mxu0 %v458
      %v724 = vpop.f32.mrf.mxu0
      %v725 = vadd.f32 0.0, %v724
      %726 = vmatmul.f32.gmra.mxu0 %v461
      %v727 = vpop.f32.mrf.mxu0
      %v728 = vadd.f32 0.0, %v727
      %729 = vmatmul.f32.gmra.mxu0 %v464
      %v730 = vpop.f32.mrf.mxu0
      %v731 = vadd.f32 0.0, %v730
      %732 = vmatmul.f32.gmra.mxu0 %v467
      %v733 = vpop.f32.mrf.mxu0
      %v734 = vadd.f32 0.0, %v733
      %735 = vmatmul.f32.gmra.mxu0 %v470
      %v736 = vpop.f32.mrf.mxu0
      %v737 = vadd.f32 0.0, %v736
      %738 = vmatmul.f32.gmra.mxu0 %v473
      %v739 = vpop.f32.mrf.mxu0
      %v740 = vadd.f32 0.0, %v739
      %741 = vmatmul.f32.gmra.mxu0 %v476
      %v742 = vpop.f32.mrf.mxu0
      %v743 = vadd.f32 0.0, %v742
      %744 = vmatmul.f32.gmra.mxu0 %v479
      %v745 = vpop.f32.mrf.mxu0
      %v746 = vadd.f32 0.0, %v745
      %747 = vmatmul.f32.gmra.mxu0 %v482
      %v748 = vpop.f32.mrf.mxu0
      %v749 = vadd.f32 0.0, %v748
      %750 = vmatmul.f32.gmra.mxu0 %v485
      %v751 = vpop.f32.mrf.mxu0
      %v752 = vadd.f32 0.0, %v751
      %753 = vmatmul.f32.gmra.mxu0 %v488
      %v754 = vpop.f32.mrf.mxu0
      %v755 = vadd.f32 0.0, %v754
      %756 = vmatmul.f32.gmra.mxu0 %v491
      %v757 = vpop.f32.mrf.mxu0
      %v758 = vadd.f32 0.0, %v757
      %759 = vmatmul.f32.gmra.mxu0 %v494
      %v760 = vpop.f32.mrf.mxu0
      %v761 = vadd.f32 0.0, %v760
      %762 = vmatmul.f32.gmra.mxu0 %v497
      %v763 = vpop.f32.mrf.mxu0
      %v764 = vadd.f32 0.0, %v763
      %765 = vmatmul.f32.gmra.mxu0 %v500
      %v766 = vpop.f32.mrf.mxu0
      %v767 = vadd.f32 0.0, %v766
      %768 = vmatmul.f32.gmra.mxu0 %v503
      %v769 = vpop.f32.mrf.mxu0
      %v770 = vadd.f32 0.0, %v769
      %771 = vmatmul.f32.gmra.mxu0 %v506
      %v772 = vpop.f32.mrf.mxu0
      %v773 = vadd.f32 0.0, %v772
      %774 = vmatmul.f32.gmra.mxu0 %v509
      %v775 = vpop.f32.mrf.mxu0
      %v776 = vadd.f32 0.0, %v775
      %777 = vmatmul.f32.gmra.mxu0 %v512
      %v778 = vpop.f32.mrf.mxu0
      %v779 = vadd.f32 0.0, %v778
      %780 = vmatmul.f32.gmra.mxu0 %v515
      %v781 = vpop.f32.mrf.mxu0
      %v782 = vadd.f32 0.0, %v781
      %783 = vmatmul.f32.gmra.mxu0 %v518
      %v784 = vpop.f32.mrf.mxu0
      %v785 = vadd.f32 0.0, %v784
      %786 = vmatmul.f32.gmra.mxu0 %v521
      %v787 = vpop.f32.mrf.mxu0
      %v788 = vadd.f32 0.0, %v787
      %789 = vmatmul.f32.gmra.mxu0 %v524
      %v790 = vpop.f32.mrf.mxu0
      %v791 = vadd.f32 0.0, %v790
      %792 = vmatmul.f32.gmra.mxu0 %v527
      %v793 = vpop.f32.mrf.mxu0
      %v794 = vadd.f32 0.0, %v793
      %795 = vmatmul.f32.gmra.mxu0 %v530
      %v796 = vpop.f32.mrf.mxu0
      %v797 = vadd.f32 0.0, %v796
      %798 = vmatmul.f32.gmra.mxu0 %v533
      %v799 = vpop.f32.mrf.mxu0
      %v800 = vadd.f32 0.0, %v799
      %801 = vmatmul.f32.gmra.mxu0 %v687
      %v802 = vpop.f32.mrf.mxu0
      %v803 = vadd.f32 0.0, %v802
      %804 = vmatmul.f32.gmra.mxu0 %v690
      %v805 = vpop.f32.mrf.mxu0
      %v806 = vadd.f32 0.0, %v805
      %807 = vdwg.mxu0
      %v808 = vld [vmem:[#allocation3] sm:$0xff]
      %v809 = vld [vmem:[#allocation3 + $0x8] sm:$0xff]
      %v810 = vld [vmem:[#allocation3 + $0x10] sm:$0xff]
      %v811 = vld [vmem:[#allocation3 + $0x18] sm:$0xff]
      %v812 = vld [vmem:[#allocation3 + $0x20] sm:$0xff]
      %v813 = vld [vmem:[#allocation3 + $0x28] sm:$0xff]
      %v814 = vld [vmem:[#allocation3 + $0x30] sm:$0xff]
      %v815 = vld [vmem:[#allocation3 + $0x38] sm:$0xff]
      %v816 = vld [vmem:[#allocation3 + $0x40] sm:$0xff]
      %v817 = vld [vmem:[#allocation3 + $0x48] sm:$0xff]
      %v818 = vld [vmem:[#allocation3 + $0x50] sm:$0xff]
      %v819 = vld [vmem:[#allocation3 + $0x58] sm:$0xff]
      %v820 = vld [vmem:[#allocation3 + $0x60] sm:$0xff]
      %v821 = vld [vmem:[#allocation3 + $0x68] sm:$0xff]
      %v822 = vld [vmem:[#allocation3 + $0x70] sm:$0xff]
      %v823 = vld [vmem:[#allocation3 + $0x78] sm:$0xff]
      %v824 = vld [vmem:[#allocation3 + $0x80] sm:$0xff]
      %v825 = vld [vmem:[#allocation3 + $0x88] sm:$0xff]
      %v826 = vld [vmem:[#allocation3 + $0x90] sm:$0xff]
      %v827 = vld [vmem:[#allocation3 + $0x98] sm:$0xff]
      %v828 = vld [vmem:[#allocation3 + $0xa0] sm:$0xff]
      %v829 = vld [vmem:[#allocation3 + $0xa8] sm:$0xff]
      %v830 = vld [vmem:[#allocation3 + $0xb0] sm:$0xff]
      %v831 = vld [vmem:[#allocation3 + $0xb8] sm:$0xff]
      %v832 = vld [vmem:[#allocation3 + $0xc0] sm:$0xff]
      %v833 = vld [vmem:[#allocation3 + $0xc8] sm:$0xff]
      %v834 = vld [vmem:[#allocation3 + $0xd0] sm:$0xff]
      %v835 = vld [vmem:[#allocation3 + $0xd8] sm:$0xff]
      %v836 = vld [vmem:[#allocation3 + $0xe0] sm:$0xff]
      %v837 = vld [vmem:[#allocation3 + $0xe8] sm:$0xff]
      %v838 = vld [vmem:[#allocation3 + $0xf0] sm:$0xff]
      %v839 = vld [vmem:[#allocation3 + $0xf8] sm:$0xff]
      %v840 = vadd.f32 %v808, %v713
      %v841 = vadd.f32 %v809, %v716
      %v842 = vadd.f32 %v810, %v719
      %v843 = vadd.f32 %v811, %v722
      %v844 = vadd.f32 %v812, %v725
      %v845 = vadd.f32 %v813, %v728
      %v846 = vadd.f32 %v814, %v731
      %v847 = vadd.f32 %v815, %v734
      %v848 = vadd.f32 %v816, %v737
      %v849 = vadd.f32 %v817, %v740
      %v850 = vadd.f32 %v818, %v743
      %v851 = vadd.f32 %v819, %v746
      %v852 = vadd.f32 %v820, %v749
      %v853 = vadd.f32 %v821, %v752
      %v854 = vadd.f32 %v822, %v755
      %v855 = vadd.f32 %v823, %v758
      %v856 = vadd.f32 %v824, %v761
      %v857 = vadd.f32 %v825, %v764
      %v858 = vadd.f32 %v826, %v767
      %v859 = vadd.f32 %v827, %v770
      %v860 = vadd.f32 %v828, %v773
      %v861 = vadd.f32 %v829, %v776
      %v862 = vadd.f32 %v830, %v779
      %v863 = vadd.f32 %v831, %v782
      %v864 = vadd.f32 %v832, %v785
      %v865 = vadd.f32 %v833, %v788
      %v866 = vadd.f32 %v834, %v791
      %v867 = vadd.f32 %v835, %v794
      %v868 = vadd.f32 %v836, %v797
      %v869 = vadd.f32 %v837, %v800
      %v870 = vadd.f32 %v838, %v803
      %v871 = vadd.f32 %v839, %v806
      %872 = vst.msk [vmem:[#allocation3] sm:$0xff] %vm651, %v840
      %873 = vst.msk [vmem:[#allocation3 + $0x8] sm:$0xff] %vm651, %v841
      %874 = vst.msk [vmem:[#allocation3 + $0x10] sm:$0xff] %vm651, %v842
      %875 = vst.msk [vmem:[#allocation3 + $0x18] sm:$0xff] %vm651, %v843
      %876 = vst.msk [vmem:[#allocation3 + $0x20] sm:$0xff] %vm651, %v844
      %877 = vst.msk [vmem:[#allocation3 + $0x28] sm:$0xff] %vm651, %v845
      %878 = vst.msk [vmem:[#allocation3 + $0x30] sm:$0xff] %vm651, %v846
      %879 = vst.msk [vmem:[#allocation3 + $0x38] sm:$0xff] %vm651, %v847
      %880 = vst.msk [vmem:[#allocation3 + $0x40] sm:$0xff] %vm651, %v848
      %881 = vst.msk [vmem:[#allocation3 + $0x48] sm:$0xff] %vm651, %v849
      %882 = vst.msk [vmem:[#allocation3 + $0x50] sm:$0xff] %vm651, %v850
      %883 = vst.msk [vmem:[#allocation3 + $0x58] sm:$0xff] %vm651, %v851
      %884 = vst.msk [vmem:[#allocation3 + $0x60] sm:$0xff] %vm651, %v852
      %885 = vst.msk [vmem:[#allocation3 + $0x68] sm:$0xff] %vm651, %v853
      %886 = vst.msk [vmem:[#allocation3 + $0x70] sm:$0xff] %vm651, %v854
      %887 = vst.msk [vmem:[#allocation3 + $0x78] sm:$0xff] %vm651, %v855
      %888 = vst.msk [vmem:[#allocation3 + $0x80] sm:$0xff] %vm651, %v856
      %889 = vst.msk [vmem:[#allocation3 + $0x88] sm:$0xff] %vm651, %v857
      %890 = vst.msk [vmem:[#allocation3 + $0x90] sm:$0xff] %vm651, %v858
      %891 = vst.msk [vmem:[#allocation3 + $0x98] sm:$0xff] %vm651, %v859
      %892 = vst.msk [vmem:[#allocation3 + $0xa0] sm:$0xff] %vm651, %v860
      %893 = vst.msk [vmem:[#allocation3 + $0xa8] sm:$0xff] %vm651, %v861
      %894 = vst.msk [vmem:[#allocation3 + $0xb0] sm:$0xff] %vm651, %v862
      %895 = vst.msk [vmem:[#allocation3 + $0xb8] sm:$0xff] %vm651, %v863
      %896 = vst.msk [vmem:[#allocation3 + $0xc0] sm:$0xff] %vm651, %v864
      %897 = vst.msk [vmem:[#allocation3 + $0xc8] sm:$0xff] %vm651, %v865
      %898 = vst.msk [vmem:[#allocation3 + $0xd0] sm:$0xff] %vm651, %v866
      %899 = vst.msk [vmem:[#allocation3 + $0xd8] sm:$0xff] %vm651, %v867
      %900 = vst.msk [vmem:[#allocation3 + $0xe0] sm:$0xff] %vm651, %v868
      %901 = vst.msk [vmem:[#allocation3 + $0xe8] sm:$0xff] %vm651, %v869
      %902 = vst.msk [vmem:[#allocation3 + $0xf0] sm:$0xff] %vm651, %v870
      %903 = vst.msk [vmem:[#allocation3 + $0xf8] sm:$0xff] %vm651, %v871
      %s904 = scalar_lea.vmem %s2, 24
      %v905 = vld [vmem:[%s904] sm:$0xf]
      %v907 = vsel %vm218, %v436, 0
      %v910 = vsel %vm218, %v437, 0
      %v913 = vsel %vm222, %v905, 0
      %915 = vmatpush.msra.mxu0 0.0
      %916 = vmatpush.msra.mxu0 0.0
      %917 = vmatpush.msra.mxu0 0.0
      %918 = vmatpush.msra.mxu0 0.0
      %919 = vmatpush.msra.mxu0 0.0
      %920 = vmatpush.msra.mxu0 0.0
      %921 = vmatpush.msra.mxu0 0.0
      %922 = vmatpush.msra.mxu0 0.0
      %923 = vmatpush.msra.mxu0 0.0
      %924 = vmatpush.msra.mxu0 0.0
      %925 = vmatpush.msra.mxu0 0.0
      %926 = vmatpush.msra.mxu0 0.0
      %927 = vmatpush.msra.mxu0 0.0
      %928 = vmatpush.msra.mxu0 0.0
      %929 = vmatpush.msra.mxu0 0.0
      %930 = vmatpush.msra.mxu0 %v913
      %931 = vmatmul.f32.gmra.mxu0 %v452
      %v932 = vpop.f32.mrf.mxu0
      %v933 = vadd.f32 0.0, %v932
      %934 = vmatmul.f32.gmra.mxu0 %v455
      %v935 = vpop.f32.mrf.mxu0
      %v936 = vadd.f32 0.0, %v935
      %937 = vmatmul.f32.gmra.mxu0 %v458
      %v938 = vpop.f32.mrf.mxu0
      %v939 = vadd.f32 0.0, %v938
      %940 = vmatmul.f32.gmra.mxu0 %v461
      %v941 = vpop.f32.mrf.mxu0
      %v942 = vadd.f32 0.0, %v941
      %943 = vmatmul.f32.gmra.mxu0 %v464
      %v944 = vpop.f32.mrf.mxu0
      %v945 = vadd.f32 0.0, %v944
      %946 = vmatmul.f32.gmra.mxu0 %v467
      %v947 = vpop.f32.mrf.mxu0
      %v948 = vadd.f32 0.0, %v947
      %949 = vmatmul.f32.gmra.mxu0 %v470
      %v950 = vpop.f32.mrf.mxu0
      %v951 = vadd.f32 0.0, %v950
      %952 = vmatmul.f32.gmra.mxu0 %v473
      %v953 = vpop.f32.mrf.mxu0
      %v954 = vadd.f32 0.0, %v953
      %955 = vmatmul.f32.gmra.mxu0 %v476
      %v956 = vpop.f32.mrf.mxu0
      %v957 = vadd.f32 0.0, %v956
      %958 = vmatmul.f32.gmra.mxu0 %v479
      %v959 = vpop.f32.mrf.mxu0
      %v960 = vadd.f32 0.0, %v959
      %961 = vmatmul.f32.gmra.mxu0 %v482
      %v962 = vpop.f32.mrf.mxu0
      %v963 = vadd.f32 0.0, %v962
      %964 = vmatmul.f32.gmra.mxu0 %v485
      %v965 = vpop.f32.mrf.mxu0
      %v966 = vadd.f32 0.0, %v965
      %967 = vmatmul.f32.gmra.mxu0 %v488
      %v968 = vpop.f32.mrf.mxu0
      %v969 = vadd.f32 0.0, %v968
      %970 = vmatmul.f32.gmra.mxu0 %v491
      %v971 = vpop.f32.mrf.mxu0
      %v972 = vadd.f32 0.0, %v971
      %973 = vmatmul.f32.gmra.mxu0 %v494
      %v974 = vpop.f32.mrf.mxu0
      %v975 = vadd.f32 0.0, %v974
      %976 = vmatmul.f32.gmra.mxu0 %v497
      %v977 = vpop.f32.mrf.mxu0
      %v978 = vadd.f32 0.0, %v977
      %979 = vmatmul.f32.gmra.mxu0 %v500
      %v980 = vpop.f32.mrf.mxu0
      %v981 = vadd.f32 0.0, %v980
      %982 = vmatmul.f32.gmra.mxu0 %v503
      %v983 = vpop.f32.mrf.mxu0
      %v984 = vadd.f32 0.0, %v983
      %985 = vmatmul.f32.gmra.mxu0 %v506
      %v986 = vpop.f32.mrf.mxu0
      %v987 = vadd.f32 0.0, %v986
      %988 = vmatmul.f32.gmra.mxu0 %v509
      %v989 = vpop.f32.mrf.mxu0
      %v990 = vadd.f32 0.0, %v989
      %991 = vmatmul.f32.gmra.mxu0 %v512
      %v992 = vpop.f32.mrf.mxu0
      %v993 = vadd.f32 0.0, %v992
      %994 = vmatmul.f32.gmra.mxu0 %v515
      %v995 = vpop.f32.mrf.mxu0
      %v996 = vadd.f32 0.0, %v995
      %997 = vmatmul.f32.gmra.mxu0 %v518
      %v998 = vpop.f32.mrf.mxu0
      %v999 = vadd.f32 0.0, %v998
      %1000 = vmatmul.f32.gmra.mxu0 %v521
      %v1001 = vpop.f32.mrf.mxu0
      %v1002 = vadd.f32 0.0, %v1001
      %1003 = vmatmul.f32.gmra.mxu0 %v524
      %v1004 = vpop.f32.mrf.mxu0
      %v1005 = vadd.f32 0.0, %v1004
      %1006 = vmatmul.f32.gmra.mxu0 %v527
      %v1007 = vpop.f32.mrf.mxu0
      %v1008 = vadd.f32 0.0, %v1007
      %1009 = vmatmul.f32.gmra.mxu0 %v530
      %v1010 = vpop.f32.mrf.mxu0
      %v1011 = vadd.f32 0.0, %v1010
      %1012 = vmatmul.f32.gmra.mxu0 %v533
      %v1013 = vpop.f32.mrf.mxu0
      %v1014 = vadd.f32 0.0, %v1013
      %1015 = vmatmul.f32.gmra.mxu0 %v687
      %v1016 = vpop.f32.mrf.mxu0
      %v1017 = vadd.f32 0.0, %v1016
      %1018 = vmatmul.f32.gmra.mxu0 %v690
      %v1019 = vpop.f32.mrf.mxu0
      %v1020 = vadd.f32 0.0, %v1019
      %1021 = vmatmul.f32.gmra.mxu0 %v907
      %v1022 = vpop.f32.mrf.mxu0
      %v1023 = vadd.f32 0.0, %v1022
      %1024 = vmatmul.f32.gmra.mxu0 %v910
      %v1025 = vpop.f32.mrf.mxu0
      %v1026 = vadd.f32 0.0, %v1025
      %1027 = vdwg.mxu0
      %v1028 = vld [vmem:[#allocation3] sm:$0xff]
      %v1029 = vld [vmem:[#allocation3 + $0x8] sm:$0xff]
      %v1030 = vld [vmem:[#allocation3 + $0x10] sm:$0xff]
      %v1031 = vld [vmem:[#allocation3 + $0x18] sm:$0xff]
      %v1032 = vld [vmem:[#allocation3 + $0x20] sm:$0xff]
      %v1033 = vld [vmem:[#allocation3 + $0x28] sm:$0xff]
      %v1034 = vld [vmem:[#allocation3 + $0x30] sm:$0xff]
      %v1035 = vld [vmem:[#allocation3 + $0x38] sm:$0xff]
      %v1036 = vld [vmem:[#allocation3 + $0x40] sm:$0xff]
      %v1037 = vld [vmem:[#allocation3 + $0x48] sm:$0xff]
      %v1038 = vld [vmem:[#allocation3 + $0x50] sm:$0xff]
      %v1039 = vld [vmem:[#allocation3 + $0x58] sm:$0xff]
      %v1040 = vld [vmem:[#allocation3 + $0x60] sm:$0xff]
      %v1041 = vld [vmem:[#allocation3 + $0x68] sm:$0xff]
      %v1042 = vld [vmem:[#allocation3 + $0x70] sm:$0xff]
      %v1043 = vld [vmem:[#allocation3 + $0x78] sm:$0xff]
      %v1044 = vld [vmem:[#allocation3 + $0x80] sm:$0xff]
      %v1045 = vld [vmem:[#allocation3 + $0x88] sm:$0xff]
      %v1046 = vld [vmem:[#allocation3 + $0x90] sm:$0xff]
      %v1047 = vld [vmem:[#allocation3 + $0x98] sm:$0xff]
      %v1048 = vld [vmem:[#allocation3 + $0xa0] sm:$0xff]
      %v1049 = vld [vmem:[#allocation3 + $0xa8] sm:$0xff]
      %v1050 = vld [vmem:[#allocation3 + $0xb0] sm:$0xff]
      %v1051 = vld [vmem:[#allocation3 + $0xb8] sm:$0xff]
      %v1052 = vld [vmem:[#allocation3 + $0xc0] sm:$0xff]
      %v1053 = vld [vmem:[#allocation3 + $0xc8] sm:$0xff]
      %v1054 = vld [vmem:[#allocation3 + $0xd0] sm:$0xff]
      %v1055 = vld [vmem:[#allocation3 + $0xd8] sm:$0xff]
      %v1056 = vld [vmem:[#allocation3 + $0xe0] sm:$0xff]
      %v1057 = vld [vmem:[#allocation3 + $0xe8] sm:$0xff]
      %v1058 = vld [vmem:[#allocation3 + $0xf0] sm:$0xff]
      %v1059 = vld [vmem:[#allocation3 + $0xf8] sm:$0xff]
      %v1060 = vadd.f32 %v1028, %v933
      %v1061 = vadd.f32 %v1029, %v936
      %v1062 = vadd.f32 %v1030, %v939
      %v1063 = vadd.f32 %v1031, %v942
      %v1064 = vadd.f32 %v1032, %v945
      %v1065 = vadd.f32 %v1033, %v948
      %v1066 = vadd.f32 %v1034, %v951
      %v1067 = vadd.f32 %v1035, %v954
      %v1068 = vadd.f32 %v1036, %v957
      %v1069 = vadd.f32 %v1037, %v960
      %v1070 = vadd.f32 %v1038, %v963
      %v1071 = vadd.f32 %v1039, %v966
      %v1072 = vadd.f32 %v1040, %v969
      %v1073 = vadd.f32 %v1041, %v972
      %v1074 = vadd.f32 %v1042, %v975
      %v1075 = vadd.f32 %v1043, %v978
      %v1076 = vadd.f32 %v1044, %v981
      %v1077 = vadd.f32 %v1045, %v984
      %v1078 = vadd.f32 %v1046, %v987
      %v1079 = vadd.f32 %v1047, %v990
      %v1080 = vadd.f32 %v1048, %v993
      %v1081 = vadd.f32 %v1049, %v996
      %v1082 = vadd.f32 %v1050, %v999
      %v1083 = vadd.f32 %v1051, %v1002
      %v1084 = vadd.f32 %v1052, %v1005
      %v1085 = vadd.f32 %v1053, %v1008
      %v1086 = vadd.f32 %v1054, %v1011
      %v1087 = vadd.f32 %v1055, %v1014
      %v1088 = vadd.f32 %v1056, %v1017
      %v1089 = vadd.f32 %v1057, %v1020
      %v1090 = vadd.f32 %v1058, %v1023
      %v1091 = vadd.f32 %v1059, %v1026
      %1092 = vst.msk [vmem:[#allocation3] sm:$0xff] %vm651, %v1060
      %1093 = vst.msk [vmem:[#allocation3 + $0x8] sm:$0xff] %vm651, %v1061
      %1094 = vst.msk [vmem:[#allocation3 + $0x10] sm:$0xff] %vm651, %v1062
      %1095 = vst.msk [vmem:[#allocation3 + $0x18] sm:$0xff] %vm651, %v1063
      %1096 = vst.msk [vmem:[#allocation3 + $0x20] sm:$0xff] %vm651, %v1064
      %1097 = vst.msk [vmem:[#allocation3 + $0x28] sm:$0xff] %vm651, %v1065
      %1098 = vst.msk [vmem:[#allocation3 + $0x30] sm:$0xff] %vm651, %v1066
      %1099 = vst.msk [vmem:[#allocation3 + $0x38] sm:$0xff] %vm651, %v1067
      %1100 = vst.msk [vmem:[#allocation3 + $0x40] sm:$0xff] %vm651, %v1068
      %1101 = vst.msk [vmem:[#allocation3 + $0x48] sm:$0xff] %vm651, %v1069
      %1102 = vst.msk [vmem:[#allocation3 + $0x50] sm:$0xff] %vm651, %v1070
      %1103 = vst.msk [vmem:[#allocation3 + $0x58] sm:$0xff] %vm651, %v1071
      %1104 = vst.msk [vmem:[#allocation3 + $0x60] sm:$0xff] %vm651, %v1072
      %1105 = vst.msk [vmem:[#allocation3 + $0x68] sm:$0xff] %vm651, %v1073
      %1106 = vst.msk [vmem:[#allocation3 + $0x70] sm:$0xff] %vm651, %v1074
      %1107 = vst.msk [vmem:[#allocation3 + $0x78] sm:$0xff] %vm651, %v1075
      %1108 = vst.msk [vmem:[#allocation3 + $0x80] sm:$0xff] %vm651, %v1076
      %1109 = vst.msk [vmem:[#allocation3 + $0x88] sm:$0xff] %vm651, %v1077
      %1110 = vst.msk [vmem:[#allocation3 + $0x90] sm:$0xff] %vm651, %v1078
      %1111 = vst.msk [vmem:[#allocation3 + $0x98] sm:$0xff] %vm651, %v1079
      %1112 = vst.msk [vmem:[#allocation3 + $0xa0] sm:$0xff] %vm651, %v1080
      %1113 = vst.msk [vmem:[#allocation3 + $0xa8] sm:$0xff] %vm651, %v1081
      %1114 = vst.msk [vmem:[#allocation3 + $0xb0] sm:$0xff] %vm651, %v1082
      %1115 = vst.msk [vmem:[#allocation3 + $0xb8] sm:$0xff] %vm651, %v1083
      %1116 = vst.msk [vmem:[#allocation3 + $0xc0] sm:$0xff] %vm651, %v1084
      %1117 = vst.msk [vmem:[#allocation3 + $0xc8] sm:$0xff] %vm651, %v1085
      %1118 = vst.msk [vmem:[#allocation3 + $0xd0] sm:$0xff] %vm651, %v1086
      %1119 = vst.msk [vmem:[#allocation3 + $0xd8] sm:$0xff] %vm651, %v1087
      %1120 = vst.msk [vmem:[#allocation3 + $0xe0] sm:$0xff] %vm651, %v1088
      %1121 = vst.msk [vmem:[#allocation3 + $0xe8] sm:$0xff] %vm651, %v1089
      %1122 = vst.msk [vmem:[#allocation3 + $0xf0] sm:$0xff] %vm651, %v1090
      %1123 = vst.msk [vmem:[#allocation3 + $0xf8] sm:$0xff] %vm651, %v1091
      %v1124 = vld [vmem:[#allocation2 + $0x1] sm:$0xff]
      %v1125 = vld [vmem:[#allocation2 + $0x9] sm:$0xff]
      %v1126 = vld [vmem:[#allocation2 + $0x19] sm:$0xff]
      %v1127 = vld [vmem:[#allocation2 + $0x21] sm:$0xff]
      %v1128 = vld [vmem:[#allocation2 + $0x31] sm:$0xff]
      %v1129 = vld [vmem:[#allocation2 + $0x39] sm:$0xff]
      %v1130 = vld [vmem:[#allocation2 + $0x49] sm:$0xff]
      %v1131 = vld [vmem:[#allocation2 + $0x51] sm:$0xff]
      %v1132 = vld [vmem:[#allocation2 + $0x61] sm:$0xff]
      %v1133 = vld [vmem:[#allocation2 + $0x69] sm:$0xff]
      %v1134 = vld [vmem:[#allocation2 + $0x79] sm:$0xff]
      %v1135 = vld [vmem:[#allocation2 + $0x81] sm:$0xff]
      %v1136 = vld [vmem:[#allocation2 + $0x91] sm:$0xff]
      %v1137 = vld [vmem:[#allocation2 + $0x99] sm:$0xff]
      %v1138 = vld [vmem:[#allocation2 + $0xa9] sm:$0xff]
      %v1139 = vld [vmem:[#allocation2 + $0xb1] sm:$0xff]
      %v1140 = vld [vmem:[#allocation2 + $0xc1] sm:$0xff]
      %v1141 = vld [vmem:[#allocation2 + $0xc9] sm:$0xff]
      %v1142 = vld [vmem:[#allocation2 + $0xd9] sm:$0xff]
      %v1143 = vld [vmem:[#allocation2 + $0xe1] sm:$0xff]
      %v1144 = vld [vmem:[#allocation2 + $0xf1] sm:$0xff]
      %v1145 = vld [vmem:[#allocation2 + $0xf9] sm:$0xff]
      %v1146 = vld [vmem:[#allocation2 + $0x109] sm:$0xff]
      %v1147 = vld [vmem:[#allocation2 + $0x111] sm:$0xff]
      %v1148 = vld [vmem:[#allocation2 + $0x121] sm:$0xff]
      %v1149 = vld [vmem:[#allocation2 + $0x129] sm:$0xff]
      %v1150 = vld [vmem:[#allocation2 + $0x139] sm:$0xff]
      %v1151 = vld [vmem:[#allocation2 + $0x141] sm:$0xff]
      %v1152 = vld [vmem:[#allocation2 + $0x151] sm:$0xff]
      %v1153 = vld [vmem:[#allocation2 + $0x159] sm:$0xff]
      %v1154 = vld [vmem:[#allocation2 + $0x169] sm:$0xff]
      %v1155 = vld [vmem:[#allocation2 + $0x171] sm:$0xff]
      %v1156 = vld [vmem:[#allocation2 + $0x181] sm:$0xff]
      %v1157 = vld [vmem:[#allocation2 + $0x189] sm:$0xff]
      %v1158 = vld [vmem:[#allocation2 + $0x199] sm:$0xff]
      %v1159 = vld [vmem:[#allocation2 + $0x1a1] sm:$0xff]
      %s1160 = scalar_lea.vmem %s2, 4
      %v1161 = vld [vmem:[%s1160] sm:$0xf]
      %v1163 = vsel %vm218, %v1124, 0
      %v1166 = vsel %vm218, %v1125, 0
      %v1169 = vsel %vm218, %v1126, 0
      %v1172 = vsel %vm218, %v1127, 0
      %v1175 = vsel %vm218, %v1128, 0
      %v1178 = vsel %vm218, %v1129, 0
      %v1181 = vsel %vm218, %v1130, 0
      %v1184 = vsel %vm218, %v1131, 0
      %v1187 = vsel %vm218, %v1132, 0
      %v1190 = vsel %vm218, %v1133, 0
      %v1193 = vsel %vm218, %v1134, 0
      %v1196 = vsel %vm218, %v1135, 0
      %v1199 = vsel %vm218, %v1136, 0
      %v1202 = vsel %vm218, %v1137, 0
      %v1205 = vsel %vm218, %v1138, 0
      %v1208 = vsel %vm218, %v1139, 0
      %v1211 = vsel %vm218, %v1140, 0
      %v1214 = vsel %vm218, %v1141, 0
      %v1217 = vsel %vm218, %v1142, 0
      %v1220 = vsel %vm218, %v1143, 0
      %v1223 = vsel %vm218, %v1144, 0
      %v1226 = vsel %vm218, %v1145, 0
      %v1229 = vsel %vm218, %v1146, 0
      %v1232 = vsel %vm218, %v1147, 0
      %v1235 = vsel %vm218, %v1148, 0
      %v1238 = vsel %vm218, %v1149, 0
      %v1241 = vsel %vm218, %v1150, 0
      %v1244 = vsel %vm218, %v1151, 0
      %v1247 = vsel %vm218, %v1152, 0
      %v1250 = vsel %vm218, %v1153, 0
      %v1253 = vsel %vm218, %v1154, 0
      %v1256 = vsel %vm218, %v1155, 0
      %v1259 = vsel %vm222, %v1161, 0
      %1261 = vmatpush.msra.mxu0 0.0
      %1262 = vmatpush.msra.mxu0 0.0
      %1263 = vmatpush.msra.mxu0 0.0
      %1264 = vmatpush.msra.mxu0 0.0
      %1265 = vmatpush.msra.mxu0 0.0
      %1266 = vmatpush.msra.mxu0 0.0
      %1267 = vmatpush.msra.mxu0 0.0
      %1268 = vmatpush.msra.mxu0 0.0
      %1269 = vmatpush.msra.mxu0 0.0
      %1270 = vmatpush.msra.mxu0 0.0
      %1271 = vmatpush.msra.mxu0 0.0
      %1272 = vmatpush.msra.mxu0 0.0
      %1273 = vmatpush.msra.mxu0 0.0
      %1274 = vmatpush.msra.mxu0 0.0
      %1275 = vmatpush.msra.mxu0 0.0
      %1276 = vmatpush.msra.mxu0 %v1259
      %1277 = vmatmul.f32.gmra.mxu0 %v1163
      %v1278 = vpop.f32.mrf.mxu0
      %v1279 = vadd.f32 0.0, %v1278
      %1280 = vmatmul.f32.gmra.mxu0 %v1166
      %v1281 = vpop.f32.mrf.mxu0
      %v1282 = vadd.f32 0.0, %v1281
      %1283 = vmatmul.f32.gmra.mxu0 %v1169
      %v1284 = vpop.f32.mrf.mxu0
      %v1285 = vadd.f32 0.0, %v1284
      %1286 = vmatmul.f32.gmra.mxu0 %v1172
      %v1287 = vpop.f32.mrf.mxu0
      %v1288 = vadd.f32 0.0, %v1287
      %1289 = vmatmul.f32.gmra.mxu0 %v1175
      %v1290 = vpop.f32.mrf.mxu0
      %v1291 = vadd.f32 0.0, %v1290
      %1292 = vmatmul.f32.gmra.mxu0 %v1178
      %v1293 = vpop.f32.mrf.mxu0
      %v1294 = vadd.f32 0.0, %v1293
      %1295 = vmatmul.f32.gmra.mxu0 %v1181
      %v1296 = vpop.f32.mrf.mxu0
      %v1297 = vadd.f32 0.0, %v1296
      %1298 = vmatmul.f32.gmra.mxu0 %v1184
      %v1299 = vpop.f32.mrf.mxu0
      %v1300 = vadd.f32 0.0, %v1299
      %1301 = vmatmul.f32.gmra.mxu0 %v1187
      %v1302 = vpop.f32.mrf.mxu0
      %v1303 = vadd.f32 0.0, %v1302
      %1304 = vmatmul.f32.gmra.mxu0 %v1190
      %v1305 = vpop.f32.mrf.mxu0
      %v1306 = vadd.f32 0.0, %v1305
      %1307 = vmatmul.f32.gmra.mxu0 %v1193
      %v1308 = vpop.f32.mrf.mxu0
      %v1309 = vadd.f32 0.0, %v1308
      %1310 = vmatmul.f32.gmra.mxu0 %v1196
      %v1311 = vpop.f32.mrf.mxu0
      %v1312 = vadd.f32 0.0, %v1311
      %1313 = vmatmul.f32.gmra.mxu0 %v1199
      %v1314 = vpop.f32.mrf.mxu0
      %v1315 = vadd.f32 0.0, %v1314
      %1316 = vmatmul.f32.gmra.mxu0 %v1202
      %v1317 = vpop.f32.mrf.mxu0
      %v1318 = vadd.f32 0.0, %v1317
      %1319 = vmatmul.f32.gmra.mxu0 %v1205
      %v1320 = vpop.f32.mrf.mxu0
      %v1321 = vadd.f32 0.0, %v1320
      %1322 = vmatmul.f32.gmra.mxu0 %v1208
      %v1323 = vpop.f32.mrf.mxu0
      %v1324 = vadd.f32 0.0, %v1323
      %1325 = vmatmul.f32.gmra.mxu0 %v1211
      %v1326 = vpop.f32.mrf.mxu0
      %v1327 = vadd.f32 0.0, %v1326
      %1328 = vmatmul.f32.gmra.mxu0 %v1214
      %v1329 = vpop.f32.mrf.mxu0
      %v1330 = vadd.f32 0.0, %v1329
      %1331 = vmatmul.f32.gmra.mxu0 %v1217
      %v1332 = vpop.f32.mrf.mxu0
      %v1333 = vadd.f32 0.0, %v1332
      %1334 = vmatmul.f32.gmra.mxu0 %v1220
      %v1335 = vpop.f32.mrf.mxu0
      %v1336 = vadd.f32 0.0, %v1335
      %1337 = vmatmul.f32.gmra.mxu0 %v1223
      %v1338 = vpop.f32.mrf.mxu0
      %v1339 = vadd.f32 0.0, %v1338
      %1340 = vmatmul.f32.gmra.mxu0 %v1226
      %v1341 = vpop.f32.mrf.mxu0
      %v1342 = vadd.f32 0.0, %v1341
      %1343 = vmatmul.f32.gmra.mxu0 %v1229
      %v1344 = vpop.f32.mrf.mxu0
      %v1345 = vadd.f32 0.0, %v1344
      %1346 = vmatmul.f32.gmra.mxu0 %v1232
      %v1347 = vpop.f32.mrf.mxu0
      %v1348 = vadd.f32 0.0, %v1347
      %1349 = vmatmul.f32.gmra.mxu0 %v1235
      %v1350 = vpop.f32.mrf.mxu0
      %v1351 = vadd.f32 0.0, %v1350
      %1352 = vmatmul.f32.gmra.mxu0 %v1238
      %v1353 = vpop.f32.mrf.mxu0
      %v1354 = vadd.f32 0.0, %v1353
      %1355 = vmatmul.f32.gmra.mxu0 %v1241
      %v1356 = vpop.f32.mrf.mxu0
      %v1357 = vadd.f32 0.0, %v1356
      %1358 = vmatmul.f32.gmra.mxu0 %v1244
      %v1359 = vpop.f32.mrf.mxu0
      %v1360 = vadd.f32 0.0, %v1359
      %1361 = vmatmul.f32.gmra.mxu0 %v1247
      %v1362 = vpop.f32.mrf.mxu0
      %v1363 = vadd.f32 0.0, %v1362
      %1364 = vmatmul.f32.gmra.mxu0 %v1250
      %v1365 = vpop.f32.mrf.mxu0
      %v1366 = vadd.f32 0.0, %v1365
      %1367 = vmatmul.f32.gmra.mxu0 %v1253
      %v1368 = vpop.f32.mrf.mxu0
      %v1369 = vadd.f32 0.0, %v1368
      %1370 = vmatmul.f32.gmra.mxu0 %v1256
      %v1371 = vpop.f32.mrf.mxu0
      %v1372 = vadd.f32 0.0, %v1371
      %1373 = vdwg.mxu0
      %v1374 = vld [vmem:[#allocation3] sm:$0xff]
      %v1375 = vld [vmem:[#allocation3 + $0x8] sm:$0xff]
      %v1376 = vld [vmem:[#allocation3 + $0x10] sm:$0xff]
      %v1377 = vld [vmem:[#allocation3 + $0x18] sm:$0xff]
      %v1378 = vld [vmem:[#allocation3 + $0x20] sm:$0xff]
      %v1379 = vld [vmem:[#allocation3 + $0x28] sm:$0xff]
      %v1380 = vld [vmem:[#allocation3 + $0x30] sm:$0xff]
      %v1381 = vld [vmem:[#allocation3 + $0x38] sm:$0xff]
      %v1382 = vld [vmem:[#allocation3 + $0x40] sm:$0xff]
      %v1383 = vld [vmem:[#allocation3 + $0x48] sm:$0xff]
      %v1384 = vld [vmem:[#allocation3 + $0x50] sm:$0xff]
      %v1385 = vld [vmem:[#allocation3 + $0x58] sm:$0xff]
      %v1386 = vld [vmem:[#allocation3 + $0x60] sm:$0xff]
      %v1387 = vld [vmem:[#allocation3 + $0x68] sm:$0xff]
      %v1388 = vld [vmem:[#allocation3 + $0x70] sm:$0xff]
      %v1389 = vld [vmem:[#allocation3 + $0x78] sm:$0xff]
      %v1390 = vld [vmem:[#allocation3 + $0x80] sm:$0xff]
      %v1391 = vld [vmem:[#allocation3 + $0x88] sm:$0xff]
      %v1392 = vld [vmem:[#allocation3 + $0x90] sm:$0xff]
      %v1393 = vld [vmem:[#allocation3 + $0x98] sm:$0xff]
      %v1394 = vld [vmem:[#allocation3 + $0xa0] sm:$0xff]
      %v1395 = vld [vmem:[#allocation3 + $0xa8] sm:$0xff]
      %v1396 = vld [vmem:[#allocation3 + $0xb0] sm:$0xff]
      %v1397 = vld [vmem:[#allocation3 + $0xb8] sm:$0xff]
      %v1398 = vld [vmem:[#allocation3 + $0xc0] sm:$0xff]
      %v1399 = vld [vmem:[#allocation3 + $0xc8] sm:$0xff]
      %v1400 = vld [vmem:[#allocation3 + $0xd0] sm:$0xff]
      %v1401 = vld [vmem:[#allocation3 + $0xd8] sm:$0xff]
      %v1402 = vld [vmem:[#allocation3 + $0xe0] sm:$0xff]
      %v1403 = vld [vmem:[#allocation3 + $0xe8] sm:$0xff]
      %v1404 = vld [vmem:[#allocation3 + $0xf0] sm:$0xff]
      %v1405 = vld [vmem:[#allocation3 + $0xf8] sm:$0xff]
      %v1406 = vadd.f32 %v1374, %v1279
      %v1407 = vadd.f32 %v1375, %v1282
      %v1408 = vadd.f32 %v1376, %v1285
      %v1409 = vadd.f32 %v1377, %v1288
      %v1410 = vadd.f32 %v1378, %v1291
      %v1411 = vadd.f32 %v1379, %v1294
      %v1412 = vadd.f32 %v1380, %v1297
      %v1413 = vadd.f32 %v1381, %v1300
      %v1414 = vadd.f32 %v1382, %v1303
      %v1415 = vadd.f32 %v1383, %v1306
      %v1416 = vadd.f32 %v1384, %v1309
      %v1417 = vadd.f32 %v1385, %v1312
      %v1418 = vadd.f32 %v1386, %v1315
      %v1419 = vadd.f32 %v1387, %v1318
      %v1420 = vadd.f32 %v1388, %v1321
      %v1421 = vadd.f32 %v1389, %v1324
      %v1422 = vadd.f32 %v1390, %v1327
      %v1423 = vadd.f32 %v1391, %v1330
      %v1424 = vadd.f32 %v1392, %v1333
      %v1425 = vadd.f32 %v1393, %v1336
      %v1426 = vadd.f32 %v1394, %v1339
      %v1427 = vadd.f32 %v1395, %v1342
      %v1428 = vadd.f32 %v1396, %v1345
      %v1429 = vadd.f32 %v1397, %v1348
      %v1430 = vadd.f32 %v1398, %v1351
      %v1431 = vadd.f32 %v1399, %v1354
      %v1432 = vadd.f32 %v1400, %v1357
      %v1433 = vadd.f32 %v1401, %v1360
      %v1434 = vadd.f32 %v1402, %v1363
      %v1435 = vadd.f32 %v1403, %v1366
      %v1436 = vadd.f32 %v1404, %v1369
      %v1437 = vadd.f32 %v1405, %v1372
      %1438 = vst.msk [vmem:[#allocation3] sm:$0xff] %vm651, %v1406
      %1439 = vst.msk [vmem:[#allocation3 + $0x8] sm:$0xff] %vm651, %v1407
      %1440 = vst.msk [vmem:[#allocation3 + $0x10] sm:$0xff] %vm651, %v1408
      %1441 = vst.msk [vmem:[#allocation3 + $0x18] sm:$0xff] %vm651, %v1409
      %1442 = vst.msk [vmem:[#allocation3 + $0x20] sm:$0xff] %vm651, %v1410
      %1443 = vst.msk [vmem:[#allocation3 + $0x28] sm:$0xff] %vm651, %v1411
      %1444 = vst.msk [vmem:[#allocation3 + $0x30] sm:$0xff] %vm651, %v1412
      %1445 = vst.msk [vmem:[#allocation3 + $0x38] sm:$0xff] %vm651, %v1413
      %1446 = vst.msk [vmem:[#allocation3 + $0x40] sm:$0xff] %vm651, %v1414
      %1447 = vst.msk [vmem:[#allocation3 + $0x48] sm:$0xff] %vm651, %v1415
      %1448 = vst.msk [vmem:[#allocation3 + $0x50] sm:$0xff] %vm651, %v1416
      %1449 = vst.msk [vmem:[#allocation3 + $0x58] sm:$0xff] %vm651, %v1417
      %1450 = vst.msk [vmem:[#allocation3 + $0x60] sm:$0xff] %vm651, %v1418
      %1451 = vst.msk [vmem:[#allocation3 + $0x68] sm:$0xff] %vm651, %v1419
      %1452 = vst.msk [vmem:[#allocation3 + $0x70] sm:$0xff] %vm651, %v1420
      %1453 = vst.msk [vmem:[#allocation3 + $0x78] sm:$0xff] %vm651, %v1421
      %1454 = vst.msk [vmem:[#allocation3 + $0x80] sm:$0xff] %vm651, %v1422
      %1455 = vst.msk [vmem:[#allocation3 + $0x88] sm:$0xff] %vm651, %v1423
      %1456 = vst.msk [vmem:[#allocation3 + $0x90] sm:$0xff] %vm651, %v1424
      %1457 = vst.msk [vmem:[#allocation3 + $0x98] sm:$0xff] %vm651, %v1425
      %1458 = vst.msk [vmem:[#allocation3 + $0xa0] sm:$0xff] %vm651, %v1426
      %1459 = vst.msk [vmem:[#allocation3 + $0xa8] sm:$0xff] %vm651, %v1427
      %1460 = vst.msk [vmem:[#allocation3 + $0xb0] sm:$0xff] %vm651, %v1428
      %1461 = vst.msk [vmem:[#allocation3 + $0xb8] sm:$0xff] %vm651, %v1429
      %1462 = vst.msk [vmem:[#allocation3 + $0xc0] sm:$0xff] %vm651, %v1430
      %1463 = vst.msk [vmem:[#allocation3 + $0xc8] sm:$0xff] %vm651, %v1431
      %1464 = vst.msk [vmem:[#allocation3 + $0xd0] sm:$0xff] %vm651, %v1432
      %1465 = vst.msk [vmem:[#allocation3 + $0xd8] sm:$0xff] %vm651, %v1433
      %1466 = vst.msk [vmem:[#allocation3 + $0xe0] sm:$0xff] %vm651, %v1434
      %1467 = vst.msk [vmem:[#allocation3 + $0xe8] sm:$0xff] %vm651, %v1435
      %1468 = vst.msk [vmem:[#allocation3 + $0xf0] sm:$0xff] %vm651, %v1436
      %1469 = vst.msk [vmem:[#allocation3 + $0xf8] sm:$0xff] %vm651, %v1437
      %s1470 = scalar_lea.vmem %s2, 16
      %v1471 = vld [vmem:[%s1470] sm:$0xf]
      %v1473 = vsel %vm218, %v1156, 0
      %v1476 = vsel %vm218, %v1157, 0
      %v1479 = vsel %vm222, %v1471, 0
      %1481 = vmatpush.msra.mxu0 0.0
      %1482 = vmatpush.msra.mxu0 0.0
      %1483 = vmatpush.msra.mxu0 0.0
      %1484 = vmatpush.msra.mxu0 0.0
      %1485 = vmatpush.msra.mxu0 0.0
      %1486 = vmatpush.msra.mxu0 0.0
      %1487 = vmatpush.msra.mxu0 0.0
      %1488 = vmatpush.msra.mxu0 0.0
      %1489 = vmatpush.msra.mxu0 0.0
      %1490 = vmatpush.msra.mxu0 0.0
      %1491 = vmatpush.msra.mxu0 0.0
      %1492 = vmatpush.msra.mxu0 0.0
      %1493 = vmatpush.msra.mxu0 0.0
      %1494 = vmatpush.msra.mxu0 0.0
      %1495 = vmatpush.msra.mxu0 0.0
      %1496 = vmatpush.msra.mxu0 %v1479
      %1497 = vmatmul.f32.gmra.mxu0 %v1169
      %v1498 = vpop.f32.mrf.mxu0
      %v1499 = vadd.f32 0.0, %v1498
      %1500 = vmatmul.f32.gmra.mxu0 %v1172
      %v1501 = vpop.f32.mrf.mxu0
      %v1502 = vadd.f32 0.0, %v1501
      %1503 = vmatmul.f32.gmra.mxu0 %v1175
      %v1504 = vpop.f32.mrf.mxu0
      %v1505 = vadd.f32 0.0, %v1504
      %1506 = vmatmul.f32.gmra.mxu0 %v1178
      %v1507 = vpop.f32.mrf.mxu0
      %v1508 = vadd.f32 0.0, %v1507
      %1509 = vmatmul.f32.gmra.mxu0 %v1181
      %v1510 = vpop.f32.mrf.mxu0
      %v1511 = vadd.f32 0.0, %v1510
      %1512 = vmatmul.f32.gmra.mxu0 %v1184
      %v1513 = vpop.f32.mrf.mxu0
      %v1514 = vadd.f32 0.0, %v1513
      %1515 = vmatmul.f32.gmra.mxu0 %v1187
      %v1516 = vpop.f32.mrf.mxu0
      %v1517 = vadd.f32 0.0, %v1516
      %1518 = vmatmul.f32.gmra.mxu0 %v1190
      %v1519 = vpop.f32.mrf.mxu0
      %v1520 = vadd.f32 0.0, %v1519
      %1521 = vmatmul.f32.gmra.mxu0 %v1193
      %v1522 = vpop.f32.mrf.mxu0
      %v1523 = vadd.f32 0.0, %v1522
      %1524 = vmatmul.f32.gmra.mxu0 %v1196
      %v1525 = vpop.f32.mrf.mxu0
      %v1526 = vadd.f32 0.0, %v1525
      %1527 = vmatmul.f32.gmra.mxu0 %v1199
      %v1528 = vpop.f32.mrf.mxu0
      %v1529 = vadd.f32 0.0, %v1528
      %1530 = vmatmul.f32.gmra.mxu0 %v1202
      %v1531 = vpop.f32.mrf.mxu0
      %v1532 = vadd.f32 0.0, %v1531
      %1533 = vmatmul.f32.gmra.mxu0 %v1205
      %v1534 = vpop.f32.mrf.mxu0
      %v1535 = vadd.f32 0.0, %v1534
      %1536 = vmatmul.f32.gmra.mxu0 %v1208
      %v1537 = vpop.f32.mrf.mxu0
      %v1538 = vadd.f32 0.0, %v1537
      %1539 = vmatmul.f32.gmra.mxu0 %v1211
      %v1540 = vpop.f32.mrf.mxu0
      %v1541 = vadd.f32 0.0, %v1540
      %1542 = vmatmul.f32.gmra.mxu0 %v1214
      %v1543 = vpop.f32.mrf.mxu0
      %v1544 = vadd.f32 0.0, %v1543
      %1545 = vmatmul.f32.gmra.mxu0 %v1217
      %v1546 = vpop.f32.mrf.mxu0
      %v1547 = vadd.f32 0.0, %v1546
      %1548 = vmatmul.f32.gmra.mxu0 %v1220
      %v1549 = vpop.f32.mrf.mxu0
      %v1550 = vadd.f32 0.0, %v1549
      %1551 = vmatmul.f32.gmra.mxu0 %v1223
      %v1552 = vpop.f32.mrf.mxu0
      %v1553 = vadd.f32 0.0, %v1552
      %1554 = vmatmul.f32.gmra.mxu0 %v1226
      %v1555 = vpop.f32.mrf.mxu0
      %v1556 = vadd.f32 0.0, %v1555
      %1557 = vmatmul.f32.gmra.mxu0 %v1229
      %v1558 = vpop.f32.mrf.mxu0
      %v1559 = vadd.f32 0.0, %v1558
      %1560 = vmatmul.f32.gmra.mxu0 %v1232
      %v1561 = vpop.f32.mrf.mxu0
      %v1562 = vadd.f32 0.0, %v1561
      %1563 = vmatmul.f32.gmra.mxu0 %v1235
      %v1564 = vpop.f32.mrf.mxu0
      %v1565 = vadd.f32 0.0, %v1564
      %1566 = vmatmul.f32.gmra.mxu0 %v1238
      %v1567 = vpop.f32.mrf.mxu0
      %v1568 = vadd.f32 0.0, %v1567
      %1569 = vmatmul.f32.gmra.mxu0 %v1241
      %v1570 = vpop.f32.mrf.mxu0
      %v1571 = vadd.f32 0.0, %v1570
      %1572 = vmatmul.f32.gmra.mxu0 %v1244
      %v1573 = vpop.f32.mrf.mxu0
      %v1574 = vadd.f32 0.0, %v1573
      %1575 = vmatmul.f32.gmra.mxu0 %v1247
      %v1576 = vpop.f32.mrf.mxu0
      %v1577 = vadd.f32 0.0, %v1576
      %1578 = vmatmul.f32.gmra.mxu0 %v1250
      %v1579 = vpop.f32.mrf.mxu0
      %v1580 = vadd.f32 0.0, %v1579
      %1581 = vmatmul.f32.gmra.mxu0 %v1253
      %v1582 = vpop.f32.mrf.mxu0
      %v1583 = vadd.f32 0.0, %v1582
      %1584 = vmatmul.f32.gmra.mxu0 %v1256
      %v1585 = vpop.f32.mrf.mxu0
      %v1586 = vadd.f32 0.0, %v1585
      %1587 = vmatmul.f32.gmra.mxu0 %v1473
      %v1588 = vpop.f32.mrf.mxu0
      %v1589 = vadd.f32 0.0, %v1588
      %1590 = vmatmul.f32.gmra.mxu0 %v1476
      %v1591 = vpop.f32.mrf.mxu0
      %v1592 = vadd.f32 0.0, %v1591
      %1593 = vdwg.mxu0
      %v1594 = vld [vmem:[#allocation3] sm:$0xff]
      %v1595 = vld [vmem:[#allocation3 + $0x8] sm:$0xff]
      %v1596 = vld [vmem:[#allocation3 + $0x10] sm:$0xff]
      %v1597 = vld [vmem:[#allocation3 + $0x18] sm:$0xff]
      %v1598 = vld [vmem:[#allocation3 + $0x20] sm:$0xff]
      %v1599 = vld [vmem:[#allocation3 + $0x28] sm:$0xff]
      %v1600 = vld [vmem:[#allocation3 + $0x30] sm:$0xff]
      %v1601 = vld [vmem:[#allocation3 + $0x38] sm:$0xff]
      %v1602 = vld [vmem:[#allocation3 + $0x40] sm:$0xff]
      %v1603 = vld [vmem:[#allocation3 + $0x48] sm:$0xff]
      %v1604 = vld [vmem:[#allocation3 + $0x50] sm:$0xff]
      %v1605 = vld [vmem:[#allocation3 + $0x58] sm:$0xff]
      %v1606 = vld [vmem:[#allocation3 + $0x60] sm:$0xff]
      %v1607 = vld [vmem:[#allocation3 + $0x68] sm:$0xff]
      %v1608 = vld [vmem:[#allocation3 + $0x70] sm:$0xff]
      %v1609 = vld [vmem:[#allocation3 + $0x78] sm:$0xff]
      %v1610 = vld [vmem:[#allocation3 + $0x80] sm:$0xff]
      %v1611 = vld [vmem:[#allocation3 + $0x88] sm:$0xff]
      %v1612 = vld [vmem:[#allocation3 + $0x90] sm:$0xff]
      %v1613 = vld [vmem:[#allocation3 + $0x98] sm:$0xff]
      %v1614 = vld [vmem:[#allocation3 + $0xa0] sm:$0xff]
      %v1615 = vld [vmem:[#allocation3 + $0xa8] sm:$0xff]
      %v1616 = vld [vmem:[#allocation3 + $0xb0] sm:$0xff]
      %v1617 = vld [vmem:[#allocation3 + $0xb8] sm:$0xff]
      %v1618 = vld [vmem:[#allocation3 + $0xc0] sm:$0xff]
      %v1619 = vld [vmem:[#allocation3 + $0xc8] sm:$0xff]
      %v1620 = vld [vmem:[#allocation3 + $0xd0] sm:$0xff]
      %v1621 = vld [vmem:[#allocation3 + $0xd8] sm:$0xff]
      %v1622 = vld [vmem:[#allocation3 + $0xe0] sm:$0xff]
      %v1623 = vld [vmem:[#allocation3 + $0xe8] sm:$0xff]
      %v1624 = vld [vmem:[#allocation3 + $0xf0] sm:$0xff]
      %v1625 = vld [vmem:[#allocation3 + $0xf8] sm:$0xff]
      %v1626 = vadd.f32 %v1594, %v1499
      %v1627 = vadd.f32 %v1595, %v1502
      %v1628 = vadd.f32 %v1596, %v1505
      %v1629 = vadd.f32 %v1597, %v1508
      %v1630 = vadd.f32 %v1598, %v1511
      %v1631 = vadd.f32 %v1599, %v1514
      %v1632 = vadd.f32 %v1600, %v1517
      %v1633 = vadd.f32 %v1601, %v1520
      %v1634 = vadd.f32 %v1602, %v1523
      %v1635 = vadd.f32 %v1603, %v1526
      %v1636 = vadd.f32 %v1604, %v1529
      %v1637 = vadd.f32 %v1605, %v1532
      %v1638 = vadd.f32 %v1606, %v1535
      %v1639 = vadd.f32 %v1607, %v1538
      %v1640 = vadd.f32 %v1608, %v1541
      %v1641 = vadd.f32 %v1609, %v1544
      %v1642 = vadd.f32 %v1610, %v1547
      %v1643 = vadd.f32 %v1611, %v1550
      %v1644 = vadd.f32 %v1612, %v1553
      %v1645 = vadd.f32 %v1613, %v1556
      %v1646 = vadd.f32 %v1614, %v1559
      %v1647 = vadd.f32 %v1615, %v1562
      %v1648 = vadd.f32 %v1616, %v1565
      %v1649 = vadd.f32 %v1617, %v1568
      %v1650 = vadd.f32 %v1618, %v1571
      %v1651 = vadd.f32 %v1619, %v1574
      %v1652 = vadd.f32 %v1620, %v1577
      %v1653 = vadd.f32 %v1621, %v1580
      %v1654 = vadd.f32 %v1622, %v1583
      %v1655 = vadd.f32 %v1623, %v1586
      %v1656 = vadd.f32 %v1624, %v1589
      %v1657 = vadd.f32 %v1625, %v1592
      %1658 = vst.msk [vmem:[#allocation3] sm:$0xff] %vm651, %v1626
      %1659 = vst.msk [vmem:[#allocation3 + $0x8] sm:$0xff] %vm651, %v1627
      %1660 = vst.msk [vmem:[#allocation3 + $0x10] sm:$0xff] %vm651, %v1628
      %1661 = vst.msk [vmem:[#allocation3 + $0x18] sm:$0xff] %vm651, %v1629
      %1662 = vst.msk [vmem:[#allocation3 + $0x20] sm:$0xff] %vm651, %v1630
      %1663 = vst.msk [vmem:[#allocation3 + $0x28] sm:$0xff] %vm651, %v1631
      %1664 = vst.msk [vmem:[#allocation3 + $0x30] sm:$0xff] %vm651, %v1632
      %1665 = vst.msk [vmem:[#allocation3 + $0x38] sm:$0xff] %vm651, %v1633
      %1666 = vst.msk [vmem:[#allocation3 + $0x40] sm:$0xff] %vm651, %v1634
      %1667 = vst.msk [vmem:[#allocation3 + $0x48] sm:$0xff] %vm651, %v1635
      %1668 = vst.msk [vmem:[#allocation3 + $0x50] sm:$0xff] %vm651, %v1636
      %1669 = vst.msk [vmem:[#allocation3 + $0x58] sm:$0xff] %vm651, %v1637
      %1670 = vst.msk [vmem:[#allocation3 + $0x60] sm:$0xff] %vm651, %v1638
      %1671 = vst.msk [vmem:[#allocation3 + $0x68] sm:$0xff] %vm651, %v1639
      %1672 = vst.msk [vmem:[#allocation3 + $0x70] sm:$0xff] %vm651, %v1640
      %1673 = vst.msk [vmem:[#allocation3 + $0x78] sm:$0xff] %vm651, %v1641
      %1674 = vst.msk [vmem:[#allocation3 + $0x80] sm:$0xff] %vm651, %v1642
      %1675 = vst.msk [vmem:[#allocation3 + $0x88] sm:$0xff] %vm651, %v1643
      %1676 = vst.msk [vmem:[#allocation3 + $0x90] sm:$0xff] %vm651, %v1644
      %1677 = vst.msk [vmem:[#allocation3 + $0x98] sm:$0xff] %vm651, %v1645
      %1678 = vst.msk [vmem:[#allocation3 + $0xa0] sm:$0xff] %vm651, %v1646
      %1679 = vst.msk [vmem:[#allocation3 + $0xa8] sm:$0xff] %vm651, %v1647
      %1680 = vst.msk [vmem:[#allocation3 + $0xb0] sm:$0xff] %vm651, %v1648
      %1681 = vst.msk [vmem:[#allocation3 + $0xb8] sm:$0xff] %vm651, %v1649
      %1682 = vst.msk [vmem:[#allocation3 + $0xc0] sm:$0xff] %vm651, %v1650
      %1683 = vst.msk [vmem:[#allocation3 + $0xc8] sm:$0xff] %vm651, %v1651
      %1684 = vst.msk [vmem:[#allocation3 + $0xd0] sm:$0xff] %vm651, %v1652
      %1685 = vst.msk [vmem:[#allocation3 + $0xd8] sm:$0xff] %vm651, %v1653
      %1686 = vst.msk [vmem:[#allocation3 + $0xe0] sm:$0xff] %vm651, %v1654
      %1687 = vst.msk [vmem:[#allocation3 + $0xe8] sm:$0xff] %vm651, %v1655
      %1688 = vst.msk [vmem:[#allocation3 + $0xf0] sm:$0xff] %vm651, %v1656
      %1689 = vst.msk [vmem:[#allocation3 + $0xf8] sm:$0xff] %vm651, %v1657
      %s1690 = scalar_lea.vmem %s2, 28
      %v1691 = vld [vmem:[%s1690] sm:$0xf]
      %v1693 = vsel %vm218, %v1158, 0
      %v1696 = vsel %vm218, %v1159, 0
      %v1699 = vsel %vm222, %v1691, 0
      %1701 = vmatpush.msra.mxu0 0.0
      %1702 = vmatpush.msra.mxu0 0.0
      %1703 = vmatpush.msra.mxu0 0.0
      %1704 = vmatpush.msra.mxu0 0.0
      %1705 = vmatpush.msra.mxu0 0.0
      %1706 = vmatpush.msra.mxu0 0.0
      %1707 = vmatpush.msra.mxu0 0.0
      %1708 = vmatpush.msra.mxu0 0.0
      %1709 = vmatpush.msra.mxu0 0.0
      %1710 = vmatpush.msra.mxu0 0.0
      %1711 = vmatpush.msra.mxu0 0.0
      %1712 = vmatpush.msra.mxu0 0.0
      %1713 = vmatpush.msra.mxu0 0.0
      %1714 = vmatpush.msra.mxu0 0.0
      %1715 = vmatpush.msra.mxu0 0.0
      %1716 = vmatpush.msra.mxu0 %v1699
      %1717 = vmatmul.f32.gmra.mxu0 %v1175
      %v1718 = vpop.f32.mrf.mxu0
      %v1719 = vadd.f32 0.0, %v1718
      %1720 = vmatmul.f32.gmra.mxu0 %v1178
      %v1721 = vpop.f32.mrf.mxu0
      %v1722 = vadd.f32 0.0, %v1721
      %1723 = vmatmul.f32.gmra.mxu0 %v1181
      %v1724 = vpop.f32.mrf.mxu0
      %v1725 = vadd.f32 0.0, %v1724
      %1726 = vmatmul.f32.gmra.mxu0 %v1184
      %v1727 = vpop.f32.mrf.mxu0
      %v1728 = vadd.f32 0.0, %v1727
      %1729 = vmatmul.f32.gmra.mxu0 %v1187
      %v1730 = vpop.f32.mrf.mxu0
      %v1731 = vadd.f32 0.0, %v1730
      %1732 = vmatmul.f32.gmra.mxu0 %v1190
      %v1733 = vpop.f32.mrf.mxu0
      %v1734 = vadd.f32 0.0, %v1733
      %1735 = vmatmul.f32.gmra.mxu0 %v1193
      %v1736 = vpop.f32.mrf.mxu0
      %v1737 = vadd.f32 0.0, %v1736
      %1738 = vmatmul.f32.gmra.mxu0 %v1196
      %v1739 = vpop.f32.mrf.mxu0
      %v1740 = vadd.f32 0.0, %v1739
      %1741 = vmatmul.f32.gmra.mxu0 %v1199
      %v1742 = vpop.f32.mrf.mxu0
      %v1743 = vadd.f32 0.0, %v1742
      %1744 = vmatmul.f32.gmra.mxu0 %v1202
      %v1745 = vpop.f32.mrf.mxu0
      %v1746 = vadd.f32 0.0, %v1745
      %1747 = vmatmul.f32.gmra.mxu0 %v1205
      %v1748 = vpop.f32.mrf.mxu0
      %v1749 = vadd.f32 0.0, %v1748
      %1750 = vmatmul.f32.gmra.mxu0 %v1208
      %v1751 = vpop.f32.mrf.mxu0
      %v1752 = vadd.f32 0.0, %v1751
      %1753 = vmatmul.f32.gmra.mxu0 %v1211
      %v1754 = vpop.f32.mrf.mxu0
      %v1755 = vadd.f32 0.0, %v1754
      %1756 = vmatmul.f32.gmra.mxu0 %v1214
      %v1757 = vpop.f32.mrf.mxu0
      %v1758 = vadd.f32 0.0, %v1757
      %1759 = vmatmul.f32.gmra.mxu0 %v1217
      %v1760 = vpop.f32.mrf.mxu0
      %v1761 = vadd.f32 0.0, %v1760
      %1762 = vmatmul.f32.gmra.mxu0 %v1220
      %v1763 = vpop.f32.mrf.mxu0
      %v1764 = vadd.f32 0.0, %v1763
      %1765 = vmatmul.f32.gmra.mxu0 %v1223
      %v1766 = vpop.f32.mrf.mxu0
      %v1767 = vadd.f32 0.0, %v1766
      %1768 = vmatmul.f32.gmra.mxu0 %v1226
      %v1769 = vpop.f32.mrf.mxu0
      %v1770 = vadd.f32 0.0, %v1769
      %1771 = vmatmul.f32.gmra.mxu0 %v1229
      %v1772 = vpop.f32.mrf.mxu0
      %v1773 = vadd.f32 0.0, %v1772
      %1774 = vmatmul.f32.gmra.mxu0 %v1232
      %v1775 = vpop.f32.mrf.mxu0
      %v1776 = vadd.f32 0.0, %v1775
      %1777 = vmatmul.f32.gmra.mxu0 %v1235
      %v1778 = vpop.f32.mrf.mxu0
      %v1779 = vadd.f32 0.0, %v1778
      %1780 = vmatmul.f32.gmra.mxu0 %v1238
      %v1781 = vpop.f32.mrf.mxu0
      %v1782 = vadd.f32 0.0, %v1781
      %1783 = vmatmul.f32.gmra.mxu0 %v1241
      %v1784 = vpop.f32.mrf.mxu0
      %v1785 = vadd.f32 0.0, %v1784
      %1786 = vmatmul.f32.gmra.mxu0 %v1244
      %v1787 = vpop.f32.mrf.mxu0
      %v1788 = vadd.f32 0.0, %v1787
      %1789 = vmatmul.f32.gmra.mxu0 %v1247
      %v1790 = vpop.f32.mrf.mxu0
      %v1791 = vadd.f32 0.0, %v1790
      %1792 = vmatmul.f32.gmra.mxu0 %v1250
      %v1793 = vpop.f32.mrf.mxu0
      %v1794 = vadd.f32 0.0, %v1793
      %1795 = vmatmul.f32.gmra.mxu0 %v1253
      %v1796 = vpop.f32.mrf.mxu0
      %v1797 = vadd.f32 0.0, %v1796
      %1798 = vmatmul.f32.gmra.mxu0 %v1256
      %v1799 = vpop.f32.mrf.mxu0
      %v1800 = vadd.f32 0.0, %v1799
      %1801 = vmatmul.f32.gmra.mxu0 %v1473
      %v1802 = vpop.f32.mrf.mxu0
      %v1803 = vadd.f32 0.0, %v1802
      %1804 = vmatmul.f32.gmra.mxu0 %v1476
      %v1805 = vpop.f32.mrf.mxu0
      %v1806 = vadd.f32 0.0, %v1805
      %1807 = vmatmul.f32.gmra.mxu0 %v1693
      %v1808 = vpop.f32.mrf.mxu0
      %v1809 = vadd.f32 0.0, %v1808
      %1810 = vmatmul.f32.gmra.mxu0 %v1696
      %v1811 = vpop.f32.mrf.mxu0
      %v1812 = vadd.f32 0.0, %v1811
      %1813 = vdwg.mxu0
      %v1814 = vld [vmem:[#allocation3] sm:$0xff]
      %v1815 = vld [vmem:[#allocation3 + $0x8] sm:$0xff]
      %v1816 = vld [vmem:[#allocation3 + $0x10] sm:$0xff]
      %v1817 = vld [vmem:[#allocation3 + $0x18] sm:$0xff]
      %v1818 = vld [vmem:[#allocation3 + $0x20] sm:$0xff]
      %v1819 = vld [vmem:[#allocation3 + $0x28] sm:$0xff]
      %v1820 = vld [vmem:[#allocation3 + $0x30] sm:$0xff]
      %v1821 = vld [vmem:[#allocation3 + $0x38] sm:$0xff]
      %v1822 = vld [vmem:[#allocation3 + $0x40] sm:$0xff]
      %v1823 = vld [vmem:[#allocation3 + $0x48] sm:$0xff]
      %v1824 = vld [vmem:[#allocation3 + $0x50] sm:$0xff]
      %v1825 = vld [vmem:[#allocation3 + $0x58] sm:$0xff]
      %v1826 = vld [vmem:[#allocation3 + $0x60] sm:$0xff]
      %v1827 = vld [vmem:[#allocation3 + $0x68] sm:$0xff]
      %v1828 = vld [vmem:[#allocation3 + $0x70] sm:$0xff]
      %v1829 = vld [vmem:[#allocation3 + $0x78] sm:$0xff]
      %v1830 = vld [vmem:[#allocation3 + $0x80] sm:$0xff]
      %v1831 = vld [vmem:[#allocation3 + $0x88] sm:$0xff]
      %v1832 = vld [vmem:[#allocation3 + $0x90] sm:$0xff]
      %v1833 = vld [vmem:[#allocation3 + $0x98] sm:$0xff]
      %v1834 = vld [vmem:[#allocation3 + $0xa0] sm:$0xff]
      %v1835 = vld [vmem:[#allocation3 + $0xa8] sm:$0xff]
      %v1836 = vld [vmem:[#allocation3 + $0xb0] sm:$0xff]
      %v1837 = vld [vmem:[#allocation3 + $0xb8] sm:$0xff]
      %v1838 = vld [vmem:[#allocation3 + $0xc0] sm:$0xff]
      %v1839 = vld [vmem:[#allocation3 + $0xc8] sm:$0xff]
      %v1840 = vld [vmem:[#allocation3 + $0xd0] sm:$0xff]
      %v1841 = vld [vmem:[#allocation3 + $0xd8] sm:$0xff]
      %v1842 = vld [vmem:[#allocation3 + $0xe0] sm:$0xff]
      %v1843 = vld [vmem:[#allocation3 + $0xe8] sm:$0xff]
      %v1844 = vld [vmem:[#allocation3 + $0xf0] sm:$0xff]
      %v1845 = vld [vmem:[#allocation3 + $0xf8] sm:$0xff]
      %v1846 = vadd.f32 %v1814, %v1719
      %v1847 = vadd.f32 %v1815, %v1722
      %v1848 = vadd.f32 %v1816, %v1725
      %v1849 = vadd.f32 %v1817, %v1728
      %v1850 = vadd.f32 %v1818, %v1731
      %v1851 = vadd.f32 %v1819, %v1734
      %v1852 = vadd.f32 %v1820, %v1737
      %v1853 = vadd.f32 %v1821, %v1740
      %v1854 = vadd.f32 %v1822, %v1743
      %v1855 = vadd.f32 %v1823, %v1746
      %v1856 = vadd.f32 %v1824, %v1749
      %v1857 = vadd.f32 %v1825, %v1752
      %v1858 = vadd.f32 %v1826, %v1755
      %v1859 = vadd.f32 %v1827, %v1758
      %v1860 = vadd.f32 %v1828, %v1761
      %v1861 = vadd.f32 %v1829, %v1764
      %v1862 = vadd.f32 %v1830, %v1767
      %v1863 = vadd.f32 %v1831, %v1770
      %v1864 = vadd.f32 %v1832, %v1773
      %v1865 = vadd.f32 %v1833, %v1776
      %v1866 = vadd.f32 %v1834, %v1779
      %v1867 = vadd.f32 %v1835, %v1782
      %v1868 = vadd.f32 %v1836, %v1785
      %v1869 = vadd.f32 %v1837, %v1788
      %v1870 = vadd.f32 %v1838, %v1791
      %v1871 = vadd.f32 %v1839, %v1794
      %v1872 = vadd.f32 %v1840, %v1797
      %v1873 = vadd.f32 %v1841, %v1800
      %v1874 = vadd.f32 %v1842, %v1803
      %v1875 = vadd.f32 %v1843, %v1806
      %v1876 = vadd.f32 %v1844, %v1809
      %v1877 = vadd.f32 %v1845, %v1812
      %1878 = vst.msk [vmem:[#allocation3] sm:$0xff] %vm651, %v1846
      %1879 = vst.msk [vmem:[#allocation3 + $0x8] sm:$0xff] %vm651, %v1847
      %1880 = vst.msk [vmem:[#allocation3 + $0x10] sm:$0xff] %vm651, %v1848
      %1881 = vst.msk [vmem:[#allocation3 + $0x18] sm:$0xff] %vm651, %v1849
      %1882 = vst.msk [vmem:[#allocation3 + $0x20] sm:$0xff] %vm651, %v1850
      %1883 = vst.msk [vmem:[#allocation3 + $0x28] sm:$0xff] %vm651, %v1851
      %1884 = vst.msk [vmem:[#allocation3 + $0x30] sm:$0xff] %vm651, %v1852
      %1885 = vst.msk [vmem:[#allocation3 + $0x38] sm:$0xff] %vm651, %v1853
      %1886 = vst.msk [vmem:[#allocation3 + $0x40] sm:$0xff] %vm651, %v1854
      %1887 = vst.msk [vmem:[#allocation3 + $0x48] sm:$0xff] %vm651, %v1855
      %1888 = vst.msk [vmem:[#allocation3 + $0x50] sm:$0xff] %vm651, %v1856
      %1889 = vst.msk [vmem:[#allocation3 + $0x58] sm:$0xff] %vm651, %v1857
      %1890 = vst.msk [vmem:[#allocation3 + $0x60] sm:$0xff] %vm651, %v1858
      %1891 = vst.msk [vmem:[#allocation3 + $0x68] sm:$0xff] %vm651, %v1859
      %1892 = vst.msk [vmem:[#allocation3 + $0x70] sm:$0xff] %vm651, %v1860
      %1893 = vst.msk [vmem:[#allocation3 + $0x78] sm:$0xff] %vm651, %v1861
      %1894 = vst.msk [vmem:[#allocation3 + $0x80] sm:$0xff] %vm651, %v1862
      %1895 = vst.msk [vmem:[#allocation3 + $0x88] sm:$0xff] %vm651, %v1863
      %1896 = vst.msk [vmem:[#allocation3 + $0x90] sm:$0xff] %vm651, %v1864
      %1897 = vst.msk [vmem:[#allocation3 + $0x98] sm:$0xff] %vm651, %v1865
      %1898 = vst.msk [vmem:[#allocation3 + $0xa0] sm:$0xff] %vm651, %v1866
      %1899 = vst.msk [vmem:[#allocation3 + $0xa8] sm:$0xff] %vm651, %v1867
      %1900 = vst.msk [vmem:[#allocation3 + $0xb0] sm:$0xff] %vm651, %v1868
      %1901 = vst.msk [vmem:[#allocation3 + $0xb8] sm:$0xff] %vm651, %v1869
      %1902 = vst.msk [vmem:[#allocation3 + $0xc0] sm:$0xff] %vm651, %v1870
      %1903 = vst.msk [vmem:[#allocation3 + $0xc8] sm:$0xff] %vm651, %v1871
      %1904 = vst.msk [vmem:[#allocation3 + $0xd0] sm:$0xff] %vm651, %v1872
      %1905 = vst.msk [vmem:[#allocation3 + $0xd8] sm:$0xff] %vm651, %v1873
      %1906 = vst.msk [vmem:[#allocation3 + $0xe0] sm:$0xff] %vm651, %v1874
      %1907 = vst.msk [vmem:[#allocation3 + $0xe8] sm:$0xff] %vm651, %v1875
      %1908 = vst.msk [vmem:[#allocation3 + $0xf0] sm:$0xff] %vm651, %v1876
      %1909 = vst.msk [vmem:[#allocation3 + $0xf8] sm:$0xff] %vm651, %v1877
      %v1910 = vld [vmem:[#allocation2 + $0x2] sm:$0xff]
      %v1911 = vld [vmem:[#allocation2 + $0xa] sm:$0xff]
      %v1912 = vld [vmem:[#allocation2 + $0x1a] sm:$0xff]
      %v1913 = vld [vmem:[#allocation2 + $0x22] sm:$0xff]
      %v1914 = vld [vmem:[#allocation2 + $0x32] sm:$0xff]
      %v1915 = vld [vmem:[#allocation2 + $0x3a] sm:$0xff]
      %v1916 = vld [vmem:[#allocation2 + $0x4a] sm:$0xff]
      %v1917 = vld [vmem:[#allocation2 + $0x52] sm:$0xff]
      %v1918 = vld [vmem:[#allocation2 + $0x62] sm:$0xff]
      %v1919 = vld [vmem:[#allocation2 + $0x6a] sm:$0xff]
      %v1920 = vld [vmem:[#allocation2 + $0x7a] sm:$0xff]
      %v1921 = vld [vmem:[#allocation2 + $0x82] sm:$0xff]
      %v1922 = vld [vmem:[#allocation2 + $0x92] sm:$0xff]
      %v1923 = vld [vmem:[#allocation2 + $0x9a] sm:$0xff]
      %v1924 = vld [vmem:[#allocation2 + $0xaa] sm:$0xff]
      %v1925 = vld [vmem:[#allocation2 + $0xb2] sm:$0xff]
      %v1926 = vld [vmem:[#allocation2 + $0xc2] sm:$0xff]
      %v1927 = vld [vmem:[#allocation2 + $0xca] sm:$0xff]
      %v1928 = vld [vmem:[#allocation2 + $0xda] sm:$0xff]
      %v1929 = vld [vmem:[#allocation2 + $0xe2] sm:$0xff]
      %v1930 = vld [vmem:[#allocation2 + $0xf2] sm:$0xff]
      %v1931 = vld [vmem:[#allocation2 + $0xfa] sm:$0xff]
      %v1932 = vld [vmem:[#allocation2 + $0x10a] sm:$0xff]
      %v1933 = vld [vmem:[#allocation2 + $0x112] sm:$0xff]
      %v1934 = vld [vmem:[#allocation2 + $0x122] sm:$0xff]
      %v1935 = vld [vmem:[#allocation2 + $0x12a] sm:$0xff]
      %v1936 = vld [vmem:[#allocation2 + $0x13a] sm:$0xff]
      %v1937 = vld [vmem:[#allocation2 + $0x142] sm:$0xff]
      %v1938 = vld [vmem:[#allocation2 + $0x152] sm:$0xff]
      %v1939 = vld [vmem:[#allocation2 + $0x15a] sm:$0xff]
      %v1940 = vld [vmem:[#allocation2 + $0x16a] sm:$0xff]
      %v1941 = vld [vmem:[#allocation2 + $0x172] sm:$0xff]
      %v1942 = vld [vmem:[#allocation2 + $0x182] sm:$0xff]
      %v1943 = vld [vmem:[#allocation2 + $0x18a] sm:$0xff]
      %v1944 = vld [vmem:[#allocation2 + $0x19a] sm:$0xff]
      %v1945 = vld [vmem:[#allocation2 + $0x1a2] sm:$0xff]
      %s1946 = scalar_lea.vmem %s2, 8
      %v1947 = vld [vmem:[%s1946] sm:$0xf]
      %v1949 = vsel %vm218, %v1910, 0
      %v1952 = vsel %vm218, %v1911, 0
      %v1955 = vsel %vm218, %v1912, 0
      %v1958 = vsel %vm218, %v1913, 0
      %v1961 = vsel %vm218, %v1914, 0
      %v1964 = vsel %vm218, %v1915, 0
      %v1967 = vsel %vm218, %v1916, 0
      %v1970 = vsel %vm218, %v1917, 0
      %v1973 = vsel %vm218, %v1918, 0
      %v1976 = vsel %vm218, %v1919, 0
      %v1979 = vsel %vm218, %v1920, 0
      %v1982 = vsel %vm218, %v1921, 0
      %v1985 = vsel %vm218, %v1922, 0
      %v1988 = vsel %vm218, %v1923, 0
      %v1991 = vsel %vm218, %v1924, 0
      %v1994 = vsel %vm218, %v1925, 0
      %v1997 = vsel %vm218, %v1926, 0
      %v2000 = vsel %vm218, %v1927, 0
      %v2003 = vsel %vm218, %v1928, 0
      %v2006 = vsel %vm218, %v1929, 0
      %v2009 = vsel %vm218, %v1930, 0
      %v2012 = vsel %vm218, %v1931, 0
      %v2015 = vsel %vm218, %v1932, 0
      %v2018 = vsel %vm218, %v1933, 0
      %v2021 = vsel %vm218, %v1934, 0
      %v2024 = vsel %vm218, %v1935, 0
      %v2027 = vsel %vm218, %v1936, 0
      %v2030 = vsel %vm218, %v1937, 0
      %v2033 = vsel %vm218, %v1938, 0
      %v2036 = vsel %vm218, %v1939, 0
      %v2039 = vsel %vm218, %v1940, 0
      %v2042 = vsel %vm218, %v1941, 0
      %v2045 = vsel %vm222, %v1947, 0
      %2047 = vmatpush.msra.mxu0 0.0
      %2048 = vmatpush.msra.mxu0 0.0
      %2049 = vmatpush.msra.mxu0 0.0
      %2050 = vmatpush.msra.mxu0 0.0
      %2051 = vmatpush.msra.mxu0 0.0
      %2052 = vmatpush.msra.mxu0 0.0
      %2053 = vmatpush.msra.mxu0 0.0
      %2054 = vmatpush.msra.mxu0 0.0
      %2055 = vmatpush.msra.mxu0 0.0
      %2056 = vmatpush.msra.mxu0 0.0
      %2057 = vmatpush.msra.mxu0 0.0
      %2058 = vmatpush.msra.mxu0 0.0
      %2059 = vmatpush.msra.mxu0 0.0
      %2060 = vmatpush.msra.mxu0 0.0
      %2061 = vmatpush.msra.mxu0 0.0
      %2062 = vmatpush.msra.mxu0 %v2045
      %2063 = vmatmul.f32.gmra.mxu0 %v1949
      %v2064 = vpop.f32.mrf.mxu0
      %v2065 = vadd.f32 0.0, %v2064
      %2066 = vmatmul.f32.gmra.mxu0 %v1952
      %v2067 = vpop.f32.mrf.mxu0
      %v2068 = vadd.f32 0.0, %v2067
      %2069 = vmatmul.f32.gmra.mxu0 %v1955
      %v2070 = vpop.f32.mrf.mxu0
      %v2071 = vadd.f32 0.0, %v2070
      %2072 = vmatmul.f32.gmra.mxu0 %v1958
      %v2073 = vpop.f32.mrf.mxu0
      %v2074 = vadd.f32 0.0, %v2073
      %2075 = vmatmul.f32.gmra.mxu0 %v1961
      %v2076 = vpop.f32.mrf.mxu0
      %v2077 = vadd.f32 0.0, %v2076
      %2078 = vmatmul.f32.gmra.mxu0 %v1964
      %v2079 = vpop.f32.mrf.mxu0
      %v2080 = vadd.f32 0.0, %v2079
      %2081 = vmatmul.f32.gmra.mxu0 %v1967
      %v2082 = vpop.f32.mrf.mxu0
      %v2083 = vadd.f32 0.0, %v2082
      %2084 = vmatmul.f32.gmra.mxu0 %v1970
      %v2085 = vpop.f32.mrf.mxu0
      %v2086 = vadd.f32 0.0, %v2085
      %2087 = vmatmul.f32.gmra.mxu0 %v1973
      %v2088 = vpop.f32.mrf.mxu0
      %v2089 = vadd.f32 0.0, %v2088
      %2090 = vmatmul.f32.gmra.mxu0 %v1976
      %v2091 = vpop.f32.mrf.mxu0
      %v2092 = vadd.f32 0.0, %v2091
      %2093 = vmatmul.f32.gmra.mxu0 %v1979
      %v2094 = vpop.f32.mrf.mxu0
      %v2095 = vadd.f32 0.0, %v2094
      %2096 = vmatmul.f32.gmra.mxu0 %v1982
      %v2097 = vpop.f32.mrf.mxu0
      %v2098 = vadd.f32 0.0, %v2097
      %2099 = vmatmul.f32.gmra.mxu0 %v1985
      %v2100 = vpop.f32.mrf.mxu0
      %v2101 = vadd.f32 0.0, %v2100
      %2102 = vmatmul.f32.gmra.mxu0 %v1988
      %v2103 = vpop.f32.mrf.mxu0
      %v2104 = vadd.f32 0.0, %v2103
      %2105 = vmatmul.f32.gmra.mxu0 %v1991
      %v2106 = vpop.f32.mrf.mxu0
      %v2107 = vadd.f32 0.0, %v2106
      %2108 = vmatmul.f32.gmra.mxu0 %v1994
      %v2109 = vpop.f32.mrf.mxu0
      %v2110 = vadd.f32 0.0, %v2109
      %2111 = vmatmul.f32.gmra.mxu0 %v1997
      %v2112 = vpop.f32.mrf.mxu0
      %v2113 = vadd.f32 0.0, %v2112
      %2114 = vmatmul.f32.gmra.mxu0 %v2000
      %v2115 = vpop.f32.mrf.mxu0
      %v2116 = vadd.f32 0.0, %v2115
      %2117 = vmatmul.f32.gmra.mxu0 %v2003
      %v2118 = vpop.f32.mrf.mxu0
      %v2119 = vadd.f32 0.0, %v2118
      %2120 = vmatmul.f32.gmra.mxu0 %v2006
      %v2121 = vpop.f32.mrf.mxu0
      %v2122 = vadd.f32 0.0, %v2121
      %2123 = vmatmul.f32.gmra.mxu0 %v2009
      %v2124 = vpop.f32.mrf.mxu0
      %v2125 = vadd.f32 0.0, %v2124
      %2126 = vmatmul.f32.gmra.mxu0 %v2012
      %v2127 = vpop.f32.mrf.mxu0
      %v2128 = vadd.f32 0.0, %v2127
      %2129 = vmatmul.f32.gmra.mxu0 %v2015
      %v2130 = vpop.f32.mrf.mxu0
      %v2131 = vadd.f32 0.0, %v2130
      %2132 = vmatmul.f32.gmra.mxu0 %v2018
      %v2133 = vpop.f32.mrf.mxu0
      %v2134 = vadd.f32 0.0, %v2133
      %2135 = vmatmul.f32.gmra.mxu0 %v2021
      %v2136 = vpop.f32.mrf.mxu0
      %v2137 = vadd.f32 0.0, %v2136
      %2138 = vmatmul.f32.gmra.mxu0 %v2024
      %v2139 = vpop.f32.mrf.mxu0
      %v2140 = vadd.f32 0.0, %v2139
      %2141 = vmatmul.f32.gmra.mxu0 %v2027
      %v2142 = vpop.f32.mrf.mxu0
      %v2143 = vadd.f32 0.0, %v2142
      %2144 = vmatmul.f32.gmra.mxu0 %v2030
      %v2145 = vpop.f32.mrf.mxu0
      %v2146 = vadd.f32 0.0, %v2145
      %2147 = vmatmul.f32.gmra.mxu0 %v2033
      %v2148 = vpop.f32.mrf.mxu0
      %v2149 = vadd.f32 0.0, %v2148
      %2150 = vmatmul.f32.gmra.mxu0 %v2036
      %v2151 = vpop.f32.mrf.mxu0
      %v2152 = vadd.f32 0.0, %v2151
      %2153 = vmatmul.f32.gmra.mxu0 %v2039
      %v2154 = vpop.f32.mrf.mxu0
      %v2155 = vadd.f32 0.0, %v2154
      %2156 = vmatmul.f32.gmra.mxu0 %v2042
      %v2157 = vpop.f32.mrf.mxu0
      %v2158 = vadd.f32 0.0, %v2157
      %2159 = vdwg.mxu0
      %v2160 = vld [vmem:[#allocation3] sm:$0xff]
      %v2161 = vld [vmem:[#allocation3 + $0x8] sm:$0xff]
      %v2162 = vld [vmem:[#allocation3 + $0x10] sm:$0xff]
      %v2163 = vld [vmem:[#allocation3 + $0x18] sm:$0xff]
      %v2164 = vld [vmem:[#allocation3 + $0x20] sm:$0xff]
      %v2165 = vld [vmem:[#allocation3 + $0x28] sm:$0xff]
      %v2166 = vld [vmem:[#allocation3 + $0x30] sm:$0xff]
      %v2167 = vld [vmem:[#allocation3 + $0x38] sm:$0xff]
      %v2168 = vld [vmem:[#allocation3 + $0x40] sm:$0xff]
      %v2169 = vld [vmem:[#allocation3 + $0x48] sm:$0xff]
      %v2170 = vld [vmem:[#allocation3 + $0x50] sm:$0xff]
      %v2171 = vld [vmem:[#allocation3 + $0x58] sm:$0xff]
      %v2172 = vld [vmem:[#allocation3 + $0x60] sm:$0xff]
      %v2173 = vld [vmem:[#allocation3 + $0x68] sm:$0xff]
      %v2174 = vld [vmem:[#allocation3 + $0x70] sm:$0xff]
      %v2175 = vld [vmem:[#allocation3 + $0x78] sm:$0xff]
      %v2176 = vld [vmem:[#allocation3 + $0x80] sm:$0xff]
      %v2177 = vld [vmem:[#allocation3 + $0x88] sm:$0xff]
      %v2178 = vld [vmem:[#allocation3 + $0x90] sm:$0xff]
      %v2179 = vld [vmem:[#allocation3 + $0x98] sm:$0xff]
      %v2180 = vld [vmem:[#allocation3 + $0xa0] sm:$0xff]
      %v2181 = vld [vmem:[#allocation3 + $0xa8] sm:$0xff]
      %v2182 = vld [vmem:[#allocation3 + $0xb0] sm:$0xff]
      %v2183 = vld [vmem:[#allocation3 + $0xb8] sm:$0xff]
      %v2184 = vld [vmem:[#allocation3 + $0xc0] sm:$0xff]
      %v2185 = vld [vmem:[#allocation3 + $0xc8] sm:$0xff]
      %v2186 = vld [vmem:[#allocation3 + $0xd0] sm:$0xff]
      %v2187 = vld [vmem:[#allocation3 + $0xd8] sm:$0xff]
      %v2188 = vld [vmem:[#allocation3 + $0xe0] sm:$0xff]
      %v2189 = vld [vmem:[#allocation3 + $0xe8] sm:$0xff]
      %v2190 = vld [vmem:[#allocation3 + $0xf0] sm:$0xff]
      %v2191 = vld [vmem:[#allocation3 + $0xf8] sm:$0xff]
      %v2192 = vadd.f32 %v2160, %v2065
      %v2193 = vadd.f32 %v2161, %v2068
      %v2194 = vadd.f32 %v2162, %v2071
      %v2195 = vadd.f32 %v2163, %v2074
      %v2196 = vadd.f32 %v2164, %v2077
      %v2197 = vadd.f32 %v2165, %v2080
      %v2198 = vadd.f32 %v2166, %v2083
      %v2199 = vadd.f32 %v2167, %v2086
      %v2200 = vadd.f32 %v2168, %v2089
      %v2201 = vadd.f32 %v2169, %v2092
      %v2202 = vadd.f32 %v2170, %v2095
      %v2203 = vadd.f32 %v2171, %v2098
      %v2204 = vadd.f32 %v2172, %v2101
      %v2205 = vadd.f32 %v2173, %v2104
      %v2206 = vadd.f32 %v2174, %v2107
      %v2207 = vadd.f32 %v2175, %v2110
      %v2208 = vadd.f32 %v2176, %v2113
      %v2209 = vadd.f32 %v2177, %v2116
      %v2210 = vadd.f32 %v2178, %v2119
      %v2211 = vadd.f32 %v2179, %v2122
      %v2212 = vadd.f32 %v2180, %v2125
      %v2213 = vadd.f32 %v2181, %v2128
      %v2214 = vadd.f32 %v2182, %v2131
      %v2215 = vadd.f32 %v2183, %v2134
      %v2216 = vadd.f32 %v2184, %v2137
      %v2217 = vadd.f32 %v2185, %v2140
      %v2218 = vadd.f32 %v2186, %v2143
      %v2219 = vadd.f32 %v2187, %v2146
      %v2220 = vadd.f32 %v2188, %v2149
      %v2221 = vadd.f32 %v2189, %v2152
      %v2222 = vadd.f32 %v2190, %v2155
      %v2223 = vadd.f32 %v2191, %v2158
      %2224 = vst.msk [vmem:[#allocation3] sm:$0xff] %vm651, %v2192
      %2225 = vst.msk [vmem:[#allocation3 + $0x8] sm:$0xff] %vm651, %v2193
      %2226 = vst.msk [vmem:[#allocation3 + $0x10] sm:$0xff] %vm651, %v2194
      %2227 = vst.msk [vmem:[#allocation3 + $0x18] sm:$0xff] %vm651, %v2195
      %2228 = vst.msk [vmem:[#allocation3 + $0x20] sm:$0xff] %vm651, %v2196
      %2229 = vst.msk [vmem:[#allocation3 + $0x28] sm:$0xff] %vm651, %v2197
      %2230 = vst.msk [vmem:[#allocation3 + $0x30] sm:$0xff] %vm651, %v2198
      %2231 = vst.msk [vmem:[#allocation3 + $0x38] sm:$0xff] %vm651, %v2199
      %2232 = vst.msk [vmem:[#allocation3 + $0x40] sm:$0xff] %vm651, %v2200
      %2233 = vst.msk [vmem:[#allocation3 + $0x48] sm:$0xff] %vm651, %v2201
      %2234 = vst.msk [vmem:[#allocation3 + $0x50] sm:$0xff] %vm651, %v2202
      %2235 = vst.msk [vmem:[#allocation3 + $0x58] sm:$0xff] %vm651, %v2203
      %2236 = vst.msk [vmem:[#allocation3 + $0x60] sm:$0xff] %vm651, %v2204
      %2237 = vst.msk [vmem:[#allocation3 + $0x68] sm:$0xff] %vm651, %v2205
      %2238 = vst.msk [vmem:[#allocation3 + $0x70] sm:$0xff] %vm651, %v2206
      %2239 = vst.msk [vmem:[#allocation3 + $0x78] sm:$0xff] %vm651, %v2207
      %2240 = vst.msk [vmem:[#allocation3 + $0x80] sm:$0xff] %vm651, %v2208
      %2241 = vst.msk [vmem:[#allocation3 + $0x88] sm:$0xff] %vm651, %v2209
      %2242 = vst.msk [vmem:[#allocation3 + $0x90] sm:$0xff] %vm651, %v2210
      %2243 = vst.msk [vmem:[#allocation3 + $0x98] sm:$0xff] %vm651, %v2211
      %2244 = vst.msk [vmem:[#allocation3 + $0xa0] sm:$0xff] %vm651, %v2212
      %2245 = vst.msk [vmem:[#allocation3 + $0xa8] sm:$0xff] %vm651, %v2213
      %2246 = vst.msk [vmem:[#allocation3 + $0xb0] sm:$0xff] %vm651, %v2214
      %2247 = vst.msk [vmem:[#allocation3 + $0xb8] sm:$0xff] %vm651, %v2215
      %2248 = vst.msk [vmem:[#allocation3 + $0xc0] sm:$0xff] %vm651, %v2216
      %2249 = vst.msk [vmem:[#allocation3 + $0xc8] sm:$0xff] %vm651, %v2217
      %2250 = vst.msk [vmem:[#allocation3 + $0xd0] sm:$0xff] %vm651, %v2218
      %2251 = vst.msk [vmem:[#allocation3 + $0xd8] sm:$0xff] %vm651, %v2219
      %2252 = vst.msk [vmem:[#allocation3 + $0xe0] sm:$0xff] %vm651, %v2220
      %2253 = vst.msk [vmem:[#allocation3 + $0xe8] sm:$0xff] %vm651, %v2221
      %2254 = vst.msk [vmem:[#allocation3 + $0xf0] sm:$0xff] %vm651, %v2222
      %2255 = vst.msk [vmem:[#allocation3 + $0xf8] sm:$0xff] %vm651, %v2223
      %s2256 = scalar_lea.vmem %s2, 20
      %v2257 = vld [vmem:[%s2256] sm:$0xf]
      %v2259 = vsel %vm218, %v1942, 0
      %v2262 = vsel %vm218, %v1943, 0
      %v2265 = vsel %vm222, %v2257, 0
      %2267 = vmatpush.msra.mxu0 0.0
      %2268 = vmatpush.msra.mxu0 0.0
      %2269 = vmatpush.msra.mxu0 0.0
      %2270 = vmatpush.msra.mxu0 0.0
      %2271 = vmatpush.msra.mxu0 0.0
      %2272 = vmatpush.msra.mxu0 0.0
      %2273 = vmatpush.msra.mxu0 0.0
      %2274 = vmatpush.msra.mxu0 0.0
      %2275 = vmatpush.msra.mxu0 0.0
      %2276 = vmatpush.msra.mxu0 0.0
      %2277 = vmatpush.msra.mxu0 0.0
      %2278 = vmatpush.msra.mxu0 0.0
      %2279 = vmatpush.msra.mxu0 0.0
      %2280 = vmatpush.msra.mxu0 0.0
      %2281 = vmatpush.msra.mxu0 0.0
      %2282 = vmatpush.msra.mxu0 %v2265
      %2283 = vmatmul.f32.gmra.mxu0 %v1955
      %v2284 = vpop.f32.mrf.mxu0
      %v2285 = vadd.f32 0.0, %v2284
      %2286 = vmatmul.f32.gmra.mxu0 %v1958
      %v2287 = vpop.f32.mrf.mxu0
      %v2288 = vadd.f32 0.0, %v2287
      %2289 = vmatmul.f32.gmra.mxu0 %v1961
      %v2290 = vpop.f32.mrf.mxu0
      %v2291 = vadd.f32 0.0, %v2290
      %2292 = vmatmul.f32.gmra.mxu0 %v1964
      %v2293 = vpop.f32.mrf.mxu0
      %v2294 = vadd.f32 0.0, %v2293
      %2295 = vmatmul.f32.gmra.mxu0 %v1967
      %v2296 = vpop.f32.mrf.mxu0
      %v2297 = vadd.f32 0.0, %v2296
      %2298 = vmatmul.f32.gmra.mxu0 %v1970
      %v2299 = vpop.f32.mrf.mxu0
      %v2300 = vadd.f32 0.0, %v2299
      %2301 = vmatmul.f32.gmra.mxu0 %v1973
      %v2302 = vpop.f32.mrf.mxu0
      %v2303 = vadd.f32 0.0, %v2302
      %2304 = vmatmul.f32.gmra.mxu0 %v1976
      %v2305 = vpop.f32.mrf.mxu0
      %v2306 = vadd.f32 0.0, %v2305
      %2307 = vmatmul.f32.gmra.mxu0 %v1979
      %v2308 = vpop.f32.mrf.mxu0
      %v2309 = vadd.f32 0.0, %v2308
      %2310 = vmatmul.f32.gmra.mxu0 %v1982
      %v2311 = vpop.f32.mrf.mxu0
      %v2312 = vadd.f32 0.0, %v2311
      %2313 = vmatmul.f32.gmra.mxu0 %v1985
      %v2314 = vpop.f32.mrf.mxu0
      %v2315 = vadd.f32 0.0, %v2314
      %2316 = vmatmul.f32.gmra.mxu0 %v1988
      %v2317 = vpop.f32.mrf.mxu0
      %v2318 = vadd.f32 0.0, %v2317
      %2319 = vmatmul.f32.gmra.mxu0 %v1991
      %v2320 = vpop.f32.mrf.mxu0
      %v2321 = vadd.f32 0.0, %v2320
      %2322 = vmatmul.f32.gmra.mxu0 %v1994
      %v2323 = vpop.f32.mrf.mxu0
      %v2324 = vadd.f32 0.0, %v2323
      %2325 = vmatmul.f32.gmra.mxu0 %v1997
      %v2326 = vpop.f32.mrf.mxu0
      %v2327 = vadd.f32 0.0, %v2326
      %2328 = vmatmul.f32.gmra.mxu0 %v2000
      %v2329 = vpop.f32.mrf.mxu0
      %v2330 = vadd.f32 0.0, %v2329
      %2331 = vmatmul.f32.gmra.mxu0 %v2003
      %v2332 = vpop.f32.mrf.mxu0
      %v2333 = vadd.f32 0.0, %v2332
      %2334 = vmatmul.f32.gmra.mxu0 %v2006
      %v2335 = vpop.f32.mrf.mxu0
      %v2336 = vadd.f32 0.0, %v2335
      %2337 = vmatmul.f32.gmra.mxu0 %v2009
      %v2338 = vpop.f32.mrf.mxu0
      %v2339 = vadd.f32 0.0, %v2338
      %2340 = vmatmul.f32.gmra.mxu0 %v2012
      %v2341 = vpop.f32.mrf.mxu0
      %v2342 = vadd.f32 0.0, %v2341
      %2343 = vmatmul.f32.gmra.mxu0 %v2015
      %v2344 = vpop.f32.mrf.mxu0
      %v2345 = vadd.f32 0.0, %v2344
      %2346 = vmatmul.f32.gmra.mxu0 %v2018
      %v2347 = vpop.f32.mrf.mxu0
      %v2348 = vadd.f32 0.0, %v2347
      %2349 = vmatmul.f32.gmra.mxu0 %v2021
      %v2350 = vpop.f32.mrf.mxu0
      %v2351 = vadd.f32 0.0, %v2350
      %2352 = vmatmul.f32.gmra.mxu0 %v2024
      %v2353 = vpop.f32.mrf.mxu0
      %v2354 = vadd.f32 0.0, %v2353
      %2355 = vmatmul.f32.gmra.mxu0 %v2027
      %v2356 = vpop.f32.mrf.mxu0
      %v2357 = vadd.f32 0.0, %v2356
      %2358 = vmatmul.f32.gmra.mxu0 %v2030
      %v2359 = vpop.f32.mrf.mxu0
      %v2360 = vadd.f32 0.0, %v2359
      %2361 = vmatmul.f32.gmra.mxu0 %v2033
      %v2362 = vpop.f32.mrf.mxu0
      %v2363 = vadd.f32 0.0, %v2362
      %2364 = vmatmul.f32.gmra.mxu0 %v2036
      %v2365 = vpop.f32.mrf.mxu0
      %v2366 = vadd.f32 0.0, %v2365
      %2367 = vmatmul.f32.gmra.mxu0 %v2039
      %v2368 = vpop.f32.mrf.mxu0
      %v2369 = vadd.f32 0.0, %v2368
      %2370 = vmatmul.f32.gmra.mxu0 %v2042
      %v2371 = vpop.f32.mrf.mxu0
      %v2372 = vadd.f32 0.0, %v2371
      %2373 = vmatmul.f32.gmra.mxu0 %v2259
      %v2374 = vpop.f32.mrf.mxu0
      %v2375 = vadd.f32 0.0, %v2374
      %2376 = vmatmul.f32.gmra.mxu0 %v2262
      %v2377 = vpop.f32.mrf.mxu0
      %v2378 = vadd.f32 0.0, %v2377
      %2379 = vdwg.mxu0
      %v2380 = vld [vmem:[#allocation3] sm:$0xff]
      %v2381 = vld [vmem:[#allocation3 + $0x8] sm:$0xff]
      %v2382 = vld [vmem:[#allocation3 + $0x10] sm:$0xff]
      %v2383 = vld [vmem:[#allocation3 + $0x18] sm:$0xff]
      %v2384 = vld [vmem:[#allocation3 + $0x20] sm:$0xff]
      %v2385 = vld [vmem:[#allocation3 + $0x28] sm:$0xff]
      %v2386 = vld [vmem:[#allocation3 + $0x30] sm:$0xff]
      %v2387 = vld [vmem:[#allocation3 + $0x38] sm:$0xff]
      %v2388 = vld [vmem:[#allocation3 + $0x40] sm:$0xff]
      %v2389 = vld [vmem:[#allocation3 + $0x48] sm:$0xff]
      %v2390 = vld [vmem:[#allocation3 + $0x50] sm:$0xff]
      %v2391 = vld [vmem:[#allocation3 + $0x58] sm:$0xff]
      %v2392 = vld [vmem:[#allocation3 + $0x60] sm:$0xff]
      %v2393 = vld [vmem:[#allocation3 + $0x68] sm:$0xff]
      %v2394 = vld [vmem:[#allocation3 + $0x70] sm:$0xff]
      %v2395 = vld [vmem:[#allocation3 + $0x78] sm:$0xff]
      %v2396 = vld [vmem:[#allocation3 + $0x80] sm:$0xff]
      %v2397 = vld [vmem:[#allocation3 + $0x88] sm:$0xff]
      %v2398 = vld [vmem:[#allocation3 + $0x90] sm:$0xff]
      %v2399 = vld [vmem:[#allocation3 + $0x98] sm:$0xff]
      %v2400 = vld [vmem:[#allocation3 + $0xa0] sm:$0xff]
      %v2401 = vld [vmem:[#allocation3 + $0xa8] sm:$0xff]
      %v2402 = vld [vmem:[#allocation3 + $0xb0] sm:$0xff]
      %v2403 = vld [vmem:[#allocation3 + $0xb8] sm:$0xff]
      %v2404 = vld [vmem:[#allocation3 + $0xc0] sm:$0xff]
      %v2405 = vld [vmem:[#allocation3 + $0xc8] sm:$0xff]
      %v2406 = vld [vmem:[#allocation3 + $0xd0] sm:$0xff]
      %v2407 = vld [vmem:[#allocation3 + $0xd8] sm:$0xff]
      %v2408 = vld [vmem:[#allocation3 + $0xe0] sm:$0xff]
      %v2409 = vld [vmem:[#allocation3 + $0xe8] sm:$0xff]
      %v2410 = vld [vmem:[#allocation3 + $0xf0] sm:$0xff]
      %v2411 = vld [vmem:[#allocation3 + $0xf8] sm:$0xff]
      %v2412 = vadd.f32 %v2380, %v2285
      %v2413 = vadd.f32 %v2381, %v2288
      %v2414 = vadd.f32 %v2382, %v2291
      %v2415 = vadd.f32 %v2383, %v2294
      %v2416 = vadd.f32 %v2384, %v2297
      %v2417 = vadd.f32 %v2385, %v2300
      %v2418 = vadd.f32 %v2386, %v2303
      %v2419 = vadd.f32 %v2387, %v2306
      %v2420 = vadd.f32 %v2388, %v2309
      %v2421 = vadd.f32 %v2389, %v2312
      %v2422 = vadd.f32 %v2390, %v2315
      %v2423 = vadd.f32 %v2391, %v2318
      %v2424 = vadd.f32 %v2392, %v2321
      %v2425 = vadd.f32 %v2393, %v2324
      %v2426 = vadd.f32 %v2394, %v2327
      %v2427 = vadd.f32 %v2395, %v2330
      %v2428 = vadd.f32 %v2396, %v2333
      %v2429 = vadd.f32 %v2397, %v2336
      %v2430 = vadd.f32 %v2398, %v2339
      %v2431 = vadd.f32 %v2399, %v2342
      %v2432 = vadd.f32 %v2400, %v2345
      %v2433 = vadd.f32 %v2401, %v2348
      %v2434 = vadd.f32 %v2402, %v2351
      %v2435 = vadd.f32 %v2403, %v2354
      %v2436 = vadd.f32 %v2404, %v2357
      %v2437 = vadd.f32 %v2405, %v2360
      %v2438 = vadd.f32 %v2406, %v2363
      %v2439 = vadd.f32 %v2407, %v2366
      %v2440 = vadd.f32 %v2408, %v2369
      %v2441 = vadd.f32 %v2409, %v2372
      %v2442 = vadd.f32 %v2410, %v2375
      %v2443 = vadd.f32 %v2411, %v2378
      %2444 = vst.msk [vmem:[#allocation3] sm:$0xff] %vm651, %v2412
      %2445 = vst.msk [vmem:[#allocation3 + $0x8] sm:$0xff] %vm651, %v2413
      %2446 = vst.msk [vmem:[#allocation3 + $0x10] sm:$0xff] %vm651, %v2414
      %2447 = vst.msk [vmem:[#allocation3 + $0x18] sm:$0xff] %vm651, %v2415
      %2448 = vst.msk [vmem:[#allocation3 + $0x20] sm:$0xff] %vm651, %v2416
      %2449 = vst.msk [vmem:[#allocation3 + $0x28] sm:$0xff] %vm651, %v2417
      %2450 = vst.msk [vmem:[#allocation3 + $0x30] sm:$0xff] %vm651, %v2418
      %2451 = vst.msk [vmem:[#allocation3 + $0x38] sm:$0xff] %vm651, %v2419
      %2452 = vst.msk [vmem:[#allocation3 + $0x40] sm:$0xff] %vm651, %v2420
      %2453 = vst.msk [vmem:[#allocation3 + $0x48] sm:$0xff] %vm651, %v2421
      %2454 = vst.msk [vmem:[#allocation3 + $0x50] sm:$0xff] %vm651, %v2422
      %2455 = vst.msk [vmem:[#allocation3 + $0x58] sm:$0xff] %vm651, %v2423
      %2456 = vst.msk [vmem:[#allocation3 + $0x60] sm:$0xff] %vm651, %v2424
      %2457 = vst.msk [vmem:[#allocation3 + $0x68] sm:$0xff] %vm651, %v2425
      %2458 = vst.msk [vmem:[#allocation3 + $0x70] sm:$0xff] %vm651, %v2426
      %2459 = vst.msk [vmem:[#allocation3 + $0x78] sm:$0xff] %vm651, %v2427
      %2460 = vst.msk [vmem:[#allocation3 + $0x80] sm:$0xff] %vm651, %v2428
      %2461 = vst.msk [vmem:[#allocation3 + $0x88] sm:$0xff] %vm651, %v2429
      %2462 = vst.msk [vmem:[#allocation3 + $0x90] sm:$0xff] %vm651, %v2430
      %2463 = vst.msk [vmem:[#allocation3 + $0x98] sm:$0xff] %vm651, %v2431
      %2464 = vst.msk [vmem:[#allocation3 + $0xa0] sm:$0xff] %vm651, %v2432
      %2465 = vst.msk [vmem:[#allocation3 + $0xa8] sm:$0xff] %vm651, %v2433
      %2466 = vst.msk [vmem:[#allocation3 + $0xb0] sm:$0xff] %vm651, %v2434
      %2467 = vst.msk [vmem:[#allocation3 + $0xb8] sm:$0xff] %vm651, %v2435
      %2468 = vst.msk [vmem:[#allocation3 + $0xc0] sm:$0xff] %vm651, %v2436
      %2469 = vst.msk [vmem:[#allocation3 + $0xc8] sm:$0xff] %vm651, %v2437
      %2470 = vst.msk [vmem:[#allocation3 + $0xd0] sm:$0xff] %vm651, %v2438
      %2471 = vst.msk [vmem:[#allocation3 + $0xd8] sm:$0xff] %vm651, %v2439
      %2472 = vst.msk [vmem:[#allocation3 + $0xe0] sm:$0xff] %vm651, %v2440
      %2473 = vst.msk [vmem:[#allocation3 + $0xe8] sm:$0xff] %vm651, %v2441
      %2474 = vst.msk [vmem:[#allocation3 + $0xf0] sm:$0xff] %vm651, %v2442
      %2475 = vst.msk [vmem:[#allocation3 + $0xf8] sm:$0xff] %vm651, %v2443
      %s2476 = scalar_lea.vmem %s2, 32
      %v2477 = vld [vmem:[%s2476] sm:$0xf]
      %v2479 = vsel %vm218, %v1944, 0
      %v2482 = vsel %vm218, %v1945, 0
      %v2485 = vsel %vm222, %v2477, 0
      %2487 = vmatpush.msra.mxu0 0.0
      %2488 = vmatpush.msra.mxu0 0.0
      %2489 = vmatpush.msra.mxu0 0.0
      %2490 = vmatpush.msra.mxu0 0.0
      %2491 = vmatpush.msra.mxu0 0.0
      %2492 = vmatpush.msra.mxu0 0.0
      %2493 = vmatpush.msra.mxu0 0.0
      %2494 = vmatpush.msra.mxu0 0.0
      %2495 = vmatpush.msra.mxu0 0.0
      %2496 = vmatpush.msra.mxu0 0.0
      %2497 = vmatpush.msra.mxu0 0.0
      %2498 = vmatpush.msra.mxu0 0.0
      %2499 = vmatpush.msra.mxu0 0.0
      %2500 = vmatpush.msra.mxu0 0.0
      %2501 = vmatpush.msra.mxu0 0.0
      %2502 = vmatpush.msra.mxu0 %v2485
      %2503 = vmatmul.f32.gmra.mxu0 %v1961
      %v2504 = vpop.f32.mrf.mxu0
      %v2505 = vadd.f32 0.0, %v2504
      %2506 = vmatmul.f32.gmra.mxu0 %v1964
      %v2507 = vpop.f32.mrf.mxu0
      %v2508 = vadd.f32 0.0, %v2507
      %2509 = vmatmul.f32.gmra.mxu0 %v1967
      %v2510 = vpop.f32.mrf.mxu0
      %v2511 = vadd.f32 0.0, %v2510
      %2512 = vmatmul.f32.gmra.mxu0 %v1970
      %v2513 = vpop.f32.mrf.mxu0
      %v2514 = vadd.f32 0.0, %v2513
      %2515 = vmatmul.f32.gmra.mxu0 %v1973
      %v2516 = vpop.f32.mrf.mxu0
      %v2517 = vadd.f32 0.0, %v2516
      %2518 = vmatmul.f32.gmra.mxu0 %v1976
      %v2519 = vpop.f32.mrf.mxu0
      %v2520 = vadd.f32 0.0, %v2519
      %2521 = vmatmul.f32.gmra.mxu0 %v1979
      %v2522 = vpop.f32.mrf.mxu0
      %v2523 = vadd.f32 0.0, %v2522
      %2524 = vmatmul.f32.gmra.mxu0 %v1982
      %v2525 = vpop.f32.mrf.mxu0
      %v2526 = vadd.f32 0.0, %v2525
      %2527 = vmatmul.f32.gmra.mxu0 %v1985
      %v2528 = vpop.f32.mrf.mxu0
      %v2529 = vadd.f32 0.0, %v2528
      %2530 = vmatmul.f32.gmra.mxu0 %v1988
      %v2531 = vpop.f32.mrf.mxu0
      %v2532 = vadd.f32 0.0, %v2531
      %2533 = vmatmul.f32.gmra.mxu0 %v1991
      %v2534 = vpop.f32.mrf.mxu0
      %v2535 = vadd.f32 0.0, %v2534
      %2536 = vmatmul.f32.gmra.mxu0 %v1994
      %v2537 = vpop.f32.mrf.mxu0
      %v2538 = vadd.f32 0.0, %v2537
      %2539 = vmatmul.f32.gmra.mxu0 %v1997
      %v2540 = vpop.f32.mrf.mxu0
      %v2541 = vadd.f32 0.0, %v2540
      %2542 = vmatmul.f32.gmra.mxu0 %v2000
      %v2543 = vpop.f32.mrf.mxu0
      %v2544 = vadd.f32 0.0, %v2543
      %2545 = vmatmul.f32.gmra.mxu0 %v2003
      %v2546 = vpop.f32.mrf.mxu0
      %v2547 = vadd.f32 0.0, %v2546
      %2548 = vmatmul.f32.gmra.mxu0 %v2006
      %v2549 = vpop.f32.mrf.mxu0
      %v2550 = vadd.f32 0.0, %v2549
      %2551 = vmatmul.f32.gmra.mxu0 %v2009
      %v2552 = vpop.f32.mrf.mxu0
      %v2553 = vadd.f32 0.0, %v2552
      %2554 = vmatmul.f32.gmra.mxu0 %v2012
      %v2555 = vpop.f32.mrf.mxu0
      %v2556 = vadd.f32 0.0, %v2555
      %2557 = vmatmul.f32.gmra.mxu0 %v2015
      %v2558 = vpop.f32.mrf.mxu0
      %v2559 = vadd.f32 0.0, %v2558
      %2560 = vmatmul.f32.gmra.mxu0 %v2018
      %v2561 = vpop.f32.mrf.mxu0
      %v2562 = vadd.f32 0.0, %v2561
      %2563 = vmatmul.f32.gmra.mxu0 %v2021
      %v2564 = vpop.f32.mrf.mxu0
      %v2565 = vadd.f32 0.0, %v2564
      %2566 = vmatmul.f32.gmra.mxu0 %v2024
      %v2567 = vpop.f32.mrf.mxu0
      %v2568 = vadd.f32 0.0, %v2567
      %2569 = vmatmul.f32.gmra.mxu0 %v2027
      %v2570 = vpop.f32.mrf.mxu0
      %v2571 = vadd.f32 0.0, %v2570
      %2572 = vmatmul.f32.gmra.mxu0 %v2030
      %v2573 = vpop.f32.mrf.mxu0
      %v2574 = vadd.f32 0.0, %v2573
      %2575 = vmatmul.f32.gmra.mxu0 %v2033
      %v2576 = vpop.f32.mrf.mxu0
      %v2577 = vadd.f32 0.0, %v2576
      %2578 = vmatmul.f32.gmra.mxu0 %v2036
      %v2579 = vpop.f32.mrf.mxu0
      %v2580 = vadd.f32 0.0, %v2579
      %2581 = vmatmul.f32.gmra.mxu0 %v2039
      %v2582 = vpop.f32.mrf.mxu0
      %v2583 = vadd.f32 0.0, %v2582
      %2584 = vmatmul.f32.gmra.mxu0 %v2042
      %v2585 = vpop.f32.mrf.mxu0
      %v2586 = vadd.f32 0.0, %v2585
      %2587 = vmatmul.f32.gmra.mxu0 %v2259
      %v2588 = vpop.f32.mrf.mxu0
      %v2589 = vadd.f32 0.0, %v2588
      %2590 = vmatmul.f32.gmra.mxu0 %v2262
      %v2591 = vpop.f32.mrf.mxu0
      %v2592 = vadd.f32 0.0, %v2591
      %2593 = vmatmul.f32.gmra.mxu0 %v2479
      %v2594 = vpop.f32.mrf.mxu0
      %v2595 = vadd.f32 0.0, %v2594
      %2596 = vmatmul.f32.gmra.mxu0 %v2482
      %v2597 = vpop.f32.mrf.mxu0
      %v2598 = vadd.f32 0.0, %v2597
      %2599 = vdwg.mxu0
      %v2600 = vld [vmem:[#allocation3] sm:$0xff]
      %v2601 = vld [vmem:[#allocation3 + $0x8] sm:$0xff]
      %v2602 = vld [vmem:[#allocation3 + $0x10] sm:$0xff]
      %v2603 = vld [vmem:[#allocation3 + $0x18] sm:$0xff]
      %v2604 = vld [vmem:[#allocation3 + $0x20] sm:$0xff]
      %v2605 = vld [vmem:[#allocation3 + $0x28] sm:$0xff]
      %v2606 = vld [vmem:[#allocation3 + $0x30] sm:$0xff]
      %v2607 = vld [vmem:[#allocation3 + $0x38] sm:$0xff]
      %v2608 = vld [vmem:[#allocation3 + $0x40] sm:$0xff]
      %v2609 = vld [vmem:[#allocation3 + $0x48] sm:$0xff]
      %v2610 = vld [vmem:[#allocation3 + $0x50] sm:$0xff]
      %v2611 = vld [vmem:[#allocation3 + $0x58] sm:$0xff]
      %v2612 = vld [vmem:[#allocation3 + $0x60] sm:$0xff]
      %v2613 = vld [vmem:[#allocation3 + $0x68] sm:$0xff]
      %v2614 = vld [vmem:[#allocation3 + $0x70] sm:$0xff]
      %v2615 = vld [vmem:[#allocation3 + $0x78] sm:$0xff]
      %v2616 = vld [vmem:[#allocation3 + $0x80] sm:$0xff]
      %v2617 = vld [vmem:[#allocation3 + $0x88] sm:$0xff]
      %v2618 = vld [vmem:[#allocation3 + $0x90] sm:$0xff]
      %v2619 = vld [vmem:[#allocation3 + $0x98] sm:$0xff]
      %v2620 = vld [vmem:[#allocation3 + $0xa0] sm:$0xff]
      %v2621 = vld [vmem:[#allocation3 + $0xa8] sm:$0xff]
      %v2622 = vld [vmem:[#allocation3 + $0xb0] sm:$0xff]
      %v2623 = vld [vmem:[#allocation3 + $0xb8] sm:$0xff]
      %v2624 = vld [vmem:[#allocation3 + $0xc0] sm:$0xff]
      %v2625 = vld [vmem:[#allocation3 + $0xc8] sm:$0xff]
      %v2626 = vld [vmem:[#allocation3 + $0xd0] sm:$0xff]
      %v2627 = vld [vmem:[#allocation3 + $0xd8] sm:$0xff]
      %v2628 = vld [vmem:[#allocation3 + $0xe0] sm:$0xff]
      %v2629 = vld [vmem:[#allocation3 + $0xe8] sm:$0xff]
      %v2630 = vld [vmem:[#allocation3 + $0xf0] sm:$0xff]
      %v2631 = vld [vmem:[#allocation3 + $0xf8] sm:$0xff]
      %v2632 = vadd.f32 %v2600, %v2505
      %v2633 = vadd.f32 %v2601, %v2508
      %v2634 = vadd.f32 %v2602, %v2511
      %v2635 = vadd.f32 %v2603, %v2514
      %v2636 = vadd.f32 %v2604, %v2517
      %v2637 = vadd.f32 %v2605, %v2520
      %v2638 = vadd.f32 %v2606, %v2523
      %v2639 = vadd.f32 %v2607, %v2526
      %v2640 = vadd.f32 %v2608, %v2529
      %v2641 = vadd.f32 %v2609, %v2532
      %v2642 = vadd.f32 %v2610, %v2535
      %v2643 = vadd.f32 %v2611, %v2538
      %v2644 = vadd.f32 %v2612, %v2541
      %v2645 = vadd.f32 %v2613, %v2544
      %v2646 = vadd.f32 %v2614, %v2547
      %v2647 = vadd.f32 %v2615, %v2550
      %v2648 = vadd.f32 %v2616, %v2553
      %v2649 = vadd.f32 %v2617, %v2556
      %v2650 = vadd.f32 %v2618, %v2559
      %v2651 = vadd.f32 %v2619, %v2562
      %v2652 = vadd.f32 %v2620, %v2565
      %v2653 = vadd.f32 %v2621, %v2568
      %v2654 = vadd.f32 %v2622, %v2571
      %v2655 = vadd.f32 %v2623, %v2574
      %v2656 = vadd.f32 %v2624, %v2577
      %v2657 = vadd.f32 %v2625, %v2580
      %v2658 = vadd.f32 %v2626, %v2583
      %v2659 = vadd.f32 %v2627, %v2586
      %v2660 = vadd.f32 %v2628, %v2589
      %v2661 = vadd.f32 %v2629, %v2592
      %v2662 = vadd.f32 %v2630, %v2595
      %v2663 = vadd.f32 %v2631, %v2598
      %2664 = vst.msk [vmem:[#allocation3] sm:$0xff] %vm651, %v2632
      %2665 = vst.msk [vmem:[#allocation3 + $0x8] sm:$0xff] %vm651, %v2633
      %2666 = vst.msk [vmem:[#allocation3 + $0x10] sm:$0xff] %vm651, %v2634
      %2667 = vst.msk [vmem:[#allocation3 + $0x18] sm:$0xff] %vm651, %v2635
      %2668 = vst.msk [vmem:[#allocation3 + $0x20] sm:$0xff] %vm651, %v2636
      %2669 = vst.msk [vmem:[#allocation3 + $0x28] sm:$0xff] %vm651, %v2637
      %2670 = vst.msk [vmem:[#allocation3 + $0x30] sm:$0xff] %vm651, %v2638
      %2671 = vst.msk [vmem:[#allocation3 + $0x38] sm:$0xff] %vm651, %v2639
      %2672 = vst.msk [vmem:[#allocation3 + $0x40] sm:$0xff] %vm651, %v2640
      %2673 = vst.msk [vmem:[#allocation3 + $0x48] sm:$0xff] %vm651, %v2641
      %2674 = vst.msk [vmem:[#allocation3 + $0x50] sm:$0xff] %vm651, %v2642
      %2675 = vst.msk [vmem:[#allocation3 + $0x58] sm:$0xff] %vm651, %v2643
      %2676 = vst.msk [vmem:[#allocation3 + $0x60] sm:$0xff] %vm651, %v2644
      %2677 = vst.msk [vmem:[#allocation3 + $0x68] sm:$0xff] %vm651, %v2645
      %2678 = vst.msk [vmem:[#allocation3 + $0x70] sm:$0xff] %vm651, %v2646
      %2679 = vst.msk [vmem:[#allocation3 + $0x78] sm:$0xff] %vm651, %v2647
      %2680 = vst.msk [vmem:[#allocation3 + $0x80] sm:$0xff] %vm651, %v2648
      %2681 = vst.msk [vmem:[#allocation3 + $0x88] sm:$0xff] %vm651, %v2649
      %2682 = vst.msk [vmem:[#allocation3 + $0x90] sm:$0xff] %vm651, %v2650
      %2683 = vst.msk [vmem:[#allocation3 + $0x98] sm:$0xff] %vm651, %v2651
      %2684 = vst.msk [vmem:[#allocation3 + $0xa0] sm:$0xff] %vm651, %v2652
      %2685 = vst.msk [vmem:[#allocation3 + $0xa8] sm:$0xff] %vm651, %v2653
      %2686 = vst.msk [vmem:[#allocation3 + $0xb0] sm:$0xff] %vm651, %v2654
      %2687 = vst.msk [vmem:[#allocation3 + $0xb8] sm:$0xff] %vm651, %v2655
      %2688 = vst.msk [vmem:[#allocation3 + $0xc0] sm:$0xff] %vm651, %v2656
      %2689 = vst.msk [vmem:[#allocation3 + $0xc8] sm:$0xff] %vm651, %v2657
      %2690 = vst.msk [vmem:[#allocation3 + $0xd0] sm:$0xff] %vm651, %v2658
      %2691 = vst.msk [vmem:[#allocation3 + $0xd8] sm:$0xff] %vm651, %v2659
      %2692 = vst.msk [vmem:[#allocation3 + $0xe0] sm:$0xff] %vm651, %v2660
      %2693 = vst.msk [vmem:[#allocation3 + $0xe8] sm:$0xff] %vm651, %v2661
      %2694 = vst.msk [vmem:[#allocation3 + $0xf0] sm:$0xff] %vm651, %v2662
      %2695 = vst.msk [vmem:[#allocation3 + $0xf8] sm:$0xff] %vm651, %v2663
      %v2696 = vld [vmem:[#allocation3] sm:$0xff]
      %v2697 = vld [vmem:[#allocation3 + $0x8] sm:$0xff]
      %v2698 = vld [vmem:[#allocation3 + $0x10] sm:$0xff]
      %v2699 = vld [vmem:[#allocation3 + $0x18] sm:$0xff]
      %v2700 = vld [vmem:[#allocation3 + $0x20] sm:$0xff]
      %v2701 = vld [vmem:[#allocation3 + $0x28] sm:$0xff]
      %v2702 = vld [vmem:[#allocation3 + $0x30] sm:$0xff]
      %v2703 = vld [vmem:[#allocation3 + $0x38] sm:$0xff]
      %v2704 = vld [vmem:[#allocation3 + $0x40] sm:$0xff]
      %v2705 = vld [vmem:[#allocation3 + $0x48] sm:$0xff]
      %v2706 = vld [vmem:[#allocation3 + $0x50] sm:$0xff]
      %v2707 = vld [vmem:[#allocation3 + $0x58] sm:$0xff]
      %v2708 = vld [vmem:[#allocation3 + $0x60] sm:$0xff]
      %v2709 = vld [vmem:[#allocation3 + $0x68] sm:$0xff]
      %v2710 = vld [vmem:[#allocation3 + $0x70] sm:$0xff]
      %v2711 = vld [vmem:[#allocation3 + $0x78] sm:$0xff]
      %v2712 = vld [vmem:[#allocation3 + $0x80] sm:$0xff]
      %v2713 = vld [vmem:[#allocation3 + $0x88] sm:$0xff]
      %v2714 = vld [vmem:[#allocation3 + $0x90] sm:$0xff]
      %v2715 = vld [vmem:[#allocation3 + $0x98] sm:$0xff]
      %v2716 = vld [vmem:[#allocation3 + $0xa0] sm:$0xff]
      %v2717 = vld [vmem:[#allocation3 + $0xa8] sm:$0xff]
      %v2718 = vld [vmem:[#allocation3 + $0xb0] sm:$0xff]
      %v2719 = vld [vmem:[#allocation3 + $0xb8] sm:$0xff]
      %v2720 = vld [vmem:[#allocation3 + $0xc0] sm:$0xff]
      %v2721 = vld [vmem:[#allocation3 + $0xc8] sm:$0xff]
      %v2722 = vld [vmem:[#allocation3 + $0xd0] sm:$0xff]
      %v2723 = vld [vmem:[#allocation3 + $0xd8] sm:$0xff]
      %v2724 = vld [vmem:[#allocation3 + $0xe0] sm:$0xff]
      %v2725 = vld [vmem:[#allocation3 + $0xe8] sm:$0xff]
      %v2726 = vld [vmem:[#allocation3 + $0xf0] sm:$0xff]
      %v2727 = vld [vmem:[#allocation3 + $0xf8] sm:$0xff]
      %v2728 = vperm.slane %v258, 0
      %v2729 = vmul.f32 %v2696, %v2728
      %v2730 = vmul.f32 %v2697, %v2728
      %v2731 = vmul.f32 %v2698, %v2728
      %v2732 = vmul.f32 %v2699, %v2728
      %v2733 = vmul.f32 %v2700, %v2728
      %v2734 = vmul.f32 %v2701, %v2728
      %v2735 = vmul.f32 %v2702, %v2728
      %v2736 = vmul.f32 %v2703, %v2728
      %v2737 = vmul.f32 %v2704, %v2728
      %v2738 = vmul.f32 %v2705, %v2728
      %v2739 = vmul.f32 %v2706, %v2728
      %v2740 = vmul.f32 %v2707, %v2728
      %v2741 = vmul.f32 %v2708, %v2728
      %v2742 = vmul.f32 %v2709, %v2728
      %v2743 = vmul.f32 %v2710, %v2728
      %v2744 = vmul.f32 %v2711, %v2728
      %v2745 = vmul.f32 %v2712, %v2728
      %v2746 = vmul.f32 %v2713, %v2728
      %v2747 = vmul.f32 %v2714, %v2728
      %v2748 = vmul.f32 %v2715, %v2728
      %v2749 = vmul.f32 %v2716, %v2728
      %v2750 = vmul.f32 %v2717, %v2728
      %v2751 = vmul.f32 %v2718, %v2728
      %v2752 = vmul.f32 %v2719, %v2728
      %v2753 = vmul.f32 %v2720, %v2728
      %v2754 = vmul.f32 %v2721, %v2728
      %v2755 = vmul.f32 %v2722, %v2728
      %v2756 = vmul.f32 %v2723, %v2728
      %v2757 = vmul.f32 %v2724, %v2728
      %v2758 = vmul.f32 %v2725, %v2728
      %v2759 = vmul.f32 %v2726, %v2728
      %v2760 = vmul.f32 %v2727, %v2728
      %2761 = vst.msk [vmem:[%s214] sm:$0xff] %vm651, %v2729
      %2762 = vst.msk [vmem:[%s214 + $0x8] sm:$0xff] %vm651, %v2730
      %2763 = vst.msk [vmem:[%s214 + $0x10] sm:$0xff] %vm651, %v2731
      %2764 = vst.msk [vmem:[%s214 + $0x18] sm:$0xff] %vm651, %v2732
      %2765 = vst.msk [vmem:[%s214 + $0x20] sm:$0xff] %vm651, %v2733
      %2766 = vst.msk [vmem:[%s214 + $0x28] sm:$0xff] %vm651, %v2734
      %2767 = vst.msk [vmem:[%s214 + $0x30] sm:$0xff] %vm651, %v2735
      %2768 = vst.msk [vmem:[%s214 + $0x38] sm:$0xff] %vm651, %v2736
      %2769 = vst.msk [vmem:[%s214 + $0x40] sm:$0xff] %vm651, %v2737
      %2770 = vst.msk [vmem:[%s214 + $0x48] sm:$0xff] %vm651, %v2738
      %2771 = vst.msk [vmem:[%s214 + $0x50] sm:$0xff] %vm651, %v2739
      %2772 = vst.msk [vmem:[%s214 + $0x58] sm:$0xff] %vm651, %v2740
      %2773 = vst.msk [vmem:[%s214 + $0x60] sm:$0xff] %vm651, %v2741
      %2774 = vst.msk [vmem:[%s214 + $0x68] sm:$0xff] %vm651, %v2742
      %2775 = vst.msk [vmem:[%s214 + $0x70] sm:$0xff] %vm651, %v2743
      %2776 = vst.msk [vmem:[%s214 + $0x78] sm:$0xff] %vm651, %v2744
      %2777 = vst.msk [vmem:[%s214 + $0x80] sm:$0xff] %vm651, %v2745
      %2778 = vst.msk [vmem:[%s214 + $0x88] sm:$0xff] %vm651, %v2746
      %2779 = vst.msk [vmem:[%s214 + $0x90] sm:$0xff] %vm651, %v2747
      %2780 = vst.msk [vmem:[%s214 + $0x98] sm:$0xff] %vm651, %v2748
      %2781 = vst.msk [vmem:[%s214 + $0xa0] sm:$0xff] %vm651, %v2749
      %2782 = vst.msk [vmem:[%s214 + $0xa8] sm:$0xff] %vm651, %v2750
      %2783 = vst.msk [vmem:[%s214 + $0xb0] sm:$0xff] %vm651, %v2751
      %2784 = vst.msk [vmem:[%s214 + $0xb8] sm:$0xff] %vm651, %v2752
      %2785 = vst.msk [vmem:[%s214 + $0xc0] sm:$0xff] %vm651, %v2753
      %2786 = vst.msk [vmem:[%s214 + $0xc8] sm:$0xff] %vm651, %v2754
      %2787 = vst.msk [vmem:[%s214 + $0xd0] sm:$0xff] %vm651, %v2755
      %2788 = vst.msk [vmem:[%s214 + $0xd8] sm:$0xff] %vm651, %v2756
      %2789 = vst.msk [vmem:[%s214 + $0xe0] sm:$0xff] %vm651, %v2757
      %2790 = vst.msk [vmem:[%s214 + $0xe8] sm:$0xff] %vm651, %v2758
      %2791 = vst.msk [vmem:[%s214 + $0xf0] sm:$0xff] %vm651, %v2759
      %2792 = vst.msk [vmem:[%s214 + $0xf8] sm:$0xff] %vm651, %v2760
      %p2793 = scmp.lt.s32.totalorder %s15, 1
      %s2794 = scalar_select %p2793, %s15, 1
      %s2795 = smul.addr %s2794, 32
      %s2796 = smul.addr %s2795, 8
      %s2797 = scalar_lea.vmem %s4, %s2796
      // Predicated region
      $region37: #{tpu_custom_call.1} parent=35 // pred_check
        %p2798 = pneg %p127
      $region38: #{tpu_custom_call.1} parent=35 // pred_check_branch
        %2800 = sbr.rel (%p2798) target = $region40
      $region39: #{tpu_custom_call.1} parent=35 // pred_region
        _
      $region40: #{tpu_custom_call.1} parent=35 // pred_fallthru
        _
    $region36: #{tpu_custom_call.1} parent=5 // pred_fallthru
      _
    %p2801 = scmp.le.s32.totalorder 2, %s10
    // Predicated region
    $region41: #{tpu_custom_call.1} parent=5 // pred_check
      %p2802 = pneg %p2801
    $region42: #{tpu_custom_call.1} parent=5 // pred_check_branch
      %2804 = sbr.rel (%p2802) target = $region44
    $region43: #{tpu_custom_call.1} parent=5 // pred_region
      %s2805 = ssub.s32 %s10, 2
      // Predicated region
      $region45: #{tpu_custom_call.1} parent=43 // pred_check
        %p2806 = pneg %p133
      $region46: #{tpu_custom_call.1} parent=43 // pred_check_branch
        %2808 = sbr.rel (%p2806) target = $region48
      $region47: #{tpu_custom_call.1} parent=43 // pred_region
        %p2809 = scmp.lt.s32.totalorder %s16, 1
        %s2810 = scalar_select %p2809, %s16, 1
        %s2811 = smul.addr %s2810, 32
        %s2812 = smul.addr %s2811, 8
        %s2813 = scalar_lea.vmem %s4, %s2812
      $region48: #{tpu_custom_call.1} parent=43 // pred_fallthru
        _
    $region44: #{tpu_custom_call.1} parent=5 // pred_fallthru
      _
  $region6: #{tpu_custom_call.1} parent=0 // loop_footer
    %s14 = sadd.s32 1, %s10
  $region7: #{tpu_custom_call.1} parent=0 // loop_footer_branch
    %9 = sbr.rel target = $region3
  $region8: #{tpu_custom_call.1} parent=0 // loop_exit
    _

</llo_original>
